<compile_context>
chip_gen: v7x
topology: tpu7x:2x2x1
jax: 0.10.0
libtpu: 0.0.40
codegen_flags: <defaults>
</compile_context>

<pallas_src>
import jax
import jax.numpy as jnp
from jax.experimental import pallas as pl
from jax.experimental.pallas import tpu as pltpu


def _round_up(n, m):
    return ((n + m - 1) // m) * m


def wrapped_gru_forward(x, w_ih, w_hh, b_ih, b_hh, *, time_chunk=32):
    """x: (T, B, I).  w_ih: (3H, I), w_hh: (3H, H), b_ih/b_hh: (3H,) in r,z,n order
    (PyTorch parameter layout).  Returns the last hidden state, shape (B, H), float32."""
    f32, bf16 = jnp.float32, jnp.bfloat16
    T, B, I = x.shape
    H = w_hh.shape[1]

    Hp = _round_up(H, 128)          # lane-dense gate/hidden width
    Bp = _round_up(B, 8)            # sublane-aligned batch

    # Largest chunk length <= time_chunk that divides T: no padded timesteps, so no wasted
    # serial matmul steps and no where-masking inside the recurrence.
    # TODO(synk): for production T with awkward factorization, give the tail chunk its own
    # static trip count instead of shrinking Tc.
    Tc = min(time_chunk, T)
    while T % Tc:
        Tc -= 1
    n_chunks = T // Tc
    unroll = True if Tc <= 8 else 8   # partial unroll for long chunks (vreg / i-stream pressure)

    # ---- fused, lane-padded parameters (gate order r, z, n) -------------------------------
    # Zero padding keeps padded hidden columns identically zero through the recurrence.
    w_i3 = jnp.zeros((I, 3 * Hp), f32)     # x-side weights,  x @ w_i3 -> [gx_r|gx_z|gx_n]
    w_h3 = jnp.zeros((Hp, 3 * Hp), f32)    # h-side weights,  h @ w_h3 -> [gh_r|gh_z|gh_n]
    b_i3 = jnp.zeros((1, 3 * Hp), f32)     # b_ir+b_hr | b_iz+b_hz | b_in   (b_hr/b_hz folded in)
    b_hn = jnp.zeros((1, Hp), f32)         # b_hn must stay hidden-side: r * (h@W_hn + b_hn)
    for g in range(3):
        w_i3 = w_i3.at[:, g * Hp:g * Hp + H].set(w_ih[g * H:(g + 1) * H, :].T.astype(f32))
        w_h3 = w_h3.at[:H, g * Hp:g * Hp + H].set(w_hh[g * H:(g + 1) * H, :].T.astype(f32))
        bias = b_ih[g * H:(g + 1) * H].astype(f32)
        if g < 2:   # r, z: hidden bias adds outside any gating -> fold into the x-side bias
            bias = bias + b_hh[g * H:(g + 1) * H].astype(f32)
        b_i3 = b_i3.at[:, g * Hp:g * Hp + H].set(bias)
    b_hn = b_hn.at[:, :H].set(b_hh[2 * H:3 * H].astype(f32))

    # bf16 matmul operands, f32 accumulation; gate math stays f32 (v5e VPU/EUP have no bf16).
    w_i3 = w_i3.astype(bf16)
    w_h3 = w_h3.astype(bf16)

    # Batch padding only when actually needed (avoid an extra HBM pass over x otherwise).
    x_p = x.astype(f32) if B == Bp else jnp.pad(x.astype(f32), ((0, 0), (0, Bp - B), (0, 0)))

    # ---- explicit VMEM budget (double-buffered x chunk, resident weights, scratch) --------
    est = (
        2 * Tc * Bp * I * 4            # x time chunk (double-buffered)
        + 2 * max(8, I) * 3 * Hp * 2   # w_i3 (bf16; count 2 bufs to stay conservative)
        + 2 * 8 * 3 * Hp * 4           # b_i3
        + 2 * Hp * 3 * Hp * 2          # w_h3 (bf16)
        + 2 * 8 * Hp * 4               # b_hn
        + 2 * Bp * Hp * 4              # output block
        + Bp * Hp * 4                  # h carry scratch
        + Tc * Bp * 3 * Hp * 4         # per-chunk gates_x scratch (never hits HBM)
    )
    vmem_limit = int(min(64 * 2 ** 20, max(16 * 2 ** 20, 2 * est)))

    # ---- fused kernel: per grid step = one input-proj GEMM + Tc serial recurrence steps ---
    def gru_fused_kernel(x_ref, wi_ref, bi_ref, wh_ref, bhn_ref, out_ref, h_ref, gx_ref):
        c = pl.program_id(0)

        @pl.when(c == 0)
        def _init():
            h_ref[...] = jnp.zeros_like(h_ref)

        # Input projection for the whole chunk (one MXU GEMM, amortized over Tc steps).
        x2d = x_ref[...].reshape(Tc * Bp, I).astype(bf16)
        gx = jnp.dot(x2d, wi_ref[...], preferred_element_type=jnp.float32) + bi_ref[...]
        gx_ref[...] = gx.reshape(Tc, Bp, 3 * Hp)

        wh = wh_ref[...]                                   # (Hp, 3Hp) bf16, resident
        bhn_b = jnp.broadcast_to(bhn_ref[...], (Bp, Hp))   # hoisted: JAX does not CSE broadcasts

        # TODO(synk): at production Hp, split gh into per-gate (or 256/512-lane) column strips
        # to cap vreg pressure, and hold W_h in MXU staging across the unrolled steps via
        # pltpu.matmul_push_rhs / matmul_acc_lhs / matmul_pop instead of re-pushing per step.
        def step(i, h):
            gx_t = gx_ref[i]                               # (Bp, 3Hp) f32, VMEM load
            gh = jnp.dot(h.astype(bf16), wh, preferred_element_type=jnp.float32)
            r = jax.nn.sigmoid(gx_t[:, :Hp] + gh[:, :Hp])
            z = jax.nn.sigmoid(gx_t[:, Hp:2 * Hp] + gh[:, Hp:2 * Hp])
            n = jnp.tanh(gx_t[:, 2 * Hp:] + r * (gh[:, 2 * Hp:] + bhn_b))
            return (1.0 - z) * n + z * h

        h_last = jax.lax.fori_loop(0, Tc, step, h_ref[...], unroll=unroll)
        h_ref[...] = h_last
        out_ref[...] = h_last.astype(out_ref.dtype)        # tiny vst every chunk; no writeback dep

    # TODO(synk): on v7x with production B >= 16, add a leading 'parallel' batch grid axis so
    # both TensorCores run independent batch slices of the recurrence.
    def build(single_buffer_weights):
        if single_buffer_weights:
            def const_spec(shape):
                return pl.BlockSpec(shape, lambda c: (0,) * len(shape),
                                    pipeline_mode=pl.Buffered(1))
        else:
            def const_spec(shape):
                return pl.BlockSpec(shape, lambda c: (0,) * len(shape))

        return pl.pallas_call(
            gru_fused_kernel,
            out_shape=jax.ShapeDtypeStruct((Bp, Hp), f32),
            grid_spec=pltpu.PrefetchScalarGridSpec(
                num_scalar_prefetch=0,
                grid=(n_chunks,),
                in_specs=[
                    pl.BlockSpec((Tc, Bp, I), lambda c: (c, 0, 0)),  # time chunk of x
                    const_spec((I, 3 * Hp)),                         # fused x-side weights (bf16)
                    const_spec((1, 3 * Hp)),                         # fused x-side (+hr,+hz) bias
                    const_spec((Hp, 3 * Hp)),                        # fused recurrent weights (bf16)
                    const_spec((1, Hp)),                             # b_hn
                ],
                out_specs=pl.BlockSpec((Bp, Hp), lambda c: (0, 0)),
                scratch_shapes=[
                    pltpu.VMEM((Bp, Hp), f32),           # hidden-state carry
                    pltpu.VMEM((Tc, Bp, 3 * Hp), f32),   # per-chunk gates_x (never hits HBM)
                ],
            ),
            compiler_params=pltpu.CompilerParams(
                dimension_semantics=("arbitrary",),      # time is a true recurrence
                vmem_limit_bytes=vmem_limit,
            ),
        )

    args = (x_p, w_i3, b_i3, w_h3, b_hn)
    try:
        out_p = jax.block_until_ready(build(True)(*args))
    except Exception:
        # pl.Buffered(1) not honored on this jax/libtpu combo -> fall back to default double
        # buffering (extra VMEM for the resident weights only; semantics unchanged).
        out_p = jax.block_until_ready(build(False)(*args))

    return out_p[:B, :H]


def gru_reference(x, w_ih, w_hh, b_ih, b_hh):
    """Pure-JAX reference matching torch.nn.GRU semantics (h0 = 0), all-f32."""
    T, B, I = x.shape
    H = w_hh.shape[1]
    wir, wiz, win = (w_ih[0 * H:1 * H], w_ih[1 * H:2 * H], w_ih[2 * H:3 * H])
    whr, whz, whn = (w_hh[0 * H:1 * H], w_hh[1 * H:2 * H], w_hh[2 * H:3 * H])
    bir, biz, bin_ = (b_ih[0 * H:1 * H], b_ih[1 * H:2 * H], b_ih[2 * H:3 * H])
    bhr, bhz, bhn = (b_hh[0 * H:1 * H], b_hh[1 * H:2 * H], b_hh[2 * H:3 * H])

    def step(h, x_t):
        r = jax.nn.sigmoid(x_t @ wir.T + bir + h @ whr.T + bhr)
        z = jax.nn.sigmoid(x_t @ wiz.T + biz + h @ whz.T + bhz)
        n = jnp.tanh(x_t @ win.T + bin_ + r * (h @ whn.T + bhn))
        h_new = (1.0 - z) * n + z * h
        return h_new, None

    h0 = jnp.zeros((B, H), jnp.float32)
    h_last, _ = jax.lax.scan(step, h0, x)
    return h_last


if __name__ == "__main__":
    # Small shapes consistent with a single-layer nn.GRU forward:
    #   x: (seq_len=8, batch=8, input_size=16), hidden_size=32
    T, B, I, H = 8, 8, 16, 32

    key = jax.random.PRNGKey(0)
    kx, k1, k2, k3, k4 = jax.random.split(key, 5)

    # Deterministic parameter init mirroring PyTorch's U(-1/sqrt(H), 1/sqrt(H)).
    s = 1.0 / jnp.sqrt(jnp.float32(H))
    x = jax.random.normal(kx, (T, B, I), jnp.float32)
    w_ih = jax.random.uniform(k1, (3 * H, I), jnp.float32, -s, s)
    w_hh = jax.random.uniform(k2, (3 * H, H), jnp.float32, -s, s)
    b_ih = jax.random.uniform(k3, (3 * H,), jnp.float32, -s, s)
    b_hh = jax.random.uniform(k4, (3 * H,), jnp.float32, -s, s)

    out = jax.block_until_ready(wrapped_gru_forward(x, w_ih, w_hh, b_ih, b_hh))
    ref = jax.block_until_ready(gru_reference(x, w_ih, w_hh, b_ih, b_hh))

    assert out.shape == (B, H)
    # bf16 matmul operands (f32 accumulation / gate math) -> loosened tolerance vs f32 reference.
    err = float(jnp.max(jnp.abs(out - ref)))
    assert jnp.allclose(out, ref, atol=2e-2, rtol=2e-2), f"mismatch vs JAX reference, max|err|={err}"

    print("KERNEL_OK")
</pallas_src>

<mosaic_0001>
module attributes {stable_mosaic.version = 11 : i64} {
  func.func @gru_fused_kernel(%arg0: i32, %arg1: memref<8x8x16xf32, #tpu.memory_space<vmem>>, %arg2: memref<16x384xbf16, #tpu.memory_space<vmem>>, %arg3: memref<1x384xf32, #tpu.memory_space<vmem>>, %arg4: memref<128x384xbf16, #tpu.memory_space<vmem>>, %arg5: memref<1x128xf32, #tpu.memory_space<vmem>>, %arg6: memref<8x128xf32, #tpu.memory_space<vmem>>, %arg7: memref<8x128xf32, #tpu.memory_space<vmem>>, %arg8: memref<8x8x384xf32, #tpu.memory_space<vmem>>) attributes {dimension_semantics = [#tpu.dimension_semantics<arbitrary>], iteration_bounds = array<i64: 1>, scalar_prefetch = 0 : i64, scratch_operands = 2 : i64, tpu.core_type = #tpu.core_type<tc>, window_params = [{transform_indices = @transform_0, window_bounds = array<i64: 8, 8, 16>}, {pipeline_mode = #tpu.pipeline_mode<synchronous>, transform_indices = @transform_1, window_bounds = array<i64: 16, 384>}, {pipeline_mode = #tpu.pipeline_mode<synchronous>, transform_indices = @transform_2, window_bounds = array<i64: 1, 384>}, {pipeline_mode = #tpu.pipeline_mode<synchronous>, transform_indices = @transform_3, window_bounds = array<i64: 128, 384>}, {pipeline_mode = #tpu.pipeline_mode<synchronous>, transform_indices = @transform_4, window_bounds = array<i64: 1, 128>}, {pipeline_mode = #tpu.pipeline_mode<synchronous>, transform_indices = @transform_5, window_bounds = array<i64: 8, 128>}]} {
    %c0_i32 = arith.constant 0 : i32
    %0 = arith.cmpi eq, %arg0, %c0_i32 : i32
    %1 = arith.extui %0 : i1 to i32
    %c0_i32_0 = arith.constant 0 : i32
    %2 = arith.cmpi ne, %1, %c0_i32_0 : i32
    scf.if %2 {
      %cst_69 = arith.constant 0.000000e+00 : f32
      %276 = vector.broadcast %cst_69 : f32 to vector<8x128xf32>
      %c0_70 = arith.constant 0 : index
      %c0_71 = arith.constant 0 : index
      %277 = vector.load %arg7[%c0_70, %c0_71] : memref<8x128xf32, #tpu.memory_space<vmem>>, vector<8x128xf32>
      tpu.vector_store %arg7[%c0_70, %c0_71], %276 {strides = array<i32>} : memref<8x128xf32, #tpu.memory_space<vmem>>, vector<8x128xf32>,
    } else {
    }
    %c0 = arith.constant 0 : index
    %c0_1 = arith.constant 0 : index
    %c0_2 = arith.constant 0 : index
    %3 = vector.load %arg1[%c0, %c0_1, %c0_2] : memref<8x8x16xf32, #tpu.memory_space<vmem>>, vector<8x8x16xf32>
    %4 = vector.shape_cast %3 : vector<8x8x16xf32> to vector<64x16xf32>
    %5 = arith.truncf %4 : vector<64x16xf32> to vector<64x16xbf16>
    %c0_3 = arith.constant 0 : index
    %c0_4 = arith.constant 0 : index
    %6 = vector.load %arg2[%c0_3, %c0_4] : memref<16x384xbf16, #tpu.memory_space<vmem>>, vector<16x384xbf16>
    %cst = arith.constant dense<0.000000e+00> : vector<64x384xf32>
    %7 = tpu.matmul %5, %6, %cst {dimension_numbers = #tpu.dot_dimension_numbers<[1], [0], [0], [1], [0, 0, 1, 1], [], []>} : vector<64x16xbf16>, vector<16x384xbf16>, vector<64x384xf32> -> vector<64x384xf32>
    %c0_5 = arith.constant 0 : index
    %c0_6 = arith.constant 0 : index
    %8 = vector.load %arg3[%c0_5, %c0_6] : memref<1x384xf32, #tpu.memory_space<vmem>>, vector<1x384xf32>
    %9 = vector.broadcast %8 : vector<1x384xf32> to vector<64x384xf32>
    %10 = arith.addf %7, %9 : vector<64x384xf32>
    %11 = vector.shape_cast %10 : vector<64x384xf32> to vector<8x8x384xf32>
    %c0_7 = arith.constant 0 : index
    %c0_8 = arith.constant 0 : index
    %c0_9 = arith.constant 0 : index
    %12 = vector.load %arg8[%c0_7, %c0_8, %c0_9] : memref<8x8x384xf32, #tpu.memory_space<vmem>>, vector<8x8x384xf32>
    tpu.vector_store %arg8[%c0_7, %c0_8, %c0_9], %11 {strides = array<i32>} : memref<8x8x384xf32, #tpu.memory_space<vmem>>, vector<8x8x384xf32>,
    %c0_10 = arith.constant 0 : index
    %c0_11 = arith.constant 0 : index
    %13 = vector.load %arg4[%c0_10, %c0_11] : memref<128x384xbf16, #tpu.memory_space<vmem>>, vector<128x384xbf16>
    %c0_12 = arith.constant 0 : index
    %c0_13 = arith.constant 0 : index
    %14 = vector.load %arg5[%c0_12, %c0_13] : memref<1x128xf32, #tpu.memory_space<vmem>>, vector<1x128xf32>
    %15 = vector.shape_cast %14 : vector<1x128xf32> to vector<1x128xf32>
    %16 = vector.broadcast %15 : vector<1x128xf32> to vector<8x128xf32>
    %c0_14 = arith.constant 0 : index
    %c0_15 = arith.constant 0 : index
    %17 = vector.load %arg7[%c0_14, %c0_15] : memref<8x128xf32, #tpu.memory_space<vmem>>, vector<8x128xf32>
    %c0_i32_16 = arith.constant 0 : i32
    %18 = arith.index_cast %c0_i32_16 : i32 to index
    %c0_17 = arith.constant 0 : index
    %c0_18 = arith.constant 0 : index
    %19 = vector.load %arg8[%18, %c0_17, %c0_18] : memref<8x8x384xf32, #tpu.memory_space<vmem>>, vector<1x8x384xf32>
    %20 = vector.shape_cast %19 : vector<1x8x384xf32> to vector<8x384xf32>
    %21 = arith.truncf %17 : vector<8x128xf32> to vector<8x128xbf16>
    %cst_19 = arith.constant dense<0.000000e+00> : vector<8x384xf32>
    %22 = tpu.matmul %21, %13, %cst_19 {dimension_numbers = #tpu.dot_dimension_numbers<[1], [0], [0], [1], [0, 0, 1, 1], [], []>} : vector<8x128xbf16>, vector<128x384xbf16>, vector<8x384xf32> -> vector<8x384xf32>
    %23 = vector.extract_strided_slice %20 {offsets = [0, 0], sizes = [8, 128], strides = [1, 1]} : vector<8x384xf32> to vector<8x128xf32>
    %24 = vector.extract_strided_slice %22 {offsets = [0, 0], sizes = [8, 128], strides = [1, 1]} : vector<8x384xf32> to vector<8x128xf32>
    %25 = arith.addf %23, %24 : vector<8x128xf32>
    %26 = arith.negf %25 : vector<8x128xf32>
    %27 = math.exp %26 : vector<8x128xf32>
    %cst_20 = arith.constant 1.000000e+00 : f32
    %28 = vector.broadcast %cst_20 : f32 to vector<8x128xf32>
    %29 = arith.addf %28, %27 : vector<8x128xf32>
    %30 = arith.divf %28, %29 : vector<8x128xf32>
    %31 = vector.extract_strided_slice %20 {offsets = [0, 128], sizes = [8, 128], strides = [1, 1]} : vector<8x384xf32> to vector<8x128xf32>
    %32 = vector.extract_strided_slice %22 {offsets = [0, 128], sizes = [8, 128], strides = [1, 1]} : vector<8x384xf32> to vector<8x128xf32>
    %33 = arith.addf %31, %32 : vector<8x128xf32>
    %34 = arith.negf %33 : vector<8x128xf32>
    %35 = math.exp %34 : vector<8x128xf32>
    %cst_21 = arith.constant 1.000000e+00 : f32
    %36 = vector.broadcast %cst_21 : f32 to vector<8x128xf32>
    %37 = arith.addf %36, %35 : vector<8x128xf32>
    %38 = arith.divf %36, %37 : vector<8x128xf32>
    %39 = vector.extract_strided_slice %20 {offsets = [0, 256], sizes = [8, 128], strides = [1, 1]} : vector<8x384xf32> to vector<8x128xf32>
    %40 = vector.extract_strided_slice %22 {offsets = [0, 256], sizes = [8, 128], strides = [1, 1]} : vector<8x384xf32> to vector<8x128xf32>
    %41 = arith.addf %40, %16 : vector<8x128xf32>
    %42 = arith.mulf %30, %41 : vector<8x128xf32>
    %43 = arith.addf %39, %42 : vector<8x128xf32>
    %44 = math.tanh %43 : vector<8x128xf32>
    %cst_22 = arith.constant 1.000000e+00 : f32
    %45 = vector.broadcast %cst_22 : f32 to vector<8x128xf32>
    %46 = arith.subf %45, %38 : vector<8x128xf32>
    %47 = arith.mulf %46, %44 : vector<8x128xf32>
    %48 = arith.mulf %38, %17 : vector<8x128xf32>
    %49 = arith.addf %47, %48 : vector<8x128xf32>
    %c1_i32 = arith.constant 1 : i32
    %50 = arith.index_cast %c1_i32 : i32 to index
    %c0_23 = arith.constant 0 : index
    %c0_24 = arith.constant 0 : index
    %51 = vector.load %arg8[%50, %c0_23, %c0_24] : memref<8x8x384xf32, #tpu.memory_space<vmem>>, vector<1x8x384xf32>
    %52 = vector.shape_cast %51 : vector<1x8x384xf32> to vector<8x384xf32>
    %53 = arith.truncf %49 : vector<8x128xf32> to vector<8x128xbf16>
    %cst_25 = arith.constant dense<0.000000e+00> : vector<8x384xf32>
    %54 = tpu.matmul %53, %13, %cst_25 {dimension_numbers = #tpu.dot_dimension_numbers<[1], [0], [0], [1], [0, 0, 1, 1], [], []>} : vector<8x128xbf16>, vector<128x384xbf16>, vector<8x384xf32> -> vector<8x384xf32>
    %55 = vector.extract_strided_slice %52 {offsets = [0, 0], sizes = [8, 128], strides = [1, 1]} : vector<8x384xf32> to vector<8x128xf32>
    %56 = vector.extract_strided_slice %54 {offsets = [0, 0], sizes = [8, 128], strides = [1, 1]} : vector<8x384xf32> to vector<8x128xf32>
    %57 = arith.addf %55, %56 : vector<8x128xf32>
    %58 = arith.negf %57 : vector<8x128xf32>
    %59 = math.exp %58 : vector<8x128xf32>
    %cst_26 = arith.constant 1.000000e+00 : f32
    %60 = vector.broadcast %cst_26 : f32 to vector<8x128xf32>
    %61 = arith.addf %60, %59 : vector<8x128xf32>
    %62 = arith.divf %60, %61 : vector<8x128xf32>
    %63 = vector.extract_strided_slice %52 {offsets = [0, 128], sizes = [8, 128], strides = [1, 1]} : vector<8x384xf32> to vector<8x128xf32>
    %64 = vector.extract_strided_slice %54 {offsets = [0, 128], sizes = [8, 128], strides = [1, 1]} : vector<8x384xf32> to vector<8x128xf32>
    %65 = arith.addf %63, %64 : vector<8x128xf32>
    %66 = arith.negf %65 : vector<8x128xf32>
    %67 = math.exp %66 : vector<8x128xf32>
    %cst_27 = arith.constant 1.000000e+00 : f32
    %68 = vector.broadcast %cst_27 : f32 to vector<8x128xf32>
    %69 = arith.addf %68, %67 : vector<8x128xf32>
    %70 = arith.divf %68, %69 : vector<8x128xf32>
    %71 = vector.extract_strided_slice %52 {offsets = [0, 256], sizes = [8, 128], strides = [1, 1]} : vector<8x384xf32> to vector<8x128xf32>
    %72 = vector.extract_strided_slice %54 {offsets = [0, 256], sizes = [8, 128], strides = [1, 1]} : vector<8x384xf32> to vector<8x128xf32>
    %73 = arith.addf %72, %16 : vector<8x128xf32>
    %74 = arith.mulf %62, %73 : vector<8x128xf32>
    %75 = arith.addf %71, %74 : vector<8x128xf32>
    %76 = math.tanh %75 : vector<8x128xf32>
    %cst_28 = arith.constant 1.000000e+00 : f32
    %77 = vector.broadcast %cst_28 : f32 to vector<8x128xf32>
    %78 = arith.subf %77, %70 : vector<8x128xf32>
    %79 = arith.mulf %78, %76 : vector<8x128xf32>
    %80 = arith.mulf %70, %49 : vector<8x128xf32>
    %81 = arith.addf %79, %80 : vector<8x128xf32>
    %c2_i32 = arith.constant 2 : i32
    %82 = arith.index_cast %c2_i32 : i32 to index
    %c0_29 = arith.constant 0 : index
    %c0_30 = arith.constant 0 : index
    %83 = vector.load %arg8[%82, %c0_29, %c0_30] : memref<8x8x384xf32, #tpu.memory_space<vmem>>, vector<1x8x384xf32>
    %84 = vector.shape_cast %83 : vector<1x8x384xf32> to vector<8x384xf32>
    %85 = arith.truncf %81 : vector<8x128xf32> to vector<8x128xbf16>
    %cst_31 = arith.constant dense<0.000000e+00> : vector<8x384xf32>
    %86 = tpu.matmul %85, %13, %cst_31 {dimension_numbers = #tpu.dot_dimension_numbers<[1], [0], [0], [1], [0, 0, 1, 1], [], []>} : vector<8x128xbf16>, vector<128x384xbf16>, vector<8x384xf32> -> vector<8x384xf32>
    %87 = vector.extract_strided_slice %84 {offsets = [0, 0], sizes = [8, 128], strides = [1, 1]} : vector<8x384xf32> to vector<8x128xf32>
    %88 = vector.extract_strided_slice %86 {offsets = [0, 0], sizes = [8, 128], strides = [1, 1]} : vector<8x384xf32> to vector<8x128xf32>
    %89 = arith.addf %87, %88 : vector<8x128xf32>
    %90 = arith.negf %89 : vector<8x128xf32>
    %91 = math.exp %90 : vector<8x128xf32>
    %cst_32 = arith.constant 1.000000e+00 : f32
    %92 = vector.broadcast %cst_32 : f32 to vector<8x128xf32>
    %93 = arith.addf %92, %91 : vector<8x128xf32>
    %94 = arith.divf %92, %93 : vector<8x128xf32>
    %95 = vector.extract_strided_slice %84 {offsets = [0, 128], sizes = [8, 128], strides = [1, 1]} : vector<8x384xf32> to vector<8x128xf32>
    %96 = vector.extract_strided_slice %86 {offsets = [0, 128], sizes = [8, 128], strides = [1, 1]} : vector<8x384xf32> to vector<8x128xf32>
    %97 = arith.addf %95, %96 : vector<8x128xf32>
    %98 = arith.negf %97 : vector<8x128xf32>
    %99 = math.exp %98 : vector<8x128xf32>
    %cst_33 = arith.constant 1.000000e+00 : f32
    %100 = vector.broadcast %cst_33 : f32 to vector<8x128xf32>
    %101 = arith.addf %100, %99 : vector<8x128xf32>
    %102 = arith.divf %100, %101 : vector<8x128xf32>
    %103 = vector.extract_strided_slice %84 {offsets = [0, 256], sizes = [8, 128], strides = [1, 1]} : vector<8x384xf32> to vector<8x128xf32>
    %104 = vector.extract_strided_slice %86 {offsets = [0, 256], sizes = [8, 128], strides = [1, 1]} : vector<8x384xf32> to vector<8x128xf32>
    %105 = arith.addf %104, %16 : vector<8x128xf32>
    %106 = arith.mulf %94, %105 : vector<8x128xf32>
    %107 = arith.addf %103, %106 : vector<8x128xf32>
    %108 = math.tanh %107 : vector<8x128xf32>
    %cst_34 = arith.constant 1.000000e+00 : f32
    %109 = vector.broadcast %cst_34 : f32 to vector<8x128xf32>
    %110 = arith.subf %109, %102 : vector<8x128xf32>
    %111 = arith.mulf %110, %108 : vector<8x128xf32>
    %112 = arith.mulf %102, %81 : vector<8x128xf32>
    %113 = arith.addf %111, %112 : vector<8x128xf32>
    %c3_i32 = arith.constant 3 : i32
    %114 = arith.index_cast %c3_i32 : i32 to index
    %c0_35 = arith.constant 0 : index
    %c0_36 = arith.constant 0 : index
    %115 = vector.load %arg8[%114, %c0_35, %c0_36] : memref<8x8x384xf32, #tpu.memory_space<vmem>>, vector<1x8x384xf32>
    %116 = vector.shape_cast %115 : vector<1x8x384xf32> to vector<8x384xf32>
    %117 = arith.truncf %113 : vector<8x128xf32> to vector<8x128xbf16>
    %cst_37 = arith.constant dense<0.000000e+00> : vector<8x384xf32>
    %118 = tpu.matmul %117, %13, %cst_37 {dimension_numbers = #tpu.dot_dimension_numbers<[1], [0], [0], [1], [0, 0, 1, 1], [], []>} : vector<8x128xbf16>, vector<128x384xbf16>, vector<8x384xf32> -> vector<8x384xf32>
    %119 = vector.extract_strided_slice %116 {offsets = [0, 0], sizes = [8, 128], strides = [1, 1]} : vector<8x384xf32> to vector<8x128xf32>
    %120 = vector.extract_strided_slice %118 {offsets = [0, 0], sizes = [8, 128], strides = [1, 1]} : vector<8x384xf32> to vector<8x128xf32>
    %121 = arith.addf %119, %120 : vector<8x128xf32>
    %122 = arith.negf %121 : vector<8x128xf32>
    %123 = math.exp %122 : vector<8x128xf32>
    %cst_38 = arith.constant 1.000000e+00 : f32
    %124 = vector.broadcast %cst_38 : f32 to vector<8x128xf32>
    %125 = arith.addf %124, %123 : vector<8x128xf32>
    %126 = arith.divf %124, %125 : vector<8x128xf32>
    %127 = vector.extract_strided_slice %116 {offsets = [0, 128], sizes = [8, 128], strides = [1, 1]} : vector<8x384xf32> to vector<8x128xf32>
    %128 = vector.extract_strided_slice %118 {offsets = [0, 128], sizes = [8, 128], strides = [1, 1]} : vector<8x384xf32> to vector<8x128xf32>
    %129 = arith.addf %127, %128 : vector<8x128xf32>
    %130 = arith.negf %129 : vector<8x128xf32>
    %131 = math.exp %130 : vector<8x128xf32>
    %cst_39 = arith.constant 1.000000e+00 : f32
    %132 = vector.broadcast %cst_39 : f32 to vector<8x128xf32>
    %133 = arith.addf %132, %131 : vector<8x128xf32>
    %134 = arith.divf %132, %133 : vector<8x128xf32>
    %135 = vector.extract_strided_slice %116 {offsets = [0, 256], sizes = [8, 128], strides = [1, 1]} : vector<8x384xf32> to vector<8x128xf32>
    %136 = vector.extract_strided_slice %118 {offsets = [0, 256], sizes = [8, 128], strides = [1, 1]} : vector<8x384xf32> to vector<8x128xf32>
    %137 = arith.addf %136, %16 : vector<8x128xf32>
    %138 = arith.mulf %126, %137 : vector<8x128xf32>
    %139 = arith.addf %135, %138 : vector<8x128xf32>
    %140 = math.tanh %139 : vector<8x128xf32>
    %cst_40 = arith.constant 1.000000e+00 : f32
    %141 = vector.broadcast %cst_40 : f32 to vector<8x128xf32>
    %142 = arith.subf %141, %134 : vector<8x128xf32>
    %143 = arith.mulf %142, %140 : vector<8x128xf32>
    %144 = arith.mulf %134, %113 : vector<8x128xf32>
    %145 = arith.addf %143, %144 : vector<8x128xf32>
    %c4_i32 = arith.constant 4 : i32
    %146 = arith.index_cast %c4_i32 : i32 to index
    %c0_41 = arith.constant 0 : index
    %c0_42 = arith.constant 0 : index
    %147 = vector.load %arg8[%146, %c0_41, %c0_42] : memref<8x8x384xf32, #tpu.memory_space<vmem>>, vector<1x8x384xf32>
    %148 = vector.shape_cast %147 : vector<1x8x384xf32> to vector<8x384xf32>
    %149 = arith.truncf %145 : vector<8x128xf32> to vector<8x128xbf16>
    %cst_43 = arith.constant dense<0.000000e+00> : vector<8x384xf32>
    %150 = tpu.matmul %149, %13, %cst_43 {dimension_numbers = #tpu.dot_dimension_numbers<[1], [0], [0], [1], [0, 0, 1, 1], [], []>} : vector<8x128xbf16>, vector<128x384xbf16>, vector<8x384xf32> -> vector<8x384xf32>
    %151 = vector.extract_strided_slice %148 {offsets = [0, 0], sizes = [8, 128], strides = [1, 1]} : vector<8x384xf32> to vector<8x128xf32>
    %152 = vector.extract_strided_slice %150 {offsets = [0, 0], sizes = [8, 128], strides = [1, 1]} : vector<8x384xf32> to vector<8x128xf32>
    %153 = arith.addf %151, %152 : vector<8x128xf32>
    %154 = arith.negf %153 : vector<8x128xf32>
    %155 = math.exp %154 : vector<8x128xf32>
    %cst_44 = arith.constant 1.000000e+00 : f32
    %156 = vector.broadcast %cst_44 : f32 to vector<8x128xf32>
    %157 = arith.addf %156, %155 : vector<8x128xf32>
    %158 = arith.divf %156, %157 : vector<8x128xf32>
    %159 = vector.extract_strided_slice %148 {offsets = [0, 128], sizes = [8, 128], strides = [1, 1]} : vector<8x384xf32> to vector<8x128xf32>
    %160 = vector.extract_strided_slice %150 {offsets = [0, 128], sizes = [8, 128], strides = [1, 1]} : vector<8x384xf32> to vector<8x128xf32>
    %161 = arith.addf %159, %160 : vector<8x128xf32>
    %162 = arith.negf %161 : vector<8x128xf32>
    %163 = math.exp %162 : vector<8x128xf32>
    %cst_45 = arith.constant 1.000000e+00 : f32
    %164 = vector.broadcast %cst_45 : f32 to vector<8x128xf32>
    %165 = arith.addf %164, %163 : vector<8x128xf32>
    %166 = arith.divf %164, %165 : vector<8x128xf32>
    %167 = vector.extract_strided_slice %148 {offsets = [0, 256], sizes = [8, 128], strides = [1, 1]} : vector<8x384xf32> to vector<8x128xf32>
    %168 = vector.extract_strided_slice %150 {offsets = [0, 256], sizes = [8, 128], strides = [1, 1]} : vector<8x384xf32> to vector<8x128xf32>
    %169 = arith.addf %168, %16 : vector<8x128xf32>
    %170 = arith.mulf %158, %169 : vector<8x128xf32>
    %171 = arith.addf %167, %170 : vector<8x128xf32>
    %172 = math.tanh %171 : vector<8x128xf32>
    %cst_46 = arith.constant 1.000000e+00 : f32
    %173 = vector.broadcast %cst_46 : f32 to vector<8x128xf32>
    %174 = arith.subf %173, %166 : vector<8x128xf32>
    %175 = arith.mulf %174, %172 : vector<8x128xf32>
    %176 = arith.mulf %166, %145 : vector<8x128xf32>
    %177 = arith.addf %175, %176 : vector<8x128xf32>
    %c5_i32 = arith.constant 5 : i32
    %178 = arith.index_cast %c5_i32 : i32 to index
    %c0_47 = arith.constant 0 : index
    %c0_48 = arith.constant 0 : index
    %179 = vector.load %arg8[%178, %c0_47, %c0_48] : memref<8x8x384xf32, #tpu.memory_space<vmem>>, vector<1x8x384xf32>
    %180 = vector.shape_cast %179 : vector<1x8x384xf32> to vector<8x384xf32>
    %181 = arith.truncf %177 : vector<8x128xf32> to vector<8x128xbf16>
    %cst_49 = arith.constant dense<0.000000e+00> : vector<8x384xf32>
    %182 = tpu.matmul %181, %13, %cst_49 {dimension_numbers = #tpu.dot_dimension_numbers<[1], [0], [0], [1], [0, 0, 1, 1], [], []>} : vector<8x128xbf16>, vector<128x384xbf16>, vector<8x384xf32> -> vector<8x384xf32>
    %183 = vector.extract_strided_slice %180 {offsets = [0, 0], sizes = [8, 128], strides = [1, 1]} : vector<8x384xf32> to vector<8x128xf32>
    %184 = vector.extract_strided_slice %182 {offsets = [0, 0], sizes = [8, 128], strides = [1, 1]} : vector<8x384xf32> to vector<8x128xf32>
    %185 = arith.addf %183, %184 : vector<8x128xf32>
    %186 = arith.negf %185 : vector<8x128xf32>
    %187 = math.exp %186 : vector<8x128xf32>
    %cst_50 = arith.constant 1.000000e+00 : f32
    %188 = vector.broadcast %cst_50 : f32 to vector<8x128xf32>
    %189 = arith.addf %188, %187 : vector<8x128xf32>
    %190 = arith.divf %188, %189 : vector<8x128xf32>
    %191 = vector.extract_strided_slice %180 {offsets = [0, 128], sizes = [8, 128], strides = [1, 1]} : vector<8x384xf32> to vector<8x128xf32>
    %192 = vector.extract_strided_slice %182 {offsets = [0, 128], sizes = [8, 128], strides = [1, 1]} : vector<8x384xf32> to vector<8x128xf32>
    %193 = arith.addf %191, %192 : vector<8x128xf32>
    %194 = arith.negf %193 : vector<8x128xf32>
    %195 = math.exp %194 : vector<8x128xf32>
    %cst_51 = arith.constant 1.000000e+00 : f32
    %196 = vector.broadcast %cst_51 : f32 to vector<8x128xf32>
    %197 = arith.addf %196, %195 : vector<8x128xf32>
    %198 = arith.divf %196, %197 : vector<8x128xf32>
    %199 = vector.extract_strided_slice %180 {offsets = [0, 256], sizes = [8, 128], strides = [1, 1]} : vector<8x384xf32> to vector<8x128xf32>
    %200 = vector.extract_strided_slice %182 {offsets = [0, 256], sizes = [8, 128], strides = [1, 1]} : vector<8x384xf32> to vector<8x128xf32>
    %201 = arith.addf %200, %16 : vector<8x128xf32>
    %202 = arith.mulf %190, %201 : vector<8x128xf32>
    %203 = arith.addf %199, %202 : vector<8x128xf32>
    %204 = math.tanh %203 : vector<8x128xf32>
    %cst_52 = arith.constant 1.000000e+00 : f32
    %205 = vector.broadcast %cst_52 : f32 to vector<8x128xf32>
    %206 = arith.subf %205, %198 : vector<8x128xf32>
    %207 = arith.mulf %206, %204 : vector<8x128xf32>
    %208 = arith.mulf %198, %177 : vector<8x128xf32>
    %209 = arith.addf %207, %208 : vector<8x128xf32>
    %c6_i32 = arith.constant 6 : i32
    %210 = arith.index_cast %c6_i32 : i32 to index
    %c0_53 = arith.constant 0 : index
    %c0_54 = arith.constant 0 : index
    %211 = vector.load %arg8[%210, %c0_53, %c0_54] : memref<8x8x384xf32, #tpu.memory_space<vmem>>, vector<1x8x384xf32>
    %212 = vector.shape_cast %211 : vector<1x8x384xf32> to vector<8x384xf32>
    %213 = arith.truncf %209 : vector<8x128xf32> to vector<8x128xbf16>
    %cst_55 = arith.constant dense<0.000000e+00> : vector<8x384xf32>
    %214 = tpu.matmul %213, %13, %cst_55 {dimension_numbers = #tpu.dot_dimension_numbers<[1], [0], [0], [1], [0, 0, 1, 1], [], []>} : vector<8x128xbf16>, vector<128x384xbf16>, vector<8x384xf32> -> vector<8x384xf32>
    %215 = vector.extract_strided_slice %212 {offsets = [0, 0], sizes = [8, 128], strides = [1, 1]} : vector<8x384xf32> to vector<8x128xf32>
    %216 = vector.extract_strided_slice %214 {offsets = [0, 0], sizes = [8, 128], strides = [1, 1]} : vector<8x384xf32> to vector<8x128xf32>
    %217 = arith.addf %215, %216 : vector<8x128xf32>
    %218 = arith.negf %217 : vector<8x128xf32>
    %219 = math.exp %218 : vector<8x128xf32>
    %cst_56 = arith.constant 1.000000e+00 : f32
    %220 = vector.broadcast %cst_56 : f32 to vector<8x128xf32>
    %221 = arith.addf %220, %219 : vector<8x128xf32>
    %222 = arith.divf %220, %221 : vector<8x128xf32>
    %223 = vector.extract_strided_slice %212 {offsets = [0, 128], sizes = [8, 128], strides = [1, 1]} : vector<8x384xf32> to vector<8x128xf32>
    %224 = vector.extract_strided_slice %214 {offsets = [0, 128], sizes = [8, 128], strides = [1, 1]} : vector<8x384xf32> to vector<8x128xf32>
    %225 = arith.addf %223, %224 : vector<8x128xf32>
    %226 = arith.negf %225 : vector<8x128xf32>
    %227 = math.exp %226 : vector<8x128xf32>
    %cst_57 = arith.constant 1.000000e+00 : f32
    %228 = vector.broadcast %cst_57 : f32 to vector<8x128xf32>
    %229 = arith.addf %228, %227 : vector<8x128xf32>
    %230 = arith.divf %228, %229 : vector<8x128xf32>
    %231 = vector.extract_strided_slice %212 {offsets = [0, 256], sizes = [8, 128], strides = [1, 1]} : vector<8x384xf32> to vector<8x128xf32>
    %232 = vector.extract_strided_slice %214 {offsets = [0, 256], sizes = [8, 128], strides = [1, 1]} : vector<8x384xf32> to vector<8x128xf32>
    %233 = arith.addf %232, %16 : vector<8x128xf32>
    %234 = arith.mulf %222, %233 : vector<8x128xf32>
    %235 = arith.addf %231, %234 : vector<8x128xf32>
    %236 = math.tanh %235 : vector<8x128xf32>
    %cst_58 = arith.constant 1.000000e+00 : f32
    %237 = vector.broadcast %cst_58 : f32 to vector<8x128xf32>
    %238 = arith.subf %237, %230 : vector<8x128xf32>
    %239 = arith.mulf %238, %236 : vector<8x128xf32>
    %240 = arith.mulf %230, %209 : vector<8x128xf32>
    %241 = arith.addf %239, %240 : vector<8x128xf32>
    %c7_i32 = arith.constant 7 : i32
    %242 = arith.index_cast %c7_i32 : i32 to index
    %c0_59 = arith.constant 0 : index
    %c0_60 = arith.constant 0 : index
    %243 = vector.load %arg8[%242, %c0_59, %c0_60] : memref<8x8x384xf32, #tpu.memory_space<vmem>>, vector<1x8x384xf32>
    %244 = vector.shape_cast %243 : vector<1x8x384xf32> to vector<8x384xf32>
    %245 = arith.truncf %241 : vector<8x128xf32> to vector<8x128xbf16>
    %cst_61 = arith.constant dense<0.000000e+00> : vector<8x384xf32>
    %246 = tpu.matmul %245, %13, %cst_61 {dimension_numbers = #tpu.dot_dimension_numbers<[1], [0], [0], [1], [0, 0, 1, 1], [], []>} : vector<8x128xbf16>, vector<128x384xbf16>, vector<8x384xf32> -> vector<8x384xf32>
    %247 = vector.extract_strided_slice %244 {offsets = [0, 0], sizes = [8, 128], strides = [1, 1]} : vector<8x384xf32> to vector<8x128xf32>
    %248 = vector.extract_strided_slice %246 {offsets = [0, 0], sizes = [8, 128], strides = [1, 1]} : vector<8x384xf32> to vector<8x128xf32>
    %249 = arith.addf %247, %248 : vector<8x128xf32>
    %250 = arith.negf %249 : vector<8x128xf32>
    %251 = math.exp %250 : vector<8x128xf32>
    %cst_62 = arith.constant 1.000000e+00 : f32
    %252 = vector.broadcast %cst_62 : f32 to vector<8x128xf32>
    %253 = arith.addf %252, %251 : vector<8x128xf32>
    %254 = arith.divf %252, %253 : vector<8x128xf32>
    %255 = vector.extract_strided_slice %244 {offsets = [0, 128], sizes = [8, 128], strides = [1, 1]} : vector<8x384xf32> to vector<8x128xf32>
    %256 = vector.extract_strided_slice %246 {offsets = [0, 128], sizes = [8, 128], strides = [1, 1]} : vector<8x384xf32> to vector<8x128xf32>
    %257 = arith.addf %255, %256 : vector<8x128xf32>
    %258 = arith.negf %257 : vector<8x128xf32>
    %259 = math.exp %258 : vector<8x128xf32>
    %cst_63 = arith.constant 1.000000e+00 : f32
    %260 = vector.broadcast %cst_63 : f32 to vector<8x128xf32>
    %261 = arith.addf %260, %259 : vector<8x128xf32>
    %262 = arith.divf %260, %261 : vector<8x128xf32>
    %263 = vector.extract_strided_slice %244 {offsets = [0, 256], sizes = [8, 128], strides = [1, 1]} : vector<8x384xf32> to vector<8x128xf32>
    %264 = vector.extract_strided_slice %246 {offsets = [0, 256], sizes = [8, 128], strides = [1, 1]} : vector<8x384xf32> to vector<8x128xf32>
    %265 = arith.addf %264, %16 : vector<8x128xf32>
    %266 = arith.mulf %254, %265 : vector<8x128xf32>
    %267 = arith.addf %263, %266 : vector<8x128xf32>
    %268 = math.tanh %267 : vector<8x128xf32>
    %cst_64 = arith.constant 1.000000e+00 : f32
    %269 = vector.broadcast %cst_64 : f32 to vector<8x128xf32>
    %270 = arith.subf %269, %262 : vector<8x128xf32>
    %271 = arith.mulf %270, %268 : vector<8x128xf32>
    %272 = arith.mulf %262, %241 : vector<8x128xf32>
    %273 = arith.addf %271, %272 : vector<8x128xf32>
    %c8_i32 = arith.constant 8 : i32
    %c0_65 = arith.constant 0 : index
    %c0_66 = arith.constant 0 : index
    %274 = vector.load %arg7[%c0_65, %c0_66] : memref<8x128xf32, #tpu.memory_space<vmem>>, vector<8x128xf32>
    tpu.vector_store %arg7[%c0_65, %c0_66], %273 {strides = array<i32>} : memref<8x128xf32, #tpu.memory_space<vmem>>, vector<8x128xf32>,
    %c0_67 = arith.constant 0 : index
    %c0_68 = arith.constant 0 : index
    %275 = vector.load %arg6[%c0_67, %c0_68] : memref<8x128xf32, #tpu.memory_space<vmem>>, vector<8x128xf32>
    tpu.vector_store %arg6[%c0_67, %c0_68], %273 {strides = array<i32>} : memref<8x128xf32, #tpu.memory_space<vmem>>, vector<8x128xf32>,
    return
  }
  func.func @transform_0(%arg0: i32) -> (i32, i32, i32) {
    %c0_i32 = arith.constant 0 : i32
    %c0_i32_0 = arith.constant 0 : i32
    %c0_i32_1 = arith.constant 0 : i32
    return %arg0, %c0_i32, %c0_i32_0 : i32, i32, i32
  }
  func.func @transform_1(%arg0: i32) -> (i32, i32) {
    %c0_i32 = arith.constant 0 : i32
    %c0_i32_0 = arith.constant 0 : i32
    %c0_i32_1 = arith.constant 0 : i32
    return %c0_i32, %c0_i32_0 : i32, i32
  }
  func.func @transform_2(%arg0: i32) -> (i32, i32) {
    %c0_i32 = arith.constant 0 : i32
    %c0_i32_0 = arith.constant 0 : i32
    %c0_i32_1 = arith.constant 0 : i32
    return %c0_i32, %c0_i32_0 : i32, i32
  }
  func.func @transform_3(%arg0: i32) -> (i32, i32) {
    %c0_i32 = arith.constant 0 : i32
    %c0_i32_0 = arith.constant 0 : i32
    %c0_i32_1 = arith.constant 0 : i32
    return %c0_i32, %c0_i32_0 : i32, i32
  }
  func.func @transform_4(%arg0: i32) -> (i32, i32) {
    %c0_i32 = arith.constant 0 : i32
    %c0_i32_0 = arith.constant 0 : i32
    %c0_i32_1 = arith.constant 0 : i32
    return %c0_i32, %c0_i32_0 : i32, i32
  }
  func.func @transform_5(%arg0: i32) -> (i32, i32) {
    %c0_i32 = arith.constant 0 : i32
    %c0_i32_0 = arith.constant 0 : i32
    %c0_i32_1 = arith.constant 0 : i32
    return %c0_i32, %c0_i32_0 : i32, i32
  }
}

module attributes {stable_mosaic.version = 11 : i64} {
  func.func @gru_fused_kernel(%arg0: i32, %arg1: memref<8x8x16xf32, #tpu.memory_space<vmem>>, %arg2: memref<16x384xbf16, #tpu.memory_space<vmem>>, %arg3: memref<1x384xf32, #tpu.memory_space<vmem>>, %arg4: memref<128x384xbf16, #tpu.memory_space<vmem>>, %arg5: memref<1x128xf32, #tpu.memory_space<vmem>>, %arg6: memref<8x128xf32, #tpu.memory_space<vmem>>, %arg7: memref<8x128xf32, #tpu.memory_space<vmem>>, %arg8: memref<8x8x384xf32, #tpu.memory_space<vmem>>) attributes {dimension_semantics = [#tpu.dimension_semantics<arbitrary>], iteration_bounds = array<i64: 1>, scalar_prefetch = 0 : i64, scratch_operands = 2 : i64, tpu.core_type = #tpu.core_type<tc>, window_params = [{transform_indices = @transform_0, window_bounds = array<i64: 8, 8, 16>}, {pipeline_mode = #tpu.pipeline_mode<synchronous>, transform_indices = @transform_1, window_bounds = array<i64: 16, 384>}, {pipeline_mode = #tpu.pipeline_mode<synchronous>, transform_indices = @transform_2, window_bounds = array<i64: 1, 384>}, {pipeline_mode = #tpu.pipeline_mode<synchronous>, transform_indices = @transform_3, window_bounds = array<i64: 128, 384>}, {pipeline_mode = #tpu.pipeline_mode<synchronous>, transform_indices = @transform_4, window_bounds = array<i64: 1, 128>}, {pipeline_mode = #tpu.pipeline_mode<synchronous>, transform_indices = @transform_5, window_bounds = array<i64: 8, 128>}]} {
    %c0_i32 = arith.constant 0 : i32
    %0 = arith.cmpi eq, %arg0, %c0_i32 : i32
    %1 = arith.extui %0 : i1 to i32
    %c0_i32_0 = arith.constant 0 : i32
    %2 = arith.cmpi ne, %1, %c0_i32_0 : i32
    scf.if %2 {
      %cst_69 = arith.constant 0.000000e+00 : f32
      %276 = vector.broadcast %cst_69 : f32 to vector<8x128xf32>
      %c0_70 = arith.constant 0 : index
      %c0_71 = arith.constant 0 : index
      %277 = vector.load %arg7[%c0_70, %c0_71] : memref<8x128xf32, #tpu.memory_space<vmem>>, vector<8x128xf32>
      tpu.vector_store %arg7[%c0_70, %c0_71], %276 {strides = array<i32>} : memref<8x128xf32, #tpu.memory_space<vmem>>, vector<8x128xf32>,
    } else {
    }
    %c0 = arith.constant 0 : index
    %c0_1 = arith.constant 0 : index
    %c0_2 = arith.constant 0 : index
    %3 = vector.load %arg1[%c0, %c0_1, %c0_2] : memref<8x8x16xf32, #tpu.memory_space<vmem>>, vector<8x8x16xf32>
    %4 = vector.shape_cast %3 : vector<8x8x16xf32> to vector<64x16xf32>
    %5 = arith.truncf %4 : vector<64x16xf32> to vector<64x16xbf16>
    %c0_3 = arith.constant 0 : index
    %c0_4 = arith.constant 0 : index
    %6 = vector.load %arg2[%c0_3, %c0_4] : memref<16x384xbf16, #tpu.memory_space<vmem>>, vector<16x384xbf16>
    %cst = arith.constant dense<0.000000e+00> : vector<64x384xf32>
    %7 = tpu.matmul %5, %6, %cst {dimension_numbers = #tpu.dot_dimension_numbers<[1], [0], [0], [1], [0, 0, 1, 1], [], []>} : vector<64x16xbf16>, vector<16x384xbf16>, vector<64x384xf32> -> vector<64x384xf32>
    %c0_5 = arith.constant 0 : index
    %c0_6 = arith.constant 0 : index
    %8 = vector.load %arg3[%c0_5, %c0_6] : memref<1x384xf32, #tpu.memory_space<vmem>>, vector<1x384xf32>
    %9 = vector.broadcast %8 : vector<1x384xf32> to vector<64x384xf32>
    %10 = arith.addf %7, %9 : vector<64x384xf32>
    %11 = vector.shape_cast %10 : vector<64x384xf32> to vector<8x8x384xf32>
    %c0_7 = arith.constant 0 : index
    %c0_8 = arith.constant 0 : index
    %c0_9 = arith.constant 0 : index
    %12 = vector.load %arg8[%c0_7, %c0_8, %c0_9] : memref<8x8x384xf32, #tpu.memory_space<vmem>>, vector<8x8x384xf32>
    tpu.vector_store %arg8[%c0_7, %c0_8, %c0_9], %11 {strides = array<i32>} : memref<8x8x384xf32, #tpu.memory_space<vmem>>, vector<8x8x384xf32>,
    %c0_10 = arith.constant 0 : index
    %c0_11 = arith.constant 0 : index
    %13 = vector.load %arg4[%c0_10, %c0_11] : memref<128x384xbf16, #tpu.memory_space<vmem>>, vector<128x384xbf16>
    %c0_12 = arith.constant 0 : index
    %c0_13 = arith.constant 0 : index
    %14 = vector.load %arg5[%c0_12, %c0_13] : memref<1x128xf32, #tpu.memory_space<vmem>>, vector<1x128xf32>
    %15 = vector.shape_cast %14 : vector<1x128xf32> to vector<1x128xf32>
    %16 = vector.broadcast %15 : vector<1x128xf32> to vector<8x128xf32>
    %c0_14 = arith.constant 0 : index
    %c0_15 = arith.constant 0 : index
    %17 = vector.load %arg7[%c0_14, %c0_15] : memref<8x128xf32, #tpu.memory_space<vmem>>, vector<8x128xf32>
    %c0_i32_16 = arith.constant 0 : i32
    %18 = arith.index_cast %c0_i32_16 : i32 to index
    %c0_17 = arith.constant 0 : index
    %c0_18 = arith.constant 0 : index
    %19 = vector.load %arg8[%18, %c0_17, %c0_18] : memref<8x8x384xf32, #tpu.memory_space<vmem>>, vector<1x8x384xf32>
    %20 = vector.shape_cast %19 : vector<1x8x384xf32> to vector<8x384xf32>
    %21 = arith.truncf %17 : vector<8x128xf32> to vector<8x128xbf16>
    %cst_19 = arith.constant dense<0.000000e+00> : vector<8x384xf32>
    %22 = tpu.matmul %21, %13, %cst_19 {dimension_numbers = #tpu.dot_dimension_numbers<[1], [0], [0], [1], [0, 0, 1, 1], [], []>} : vector<8x128xbf16>, vector<128x384xbf16>, vector<8x384xf32> -> vector<8x384xf32>
    %23 = vector.extract_strided_slice %20 {offsets = [0, 0], sizes = [8, 128], strides = [1, 1]} : vector<8x384xf32> to vector<8x128xf32>
    %24 = vector.extract_strided_slice %22 {offsets = [0, 0], sizes = [8, 128], strides = [1, 1]} : vector<8x384xf32> to vector<8x128xf32>
    %25 = arith.addf %23, %24 : vector<8x128xf32>
    %26 = arith.negf %25 : vector<8x128xf32>
    %27 = math.exp %26 : vector<8x128xf32>
    %cst_20 = arith.constant 1.000000e+00 : f32
    %28 = vector.broadcast %cst_20 : f32 to vector<8x128xf32>
    %29 = arith.addf %28, %27 : vector<8x128xf32>
    %30 = arith.divf %28, %29 : vector<8x128xf32>
    %31 = vector.extract_strided_slice %20 {offsets = [0, 128], sizes = [8, 128], strides = [1, 1]} : vector<8x384xf32> to vector<8x128xf32>
    %32 = vector.extract_strided_slice %22 {offsets = [0, 128], sizes = [8, 128], strides = [1, 1]} : vector<8x384xf32> to vector<8x128xf32>
    %33 = arith.addf %31, %32 : vector<8x128xf32>
    %34 = arith.negf %33 : vector<8x128xf32>
    %35 = math.exp %34 : vector<8x128xf32>
    %cst_21 = arith.constant 1.000000e+00 : f32
    %36 = vector.broadcast %cst_21 : f32 to vector<8x128xf32>
    %37 = arith.addf %36, %35 : vector<8x128xf32>
    %38 = arith.divf %36, %37 : vector<8x128xf32>
    %39 = vector.extract_strided_slice %20 {offsets = [0, 256], sizes = [8, 128], strides = [1, 1]} : vector<8x384xf32> to vector<8x128xf32>
    %40 = vector.extract_strided_slice %22 {offsets = [0, 256], sizes = [8, 128], strides = [1, 1]} : vector<8x384xf32> to vector<8x128xf32>
    %41 = arith.addf %40, %16 : vector<8x128xf32>
    %42 = arith.mulf %30, %41 : vector<8x128xf32>
    %43 = arith.addf %39, %42 : vector<8x128xf32>
    %44 = math.tanh %43 : vector<8x128xf32>
    %cst_22 = arith.constant 1.000000e+00 : f32
    %45 = vector.broadcast %cst_22 : f32 to vector<8x128xf32>
    %46 = arith.subf %45, %38 : vector<8x128xf32>
    %47 = arith.mulf %46, %44 : vector<8x128xf32>
    %48 = arith.mulf %38, %17 : vector<8x128xf32>
    %49 = arith.addf %47, %48 : vector<8x128xf32>
    %c1_i32 = arith.constant 1 : i32
    %50 = arith.index_cast %c1_i32 : i32 to index
    %c0_23 = arith.constant 0 : index
    %c0_24 = arith.constant 0 : index
    %51 = vector.load %arg8[%50, %c0_23, %c0_24] : memref<8x8x384xf32, #tpu.memory_space<vmem>>, vector<1x8x384xf32>
    %52 = vector.shape_cast %51 : vector<1x8x384xf32> to vector<8x384xf32>
    %53 = arith.truncf %49 : vector<8x128xf32> to vector<8x128xbf16>
    %cst_25 = arith.constant dense<0.000000e+00> : vector<8x384xf32>
    %54 = tpu.matmul %53, %13, %cst_25 {dimension_numbers = #tpu.dot_dimension_numbers<[1], [0], [0], [1], [0, 0, 1, 1], [], []>} : vector<8x128xbf16>, vector<128x384xbf16>, vector<8x384xf32> -> vector<8x384xf32>
    %55 = vector.extract_strided_slice %52 {offsets = [0, 0], sizes = [8, 128], strides = [1, 1]} : vector<8x384xf32> to vector<8x128xf32>
    %56 = vector.extract_strided_slice %54 {offsets = [0, 0], sizes = [8, 128], strides = [1, 1]} : vector<8x384xf32> to vector<8x128xf32>
    %57 = arith.addf %55, %56 : vector<8x128xf32>
    %58 = arith.negf %57 : vector<8x128xf32>
    %59 = math.exp %58 : vector<8x128xf32>
    %cst_26 = arith.constant 1.000000e+00 : f32
    %60 = vector.broadcast %cst_26 : f32 to vector<8x128xf32>
    %61 = arith.addf %60, %59 : vector<8x128xf32>
    %62 = arith.divf %60, %61 : vector<8x128xf32>
    %63 = vector.extract_strided_slice %52 {offsets = [0, 128], sizes = [8, 128], strides = [1, 1]} : vector<8x384xf32> to vector<8x128xf32>
    %64 = vector.extract_strided_slice %54 {offsets = [0, 128], sizes = [8, 128], strides = [1, 1]} : vector<8x384xf32> to vector<8x128xf32>
    %65 = arith.addf %63, %64 : vector<8x128xf32>
    %66 = arith.negf %65 : vector<8x128xf32>
    %67 = math.exp %66 : vector<8x128xf32>
    %cst_27 = arith.constant 1.000000e+00 : f32
    %68 = vector.broadcast %cst_27 : f32 to vector<8x128xf32>
    %69 = arith.addf %68, %67 : vector<8x128xf32>
    %70 = arith.divf %68, %69 : vector<8x128xf32>
    %71 = vector.extract_strided_slice %52 {offsets = [0, 256], sizes = [8, 128], strides = [1, 1]} : vector<8x384xf32> to vector<8x128xf32>
    %72 = vector.extract_strided_slice %54 {offsets = [0, 256], sizes = [8, 128], strides = [1, 1]} : vector<8x384xf32> to vector<8x128xf32>
    %73 = arith.addf %72, %16 : vector<8x128xf32>
    %74 = arith.mulf %62, %73 : vector<8x128xf32>
    %75 = arith.addf %71, %74 : vector<8x128xf32>
    %76 = math.tanh %75 : vector<8x128xf32>
    %cst_28 = arith.constant 1.000000e+00 : f32
    %77 = vector.broadcast %cst_28 : f32 to vector<8x128xf32>
    %78 = arith.subf %77, %70 : vector<8x128xf32>
    %79 = arith.mulf %78, %76 : vector<8x128xf32>
    %80 = arith.mulf %70, %49 : vector<8x128xf32>
    %81 = arith.addf %79, %80 : vector<8x128xf32>
    %c2_i32 = arith.constant 2 : i32
    %82 = arith.index_cast %c2_i32 : i32 to index
    %c0_29 = arith.constant 0 : index
    %c0_30 = arith.constant 0 : index
    %83 = vector.load %arg8[%82, %c0_29, %c0_30] : memref<8x8x384xf32, #tpu.memory_space<vmem>>, vector<1x8x384xf32>
    %84 = vector.shape_cast %83 : vector<1x8x384xf32> to vector<8x384xf32>
    %85 = arith.truncf %81 : vector<8x128xf32> to vector<8x128xbf16>
    %cst_31 = arith.constant dense<0.000000e+00> : vector<8x384xf32>
    %86 = tpu.matmul %85, %13, %cst_31 {dimension_numbers = #tpu.dot_dimension_numbers<[1], [0], [0], [1], [0, 0, 1, 1], [], []>} : vector<8x128xbf16>, vector<128x384xbf16>, vector<8x384xf32> -> vector<8x384xf32>
    %87 = vector.extract_strided_slice %84 {offsets = [0, 0], sizes = [8, 128], strides = [1, 1]} : vector<8x384xf32> to vector<8x128xf32>
    %88 = vector.extract_strided_slice %86 {offsets = [0, 0], sizes = [8, 128], strides = [1, 1]} : vector<8x384xf32> to vector<8x128xf32>
    %89 = arith.addf %87, %88 : vector<8x128xf32>
    %90 = arith.negf %89 : vector<8x128xf32>
    %91 = math.exp %90 : vector<8x128xf32>
    %cst_32 = arith.constant 1.000000e+00 : f32
    %92 = vector.broadcast %cst_32 : f32 to vector<8x128xf32>
    %93 = arith.addf %92, %91 : vector<8x128xf32>
    %94 = arith.divf %92, %93 : vector<8x128xf32>
    %95 = vector.extract_strided_slice %84 {offsets = [0, 128], sizes = [8, 128], strides = [1, 1]} : vector<8x384xf32> to vector<8x128xf32>
    %96 = vector.extract_strided_slice %86 {offsets = [0, 128], sizes = [8, 128], strides = [1, 1]} : vector<8x384xf32> to vector<8x128xf32>
    %97 = arith.addf %95, %96 : vector<8x128xf32>
    %98 = arith.negf %97 : vector<8x128xf32>
    %99 = math.exp %98 : vector<8x128xf32>
    %cst_33 = arith.constant 1.000000e+00 : f32
    %100 = vector.broadcast %cst_33 : f32 to vector<8x128xf32>
    %101 = arith.addf %100, %99 : vector<8x128xf32>
    %102 = arith.divf %100, %101 : vector<8x128xf32>
    %103 = vector.extract_strided_slice %84 {offsets = [0, 256], sizes = [8, 128], strides = [1, 1]} : vector<8x384xf32> to vector<8x128xf32>
    %104 = vector.extract_strided_slice %86 {offsets = [0, 256], sizes = [8, 128], strides = [1, 1]} : vector<8x384xf32> to vector<8x128xf32>
    %105 = arith.addf %104, %16 : vector<8x128xf32>
    %106 = arith.mulf %94, %105 : vector<8x128xf32>
    %107 = arith.addf %103, %106 : vector<8x128xf32>
    %108 = math.tanh %107 : vector<8x128xf32>
    %cst_34 = arith.constant 1.000000e+00 : f32
    %109 = vector.broadcast %cst_34 : f32 to vector<8x128xf32>
    %110 = arith.subf %109, %102 : vector<8x128xf32>
    %111 = arith.mulf %110, %108 : vector<8x128xf32>
    %112 = arith.mulf %102, %81 : vector<8x128xf32>
    %113 = arith.addf %111, %112 : vector<8x128xf32>
    %c3_i32 = arith.constant 3 : i32
    %114 = arith.index_cast %c3_i32 : i32 to index
    %c0_35 = arith.constant 0 : index
    %c0_36 = arith.constant 0 : index
    %115 = vector.load %arg8[%114, %c0_35, %c0_36] : memref<8x8x384xf32, #tpu.memory_space<vmem>>, vector<1x8x384xf32>
    %116 = vector.shape_cast %115 : vector<1x8x384xf32> to vector<8x384xf32>
    %117 = arith.truncf %113 : vector<8x128xf32> to vector<8x128xbf16>
    %cst_37 = arith.constant dense<0.000000e+00> : vector<8x384xf32>
    %118 = tpu.matmul %117, %13, %cst_37 {dimension_numbers = #tpu.dot_dimension_numbers<[1], [0], [0], [1], [0, 0, 1, 1], [], []>} : vector<8x128xbf16>, vector<128x384xbf16>, vector<8x384xf32> -> vector<8x384xf32>
    %119 = vector.extract_strided_slice %116 {offsets = [0, 0], sizes = [8, 128], strides = [1, 1]} : vector<8x384xf32> to vector<8x128xf32>
    %120 = vector.extract_strided_slice %118 {offsets = [0, 0], sizes = [8, 128], strides = [1, 1]} : vector<8x384xf32> to vector<8x128xf32>
    %121 = arith.addf %119, %120 : vector<8x128xf32>
    %122 = arith.negf %121 : vector<8x128xf32>
    %123 = math.exp %122 : vector<8x128xf32>
    %cst_38 = arith.constant 1.000000e+00 : f32
    %124 = vector.broadcast %cst_38 : f32 to vector<8x128xf32>
    %125 = arith.addf %124, %123 : vector<8x128xf32>
    %126 = arith.divf %124, %125 : vector<8x128xf32>
    %127 = vector.extract_strided_slice %116 {offsets = [0, 128], sizes = [8, 128], strides = [1, 1]} : vector<8x384xf32> to vector<8x128xf32>
    %128 = vector.extract_strided_slice %118 {offsets = [0, 128], sizes = [8, 128], strides = [1, 1]} : vector<8x384xf32> to vector<8x128xf32>
    %129 = arith.addf %127, %128 : vector<8x128xf32>
    %130 = arith.negf %129 : vector<8x128xf32>
    %131 = math.exp %130 : vector<8x128xf32>
    %cst_39 = arith.constant 1.000000e+00 : f32
    %132 = vector.broadcast %cst_39 : f32 to vector<8x128xf32>
    %133 = arith.addf %132, %131 : vector<8x128xf32>
    %134 = arith.divf %132, %133 : vector<8x128xf32>
    %135 = vector.extract_strided_slice %116 {offsets = [0, 256], sizes = [8, 128], strides = [1, 1]} : vector<8x384xf32> to vector<8x128xf32>
    %136 = vector.extract_strided_slice %118 {offsets = [0, 256], sizes = [8, 128], strides = [1, 1]} : vector<8x384xf32> to vector<8x128xf32>
    %137 = arith.addf %136, %16 : vector<8x128xf32>
    %138 = arith.mulf %126, %137 : vector<8x128xf32>
    %139 = arith.addf %135, %138 : vector<8x128xf32>
    %140 = math.tanh %139 : vector<8x128xf32>
    %cst_40 = arith.constant 1.000000e+00 : f32
    %141 = vector.broadcast %cst_40 : f32 to vector<8x128xf32>
    %142 = arith.subf %141, %134 : vector<8x128xf32>
    %143 = arith.mulf %142, %140 : vector<8x128xf32>
    %144 = arith.mulf %134, %113 : vector<8x128xf32>
    %145 = arith.addf %143, %144 : vector<8x128xf32>
    %c4_i32 = arith.constant 4 : i32
    %146 = arith.index_cast %c4_i32 : i32 to index
    %c0_41 = arith.constant 0 : index
    %c0_42 = arith.constant 0 : index
    %147 = vector.load %arg8[%146, %c0_41, %c0_42] : memref<8x8x384xf32, #tpu.memory_space<vmem>>, vector<1x8x384xf32>
    %148 = vector.shape_cast %147 : vector<1x8x384xf32> to vector<8x384xf32>
    %149 = arith.truncf %145 : vector<8x128xf32> to vector<8x128xbf16>
    %cst_43 = arith.constant dense<0.000000e+00> : vector<8x384xf32>
    %150 = tpu.matmul %149, %13, %cst_43 {dimension_numbers = #tpu.dot_dimension_numbers<[1], [0], [0], [1], [0, 0, 1, 1], [], []>} : vector<8x128xbf16>, vector<128x384xbf16>, vector<8x384xf32> -> vector<8x384xf32>
    %151 = vector.extract_strided_slice %148 {offsets = [0, 0], sizes = [8, 128], strides = [1, 1]} : vector<8x384xf32> to vector<8x128xf32>
    %152 = vector.extract_strided_slice %150 {offsets = [0, 0], sizes = [8, 128], strides = [1, 1]} : vector<8x384xf32> to vector<8x128xf32>
    %153 = arith.addf %151, %152 : vector<8x128xf32>
    %154 = arith.negf %153 : vector<8x128xf32>
    %155 = math.exp %154 : vector<8x128xf32>
    %cst_44 = arith.constant 1.000000e+00 : f32
    %156 = vector.broadcast %cst_44 : f32 to vector<8x128xf32>
    %157 = arith.addf %156, %155 : vector<8x128xf32>
    %158 = arith.divf %156, %157 : vector<8x128xf32>
    %159 = vector.extract_strided_slice %148 {offsets = [0, 128], sizes = [8, 128], strides = [1, 1]} : vector<8x384xf32> to vector<8x128xf32>
    %160 = vector.extract_strided_slice %150 {offsets = [0, 128], sizes = [8, 128], strides = [1, 1]} : vector<8x384xf32> to vector<8x128xf32>
    %161 = arith.addf %159, %160 : vector<8x128xf32>
    %162 = arith.negf %161 : vector<8x128xf32>
    %163 = math.exp %162 : vector<8x128xf32>
    %cst_45 = arith.constant 1.000000e+00 : f32
    %164 = vector.broadcast %cst_45 : f32 to vector<8x128xf32>
    %165 = arith.addf %164, %163 : vector<8x128xf32>
    %166 = arith.divf %164, %165 : vector<8x128xf32>
    %167 = vector.extract_strided_slice %148 {offsets = [0, 256], sizes = [8, 128], strides = [1, 1]} : vector<8x384xf32> to vector<8x128xf32>
    %168 = vector.extract_strided_slice %150 {offsets = [0, 256], sizes = [8, 128], strides = [1, 1]} : vector<8x384xf32> to vector<8x128xf32>
    %169 = arith.addf %168, %16 : vector<8x128xf32>
    %170 = arith.mulf %158, %169 : vector<8x128xf32>
    %171 = arith.addf %167, %170 : vector<8x128xf32>
    %172 = math.tanh %171 : vector<8x128xf32>
    %cst_46 = arith.constant 1.000000e+00 : f32
    %173 = vector.broadcast %cst_46 : f32 to vector<8x128xf32>
    %174 = arith.subf %173, %166 : vector<8x128xf32>
    %175 = arith.mulf %174, %172 : vector<8x128xf32>
    %176 = arith.mulf %166, %145 : vector<8x128xf32>
    %177 = arith.addf %175, %176 : vector<8x128xf32>
    %c5_i32 = arith.constant 5 : i32
    %178 = arith.index_cast %c5_i32 : i32 to index
    %c0_47 = arith.constant 0 : index
    %c0_48 = arith.constant 0 : index
    %179 = vector.load %arg8[%178, %c0_47, %c0_48] : memref<8x8x384xf32, #tpu.memory_space<vmem>>, vector<1x8x384xf32>
    %180 = vector.shape_cast %179 : vector<1x8x384xf32> to vector<8x384xf32>
    %181 = arith.truncf %177 : vector<8x128xf32> to vector<8x128xbf16>
    %cst_49 = arith.constant dense<0.000000e+00> : vector<8x384xf32>
    %182 = tpu.matmul %181, %13, %cst_49 {dimension_numbers = #tpu.dot_dimension_numbers<[1], [0], [0], [1], [0, 0, 1, 1], [], []>} : vector<8x128xbf16>, vector<128x384xbf16>, vector<8x384xf32> -> vector<8x384xf32>
    %183 = vector.extract_strided_slice %180 {offsets = [0, 0], sizes = [8, 128], strides = [1, 1]} : vector<8x384xf32> to vector<8x128xf32>
    %184 = vector.extract_strided_slice %182 {offsets = [0, 0], sizes = [8, 128], strides = [1, 1]} : vector<8x384xf32> to vector<8x128xf32>
    %185 = arith.addf %183, %184 : vector<8x128xf32>
    %186 = arith.negf %185 : vector<8x128xf32>
    %187 = math.exp %186 : vector<8x128xf32>
    %cst_50 = arith.constant 1.000000e+00 : f32
    %188 = vector.broadcast %cst_50 : f32 to vector<8x128xf32>
    %189 = arith.addf %188, %187 : vector<8x128xf32>
    %190 = arith.divf %188, %189 : vector<8x128xf32>
    %191 = vector.extract_strided_slice %180 {offsets = [0, 128], sizes = [8, 128], strides = [1, 1]} : vector<8x384xf32> to vector<8x128xf32>
    %192 = vector.extract_strided_slice %182 {offsets = [0, 128], sizes = [8, 128], strides = [1, 1]} : vector<8x384xf32> to vector<8x128xf32>
    %193 = arith.addf %191, %192 : vector<8x128xf32>
    %194 = arith.negf %193 : vector<8x128xf32>
    %195 = math.exp %194 : vector<8x128xf32>
    %cst_51 = arith.constant 1.000000e+00 : f32
    %196 = vector.broadcast %cst_51 : f32 to vector<8x128xf32>
    %197 = arith.addf %196, %195 : vector<8x128xf32>
    %198 = arith.divf %196, %197 : vector<8x128xf32>
    %199 = vector.extract_strided_slice %180 {offsets = [0, 256], sizes = [8, 128], strides = [1, 1]} : vector<8x384xf32> to vector<8x128xf32>
    %200 = vector.extract_strided_slice %182 {offsets = [0, 256], sizes = [8, 128], strides = [1, 1]} : vector<8x384xf32> to vector<8x128xf32>
    %201 = arith.addf %200, %16 : vector<8x128xf32>
    %202 = arith.mulf %190, %201 : vector<8x128xf32>
    %203 = arith.addf %199, %202 : vector<8x128xf32>
    %204 = math.tanh %203 : vector<8x128xf32>
    %cst_52 = arith.constant 1.000000e+00 : f32
    %205 = vector.broadcast %cst_52 : f32 to vector<8x128xf32>
    %206 = arith.subf %205, %198 : vector<8x128xf32>
    %207 = arith.mulf %206, %204 : vector<8x128xf32>
    %208 = arith.mulf %198, %177 : vector<8x128xf32>
    %209 = arith.addf %207, %208 : vector<8x128xf32>
    %c6_i32 = arith.constant 6 : i32
    %210 = arith.index_cast %c6_i32 : i32 to index
    %c0_53 = arith.constant 0 : index
    %c0_54 = arith.constant 0 : index
    %211 = vector.load %arg8[%210, %c0_53, %c0_54] : memref<8x8x384xf32, #tpu.memory_space<vmem>>, vector<1x8x384xf32>
    %212 = vector.shape_cast %211 : vector<1x8x384xf32> to vector<8x384xf32>
    %213 = arith.truncf %209 : vector<8x128xf32> to vector<8x128xbf16>
    %cst_55 = arith.constant dense<0.000000e+00> : vector<8x384xf32>
    %214 = tpu.matmul %213, %13, %cst_55 {dimension_numbers = #tpu.dot_dimension_numbers<[1], [0], [0], [1], [0, 0, 1, 1], [], []>} : vector<8x128xbf16>, vector<128x384xbf16>, vector<8x384xf32> -> vector<8x384xf32>
    %215 = vector.extract_strided_slice %212 {offsets = [0, 0], sizes = [8, 128], strides = [1, 1]} : vector<8x384xf32> to vector<8x128xf32>
    %216 = vector.extract_strided_slice %214 {offsets = [0, 0], sizes = [8, 128], strides = [1, 1]} : vector<8x384xf32> to vector<8x128xf32>
    %217 = arith.addf %215, %216 : vector<8x128xf32>
    %218 = arith.negf %217 : vector<8x128xf32>
    %219 = math.exp %218 : vector<8x128xf32>
    %cst_56 = arith.constant 1.000000e+00 : f32
    %220 = vector.broadcast %cst_56 : f32 to vector<8x128xf32>
    %221 = arith.addf %220, %219 : vector<8x128xf32>
    %222 = arith.divf %220, %221 : vector<8x128xf32>
    %223 = vector.extract_strided_slice %212 {offsets = [0, 128], sizes = [8, 128], strides = [1, 1]} : vector<8x384xf32> to vector<8x128xf32>
    %224 = vector.extract_strided_slice %214 {offsets = [0, 128], sizes = [8, 128], strides = [1, 1]} : vector<8x384xf32> to vector<8x128xf32>
    %225 = arith.addf %223, %224 : vector<8x128xf32>
    %226 = arith.negf %225 : vector<8x128xf32>
    %227 = math.exp %226 : vector<8x128xf32>
    %cst_57 = arith.constant 1.000000e+00 : f32
    %228 = vector.broadcast %cst_57 : f32 to vector<8x128xf32>
    %229 = arith.addf %228, %227 : vector<8x128xf32>
    %230 = arith.divf %228, %229 : vector<8x128xf32>
    %231 = vector.extract_strided_slice %212 {offsets = [0, 256], sizes = [8, 128], strides = [1, 1]} : vector<8x384xf32> to vector<8x128xf32>
    %232 = vector.extract_strided_slice %214 {offsets = [0, 256], sizes = [8, 128], strides = [1, 1]} : vector<8x384xf32> to vector<8x128xf32>
    %233 = arith.addf %232, %16 : vector<8x128xf32>
    %234 = arith.mulf %222, %233 : vector<8x128xf32>
    %235 = arith.addf %231, %234 : vector<8x128xf32>
    %236 = math.tanh %235 : vector<8x128xf32>
    %cst_58 = arith.constant 1.000000e+00 : f32
    %237 = vector.broadcast %cst_58 : f32 to vector<8x128xf32>
    %238 = arith.subf %237, %230 : vector<8x128xf32>
    %239 = arith.mulf %238, %236 : vector<8x128xf32>
    %240 = arith.mulf %230, %209 : vector<8x128xf32>
    %241 = arith.addf %239, %240 : vector<8x128xf32>
    %c7_i32 = arith.constant 7 : i32
    %242 = arith.index_cast %c7_i32 : i32 to index
    %c0_59 = arith.constant 0 : index
    %c0_60 = arith.constant 0 : index
    %243 = vector.load %arg8[%242, %c0_59, %c0_60] : memref<8x8x384xf32, #tpu.memory_space<vmem>>, vector<1x8x384xf32>
    %244 = vector.shape_cast %243 : vector<1x8x384xf32> to vector<8x384xf32>
    %245 = arith.truncf %241 : vector<8x128xf32> to vector<8x128xbf16>
    %cst_61 = arith.constant dense<0.000000e+00> : vector<8x384xf32>
    %246 = tpu.matmul %245, %13, %cst_61 {dimension_numbers = #tpu.dot_dimension_numbers<[1], [0], [0], [1], [0, 0, 1, 1], [], []>} : vector<8x128xbf16>, vector<128x384xbf16>, vector<8x384xf32> -> vector<8x384xf32>
    %247 = vector.extract_strided_slice %244 {offsets = [0, 0], sizes = [8, 128], strides = [1, 1]} : vector<8x384xf32> to vector<8x128xf32>
    %248 = vector.extract_strided_slice %246 {offsets = [0, 0], sizes = [8, 128], strides = [1, 1]} : vector<8x384xf32> to vector<8x128xf32>
    %249 = arith.addf %247, %248 : vector<8x128xf32>
    %250 = arith.negf %249 : vector<8x128xf32>
    %251 = math.exp %250 : vector<8x128xf32>
    %cst_62 = arith.constant 1.000000e+00 : f32
    %252 = vector.broadcast %cst_62 : f32 to vector<8x128xf32>
    %253 = arith.addf %252, %251 : vector<8x128xf32>
    %254 = arith.divf %252, %253 : vector<8x128xf32>
    %255 = vector.extract_strided_slice %244 {offsets = [0, 128], sizes = [8, 128], strides = [1, 1]} : vector<8x384xf32> to vector<8x128xf32>
    %256 = vector.extract_strided_slice %246 {offsets = [0, 128], sizes = [8, 128], strides = [1, 1]} : vector<8x384xf32> to vector<8x128xf32>
    %257 = arith.addf %255, %256 : vector<8x128xf32>
    %258 = arith.negf %257 : vector<8x128xf32>
    %259 = math.exp %258 : vector<8x128xf32>
    %cst_63 = arith.constant 1.000000e+00 : f32
    %260 = vector.broadcast %cst_63 : f32 to vector<8x128xf32>
    %261 = arith.addf %260, %259 : vector<8x128xf32>
    %262 = arith.divf %260, %261 : vector<8x128xf32>
    %263 = vector.extract_strided_slice %244 {offsets = [0, 256], sizes = [8, 128], strides = [1, 1]} : vector<8x384xf32> to vector<8x128xf32>
    %264 = vector.extract_strided_slice %246 {offsets = [0, 256], sizes = [8, 128], strides = [1, 1]} : vector<8x384xf32> to vector<8x128xf32>
    %265 = arith.addf %264, %16 : vector<8x128xf32>
    %266 = arith.mulf %254, %265 : vector<8x128xf32>
    %267 = arith.addf %263, %266 : vector<8x128xf32>
    %268 = math.tanh %267 : vector<8x128xf32>
    %cst_64 = arith.constant 1.000000e+00 : f32
    %269 = vector.broadcast %cst_64 : f32 to vector<8x128xf32>
    %270 = arith.subf %269, %262 : vector<8x128xf32>
    %271 = arith.mulf %270, %268 : vector<8x128xf32>
    %272 = arith.mulf %262, %241 : vector<8x128xf32>
    %273 = arith.addf %271, %272 : vector<8x128xf32>
    %c8_i32 = arith.constant 8 : i32
    %c0_65 = arith.constant 0 : index
    %c0_66 = arith.constant 0 : index
    %274 = vector.load %arg7[%c0_65, %c0_66] : memref<8x128xf32, #tpu.memory_space<vmem>>, vector<8x128xf32>
    tpu.vector_store %arg7[%c0_65, %c0_66], %273 {strides = array<i32>} : memref<8x128xf32, #tpu.memory_space<vmem>>, vector<8x128xf32>,
    %c0_67 = arith.constant 0 : index
    %c0_68 = arith.constant 0 : index
    %275 = vector.load %arg6[%c0_67, %c0_68] : memref<8x128xf32, #tpu.memory_space<vmem>>, vector<8x128xf32>
    tpu.vector_store %arg6[%c0_67, %c0_68], %273 {strides = array<i32>} : memref<8x128xf32, #tpu.memory_space<vmem>>, vector<8x128xf32>,
    return
  }
  func.func @transform_0(%arg0: i32) -> (i32, i32, i32) {
    %c0_i32 = arith.constant 0 : i32
    %c0_i32_0 = arith.constant 0 : i32
    %c0_i32_1 = arith.constant 0 : i32
    return %arg0, %c0_i32, %c0_i32_0 : i32, i32, i32
  }
  func.func @transform_1(%arg0: i32) -> (i32, i32) {
    %c0_i32 = arith.constant 0 : i32
    %c0_i32_0 = arith.constant 0 : i32
    %c0_i32_1 = arith.constant 0 : i32
    return %c0_i32, %c0_i32_0 : i32, i32
  }
  func.func @transform_2(%arg0: i32) -> (i32, i32) {
    %c0_i32 = arith.constant 0 : i32
    %c0_i32_0 = arith.constant 0 : i32
    %c0_i32_1 = arith.constant 0 : i32
    return %c0_i32, %c0_i32_0 : i32, i32
  }
  func.func @transform_3(%arg0: i32) -> (i32, i32) {
    %c0_i32 = arith.constant 0 : i32
    %c0_i32_0 = arith.constant 0 : i32
    %c0_i32_1 = arith.constant 0 : i32
    return %c0_i32, %c0_i32_0 : i32, i32
  }
  func.func @transform_4(%arg0: i32) -> (i32, i32) {
    %c0_i32 = arith.constant 0 : i32
    %c0_i32_0 = arith.constant 0 : i32
    %c0_i32_1 = arith.constant 0 : i32
    return %c0_i32, %c0_i32_0 : i32, i32
  }
  func.func @transform_5(%arg0: i32) -> (i32, i32) {
    %c0_i32 = arith.constant 0 : i32
    %c0_i32_0 = arith.constant 0 : i32
    %c0_i32_1 = arith.constant 0 : i32
    return %c0_i32, %c0_i32_0 : i32, i32
  }
}

</mosaic_0001>

<llo_original>
// kernel: tpu_custom_call.1
$region0: #{tpu_custom_call.1}
  #allocation0 [shape = 'u32[]', space=smem, size = 0x4, offset = 0x4, fixed_abs, tag = 'smem constant byte address 0x4 - core index']
  #allocation1 [shape = 'u32[144,128]{1,0:T(1,128)}', space=vmem, size = 0x12000, scoped, tag = 'internal scratch']
  #allocation2 [shape = 'f32[8,128]{1,0:T(8,128)}', space=vmem, size = 0x1000, scoped, tag = 'scratch operand']
  #allocation3 [shape = 'f32[8,8,384]{2,1,0:T(8,128)}', space=vmem, size = 0x18000, scoped, tag = 'scratch operand']
  %s0 = inlined_call_operand.hbm [shape: f32[8,8,16], index: 0, kind: input, shape index: {}]
  %s1 = inlined_call_operand.hbm [shape: bf16[16,384], index: 1, kind: input, shape index: {}]
  %s2 = inlined_call_operand.vmem [shape: f32[1,384], index: 2, kind: input, shape index: {}]
  %s3 = inlined_call_operand.hbm [shape: bf16[128,384], index: 3, kind: input, shape index: {}]
  %s4 = inlined_call_operand.vmem [shape: f32[1,128], index: 4, kind: input, shape index: {}]
  %s5 = inlined_call_operand.hbm [shape: f32[8,128], index: 5, kind: output, shape index: {}]
  %s6 = sld [smem:[#allocation0]]
  $region46: #{tpu_custom_call.1} parent=0
    _
  %s8 = ssub.s32 1, %s6
  %s9 = scalar_select 0, %s8, %s6
  $region1: #{tpu_custom_call.1} parent=0
    #allocation4 [shape = 'u8[32768]{0}', space=vmem, size = 0x8000, scoped, tag = 'input window, operand 0, single buffered']
    #allocation5 [shape = 's32[1]{0}', space=sflag, size = 0x4, scoped, tag = 'scoped memory for tpu_custom_call.1']
    #allocation6 [shape = 's32[1]{0}', space=sflag, size = 0x4, scoped, tag = 'scoped memory for tpu_custom_call.1']
    #allocation7 [shape = 'u8[12288]{0}', space=vmem, size = 0x3000, scoped, tag = 'input window, operand 1, single buffered']
    #allocation8 [shape = 's32[1]{0}', space=sflag, size = 0x4, scoped, tag = 'scoped memory for tpu_custom_call.1']
    #allocation9 [shape = 'u8[98304]{0}', space=vmem, size = 0x18000, scoped, tag = 'input window, operand 3, single buffered']
    #allocation10 [shape = 'u8[4096]{0}', space=vmem, size = 0x1000, scoped, tag = 'output window, operand 0, single buffered']
    %10 = vsyncpa [#allocation5], 0
    %11 = vsyncpa [#allocation8], 0
    %12 = vsyncpa [#allocation6], 0
    // Predicated region
    $region2: #{tpu_custom_call.1} parent=1 // pred_check
      _
    $region3: #{tpu_custom_call.1} parent=1 // pred_check_branch
      %14 = sbr.rel (0) target = $region5
    $region4: #{tpu_custom_call.1} parent=1 // pred_region
      %s16 = ssub.s32 1024, 1024
      %17 = vsyncadd [#allocation5], %s16
      %s18 = sshll.u32 [#allocation4], 4
      %s19 = int_to_ptr.vmem [resolvable:$true] %s18
      %24 = dma.hbm_to_vmem [thread:$0]  %s0, 1024, %s19, [#allocation5], 128, 128, 8
    $region5: #{tpu_custom_call.1} parent=1 // pred_fallthru
      _
    // Predicated region
    $region6: #{tpu_custom_call.1} parent=1 // pred_check
      _
    $region7: #{tpu_custom_call.1} parent=1 // pred_check_branch
      %26 = sbr.rel (0) target = $region9
    $region8: #{tpu_custom_call.1} parent=1 // pred_region
      %s28 = ssub.s32 384, 384
      %29 = vsyncadd [#allocation8], %s28
      %s30 = sshll.u32 [#allocation7], 4
      %s31 = int_to_ptr.vmem [resolvable:$true] %s30
      %36 = dma.hbm_to_vmem [thread:$0]  %s1, 384, %s31, [#allocation8], 192, 192, 12
    $region9: #{tpu_custom_call.1} parent=1 // pred_fallthru
      _
    // Predicated region
    $region10: #{tpu_custom_call.1} parent=1 // pred_check
      _
    $region11: #{tpu_custom_call.1} parent=1 // pred_check_branch
      %38 = sbr.rel (0) target = $region13
    $region12: #{tpu_custom_call.1} parent=1 // pred_region
      _
    $region13: #{tpu_custom_call.1} parent=1 // pred_fallthru
      _
    // Predicated region
    $region14: #{tpu_custom_call.1} parent=1 // pred_check
      _
    $region15: #{tpu_custom_call.1} parent=1 // pred_check_branch
      %40 = sbr.rel (0) target = $region17
    $region16: #{tpu_custom_call.1} parent=1 // pred_region
      %s42 = ssub.s32 3072, 3072
      %43 = vsyncadd [#allocation8], %s42
      %s44 = sshll.u32 [#allocation9], 4
      %s45 = int_to_ptr.vmem [resolvable:$true] %s44
      %50 = dma.hbm_to_vmem [thread:$0]  %s3, 3072, %s45, [#allocation8], 192, 192, 12
    $region17: #{tpu_custom_call.1} parent=1 // pred_fallthru
      _
    // Predicated region
    $region18: #{tpu_custom_call.1} parent=1 // pred_check
      _
    $region19: #{tpu_custom_call.1} parent=1 // pred_check_branch
      %52 = sbr.rel (0) target = $region21
    $region20: #{tpu_custom_call.1} parent=1 // pred_region
      _
    $region21: #{tpu_custom_call.1} parent=1 // pred_fallthru
      _
    // Predicated region
    $region22: #{tpu_custom_call.1} parent=1 // pred_check
      _
    $region23: #{tpu_custom_call.1} parent=1 // pred_check_branch
      %54 = sbr.rel (0) target = $region25
    $region24: #{tpu_custom_call.1} parent=1 // pred_region
      %55 = dma.done [#allocation5], 1024
    $region25: #{tpu_custom_call.1} parent=1 // pred_fallthru
      _
    // Predicated region
    $region26: #{tpu_custom_call.1} parent=1 // pred_check
      _
    $region27: #{tpu_custom_call.1} parent=1 // pred_check_branch
      %57 = sbr.rel (0) target = $region29
    $region28: #{tpu_custom_call.1} parent=1 // pred_region
      %58 = dma.done [#allocation8], 384
    $region29: #{tpu_custom_call.1} parent=1 // pred_fallthru
      _
    // Predicated region
    $region30: #{tpu_custom_call.1} parent=1 // pred_check
      _
    $region31: #{tpu_custom_call.1} parent=1 // pred_check_branch
      %60 = sbr.rel (0) target = $region33
    $region32: #{tpu_custom_call.1} parent=1 // pred_region
      %61 = dma.done [#allocation8], 3072
    $region33: #{tpu_custom_call.1} parent=1 // pred_fallthru
      _
    %p63 = scmp.eq.s32.totalorder 0, 0
    // Predicated region
    $region34: #{tpu_custom_call.1} parent=1 // pred_check
      %p64 = pneg %p63
    $region35: #{tpu_custom_call.1} parent=1 // pred_check_branch
      %66 = sbr.rel (%p64) target = $region37
    $region36: #{tpu_custom_call.1} parent=1 // pred_region
      %67 = vst [vmem:[#allocation2] sm:$0xff] 0.0
    $region37: #{tpu_custom_call.1} parent=1 // pred_fallthru
      _
    %v68 = vld [vmem:[#allocation4] sm:$0xff]
    %v69 = vld [vmem:[#allocation4 + $0x8] sm:$0xff]
    %v70 = vld [vmem:[#allocation4 + $0x10] sm:$0xff]
    %v71 = vld [vmem:[#allocation4 + $0x18] sm:$0xff]
    %v72 = vld [vmem:[#allocation4 + $0x20] sm:$0xff]
    %v73 = vld [vmem:[#allocation4 + $0x28] sm:$0xff]
    %v74 = vld [vmem:[#allocation4 + $0x30] sm:$0xff]
    %v75 = vld [vmem:[#allocation4 + $0x38] sm:$0xff]
    %v76 = vpack.c.bf16 %v69, %v68
    %v77 = vpack.c.bf16 %v71, %v70
    %v78 = vpack.c.bf16 %v73, %v72
    %v79 = vpack.c.bf16 %v75, %v74
    %v80 = vld [vmem:[#allocation7] sm:$0xff]
    %v81 = vld [vmem:[#allocation7 + $0x8] sm:$0xf]
    %v82 = vld [vmem:[#allocation7 + $0xc] sm:$0xff]
    %v83 = vld [vmem:[#allocation7 + $0x14] sm:$0xf]
    %v84 = vld [vmem:[%s2] sm:$0x7]
    %v86 = vlaneseq
    %v87 = vshrl.u32 %v86, 7
    %v88 = vsub.s32 0, %v87
    %v89 = vrot.slane %v84, %v88
    %v90 = vlaneseq
    %v91 = vshrl.u32 %v90, 7
    %v92 = vsub.s32 1, %v91
    %v93 = vrot.slane %v84, %v92
    %v94 = vlaneseq
    %v95 = vshrl.u32 %v94, 7
    %v96 = vsub.s32 2, %v95
    %v97 = vrot.slane %v84, %v96
    %v105 = vunpack.c.l.b16 %v80
    %v106 = vunpack.c.h.b16 %v80
    %v107 = vunpack.c.l.b16 %v81
    %v108 = vunpack.c.l.b16 %v82
    %v109 = vunpack.c.h.b16 %v82
    %v110 = vunpack.c.l.b16 %v83
    %v111 = vpack.c.b16 %v108, %v105
    %v112 = vpack.c.b16 %v109, %v106
    %v113 = vpack.c.b16 %v110, %v107
    %vm117 = vcmask 130048
    %v119 = vsel %vm117, %v76, 0
    %v122 = vsel %vm117, %v77, 0
    %v125 = vsel %vm117, %v78, 0
    %v128 = vsel %vm117, %v79, 0
    %130 = vmatprep.subr.bf16.mxu0 %v112
    %131 = vmatpush1.bf16.msra.mxu0 %v111
    %132 = vmatprep.subr.bf16.mxu0 0
    %133 = vmatpush1.bf16.msra.mxu0 0
    %134 = vmatprep.subr.bf16.mxu0 0
    %135 = vmatpush1.bf16.msra.mxu0 0
    %136 = vmatprep.subr.bf16.mxu0 0
    %137 = vmatpush1.bf16.msra.mxu0 0
    %138 = vmatprep.subr.bf16.mxu0 0
    %139 = vmatpush1.bf16.msra.mxu0 0
    %140 = vmatprep.subr.bf16.mxu0 0
    %141 = vmatpush1.bf16.msra.mxu0 0
    %142 = vmatprep.subr.bf16.mxu0 0
    %143 = vmatpush1.bf16.msra.mxu0 0
    %144 = vmatprep.subr.bf16.mxu0 0
    %145 = vmatpush1.bf16.msra.mxu0 0
    %146 = vmatprep.subr.bf16.mxu0 0
    %147 = vmatpush1.bf16.msra.mxu0 0
    %148 = vmatprep.subr.bf16.mxu0 0
    %149 = vmatpush1.bf16.msra.mxu0 0
    %150 = vmatprep.subr.bf16.mxu0 0
    %151 = vmatpush1.bf16.msra.mxu0 0
    %152 = vmatprep.subr.bf16.mxu0 0
    %153 = vmatpush1.bf16.msra.mxu0 0
    %154 = vmatprep.subr.bf16.mxu0 0
    %155 = vmatpush1.bf16.msra.mxu0 0
    %156 = vmatprep.subr.bf16.mxu0 0
    %157 = vmatpush1.bf16.msra.mxu0 0
    %158 = vmatprep.subr.bf16.mxu0 0
    %159 = vmatpush1.bf16.msra.mxu0 0
    %160 = vmatprep.subr.bf16.mxu0 0
    %161 = vmatpush1.bf16.msra.mxu0 0
    %162 = vmatprep.mubr.bf16.mxu0 0
    %163 = vmatmul.mubr.bf16.gmra.mrb[0].mxu0 %v119
    %v164 = vpop.f32.mrb[0].mxu0
    %v165 = vadd.f32 %v89, %v164
    %v166 = vpop.f32.mrb[0].mxu0
    %v167 = vadd.f32 %v93, %v166
    %v168 = vpop.f32.mrb[0].mxu0
    %v169 = vadd.f32 %v89, %v168
    %v170 = vpop.f32.mrb[0].mxu0
    %v171 = vadd.f32 %v93, %v170
    %172 = vmatprep.mubr.bf16.mxu0 0
    %173 = vmatmul.mubr.bf16.gmra.mrb[0].mxu0 %v122
    %v174 = vpop.f32.mrb[0].mxu0
    %v175 = vadd.f32 %v89, %v174
    %v176 = vpop.f32.mrb[0].mxu0
    %v177 = vadd.f32 %v93, %v176
    %v178 = vpop.f32.mrb[0].mxu0
    %v179 = vadd.f32 %v89, %v178
    %v180 = vpop.f32.mrb[0].mxu0
    %v181 = vadd.f32 %v93, %v180
    %182 = vmatprep.mubr.bf16.mxu0 0
    %183 = vmatmul.mubr.bf16.gmra.mrb[0].mxu0 %v125
    %v184 = vpop.f32.mrb[0].mxu0
    %v185 = vadd.f32 %v89, %v184
    %v186 = vpop.f32.mrb[0].mxu0
    %v187 = vadd.f32 %v93, %v186
    %v188 = vpop.f32.mrb[0].mxu0
    %v189 = vadd.f32 %v89, %v188
    %v190 = vpop.f32.mrb[0].mxu0
    %v191 = vadd.f32 %v93, %v190
    %192 = vmatprep.mubr.bf16.mxu0 0
    %193 = vmatmul.mubr.bf16.gmra.mrb[0].mxu0 %v128
    %v194 = vpop.f32.mrb[0].mxu0
    %v195 = vadd.f32 %v89, %v194
    %v196 = vpop.f32.mrb[0].mxu0
    %v197 = vadd.f32 %v93, %v196
    %v198 = vpop.f32.mrb[0].mxu0
    %v199 = vadd.f32 %v89, %v198
    %v200 = vpop.f32.mrb[0].mxu0
    %v201 = vadd.f32 %v93, %v200
    %202 = vdwg.mxu0
    %203 = vmatprep.subr.bf16.mxu0 0
    %204 = vmatpush1.bf16.msra.mxu0 %v113
    %205 = vmatprep.subr.bf16.mxu0 0
    %206 = vmatpush1.bf16.msra.mxu0 0
    %207 = vmatprep.subr.bf16.mxu0 0
    %208 = vmatpush1.bf16.msra.mxu0 0
    %209 = vmatprep.subr.bf16.mxu0 0
    %210 = vmatpush1.bf16.msra.mxu0 0
    %211 = vmatprep.subr.bf16.mxu0 0
    %212 = vmatpush1.bf16.msra.mxu0 0
    %213 = vmatprep.subr.bf16.mxu0 0
    %214 = vmatpush1.bf16.msra.mxu0 0
    %215 = vmatprep.subr.bf16.mxu0 0
    %216 = vmatpush1.bf16.msra.mxu0 0
    %217 = vmatprep.subr.bf16.mxu0 0
    %218 = vmatpush1.bf16.msra.mxu0 0
    %219 = vmatprep.subr.bf16.mxu0 0
    %220 = vmatpush1.bf16.msra.mxu0 0
    %221 = vmatprep.subr.bf16.mxu0 0
    %222 = vmatpush1.bf16.msra.mxu0 0
    %223 = vmatprep.subr.bf16.mxu0 0
    %224 = vmatpush1.bf16.msra.mxu0 0
    %225 = vmatprep.subr.bf16.mxu0 0
    %226 = vmatpush1.bf16.msra.mxu0 0
    %227 = vmatprep.subr.bf16.mxu0 0
    %228 = vmatpush1.bf16.msra.mxu0 0
    %229 = vmatprep.subr.bf16.mxu0 0
    %230 = vmatpush1.bf16.msra.mxu0 0
    %231 = vmatprep.subr.bf16.mxu0 0
    %232 = vmatpush1.bf16.msra.mxu0 0
    %233 = vmatprep.subr.bf16.mxu0 0
    %234 = vmatpush1.bf16.msra.mxu0 0
    %235 = vmatprep.mubr.bf16.mxu0 0
    %236 = vmatmul.mubr.bf16.gmra.mrb[0].mxu0 %v119
    %v237 = vpop.f32.mrb[0].mxu0
    %v238 = vadd.f32 %v97, %v237
    %v239 = vpop.f32.mrb[0].mxu0
    %v240 = vpop.f32.mrb[0].mxu0
    %v241 = vadd.f32 %v97, %v240
    %v242 = vpop.f32.mrb[0].mxu0
    %243 = vmatprep.mubr.bf16.mxu0 0
    %244 = vmatmul.mubr.bf16.gmra.mrb[0].mxu0 %v122
    %v245 = vpop.f32.mrb[0].mxu0
    %v246 = vadd.f32 %v97, %v245
    %v247 = vpop.f32.mrb[0].mxu0
    %v248 = vpop.f32.mrb[0].mxu0
    %v249 = vadd.f32 %v97, %v248
    %v250 = vpop.f32.mrb[0].mxu0
    %251 = vmatprep.mubr.bf16.mxu0 0
    %252 = vmatmul.mubr.bf16.gmra.mrb[0].mxu0 %v125
    %v253 = vpop.f32.mrb[0].mxu0
    %v254 = vadd.f32 %v97, %v253
    %v255 = vpop.f32.mrb[0].mxu0
    %v256 = vpop.f32.mrb[0].mxu0
    %v257 = vadd.f32 %v97, %v256
    %v258 = vpop.f32.mrb[0].mxu0
    %259 = vmatprep.mubr.bf16.mxu0 0
    %260 = vmatmul.mubr.bf16.gmra.mrb[0].mxu0 %v128
    %v261 = vpop.f32.mrb[0].mxu0
    %v262 = vadd.f32 %v97, %v261
    %v263 = vpop.f32.mrb[0].mxu0
    %v264 = vpop.f32.mrb[0].mxu0
    %v265 = vadd.f32 %v97, %v264
    %v266 = vpop.f32.mrb[0].mxu0
    %267 = vdwg.mxu0
    %268 = vst [vmem:[#allocation3] sm:$0xff] %v165
    %269 = vst [vmem:[#allocation3 + $0x8] sm:$0xff] %v167
    %270 = vst [vmem:[#allocation3 + $0x10] sm:$0xff] %v238
    %271 = vst [vmem:[#allocation3 + $0x18] sm:$0xff] %v169
    %272 = vst [vmem:[#allocation3 + $0x20] sm:$0xff] %v171
    %273 = vst [vmem:[#allocation3 + $0x28] sm:$0xff] %v241
    %274 = vst [vmem:[#allocation3 + $0x30] sm:$0xff] %v175
    %275 = vst [vmem:[#allocation3 + $0x38] sm:$0xff] %v177
    %276 = vst [vmem:[#allocation3 + $0x40] sm:$0xff] %v246
    %277 = vst [vmem:[#allocation3 + $0x48] sm:$0xff] %v179
    %278 = vst [vmem:[#allocation3 + $0x50] sm:$0xff] %v181
    %279 = vst [vmem:[#allocation3 + $0x58] sm:$0xff] %v249
    %280 = vst [vmem:[#allocation3 + $0x60] sm:$0xff] %v185
    %281 = vst [vmem:[#allocation3 + $0x68] sm:$0xff] %v187
    %282 = vst [vmem:[#allocation3 + $0x70] sm:$0xff] %v254
    %283 = vst [vmem:[#allocation3 + $0x78] sm:$0xff] %v189
    %284 = vst [vmem:[#allocation3 + $0x80] sm:$0xff] %v191
    %285 = vst [vmem:[#allocation3 + $0x88] sm:$0xff] %v257
    %286 = vst [vmem:[#allocation3 + $0x90] sm:$0xff] %v195
    %287 = vst [vmem:[#allocation3 + $0x98] sm:$0xff] %v197
    %288 = vst [vmem:[#allocation3 + $0xa0] sm:$0xff] %v262
    %289 = vst [vmem:[#allocation3 + $0xa8] sm:$0xff] %v199
    %290 = vst [vmem:[#allocation3 + $0xb0] sm:$0xff] %v201
    %291 = vst [vmem:[#allocation3 + $0xb8] sm:$0xff] %v265
    %v292 = vld [vmem:[#allocation9] sm:$0xff]
    %v293 = vld [vmem:[#allocation9 + $0x8] sm:$0xf]
    %v294 = vld [vmem:[#allocation9 + $0xc] sm:$0xff]
    %v295 = vld [vmem:[#allocation9 + $0x14] sm:$0xf]
    %v296 = vld [vmem:[#allocation9 + $0x18] sm:$0xff]
    %v297 = vld [vmem:[#allocation9 + $0x20] sm:$0xf]
    %v298 = vld [vmem:[#allocation9 + $0x24] sm:$0xff]
    %v299 = vld [vmem:[#allocation9 + $0x2c] sm:$0xf]
    %v300 = vld [vmem:[#allocation9 + $0x30] sm:$0xff]
    %v301 = vld [vmem:[#allocation9 + $0x38] sm:$0xf]
    %v302 = vld [vmem:[#allocation9 + $0x3c] sm:$0xff]
    %v303 = vld [vmem:[#allocation9 + $0x44] sm:$0xf]
    %v304 = vld [vmem:[#allocation9 + $0x48] sm:$0xff]
    %v305 = vld [vmem:[#allocation9 + $0x50] sm:$0xf]
    %v306 = vld [vmem:[#allocation9 + $0x54] sm:$0xff]
    %v307 = vld [vmem:[#allocation9 + $0x5c] sm:$0xf]
    %v308 = vld [vmem:[#allocation9 + $0x60] sm:$0xff]
    %v309 = vld [vmem:[#allocation9 + $0x68] sm:$0xf]
    %v310 = vld [vmem:[#allocation9 + $0x6c] sm:$0xff]
    %v311 = vld [vmem:[#allocation9 + $0x74] sm:$0xf]
    %v312 = vld [vmem:[#allocation9 + $0x78] sm:$0xff]
    %v313 = vld [vmem:[#allocation9 + $0x80] sm:$0xf]
    %v314 = vld [vmem:[#allocation9 + $0x84] sm:$0xff]
    %v315 = vld [vmem:[#allocation9 + $0x8c] sm:$0xf]
    %v316 = vld [vmem:[#allocation9 + $0x90] sm:$0xff]
    %v317 = vld [vmem:[#allocation9 + $0x98] sm:$0xf]
    %v318 = vld [vmem:[#allocation9 + $0x9c] sm:$0xff]
    %v319 = vld [vmem:[#allocation9 + $0xa4] sm:$0xf]
    %v320 = vld [vmem:[#allocation9 + $0xa8] sm:$0xff]
    %v321 = vld [vmem:[#allocation9 + $0xb0] sm:$0xf]
    %v322 = vld [vmem:[#allocation9 + $0xb4] sm:$0xff]
    %v323 = vld [vmem:[#allocation9 + $0xbc] sm:$0xf]
    %v324 = vld [vmem:[%s4] sm:$0x1]
    %v326 = vlaneseq
    %v327 = vshrl.u32 %v326, 7
    %v328 = vsub.s32 0, %v327
    %v329 = vrot.slane %v324, %v328
    %v331 = vld [vmem:[#allocation2] sm:$0xff]
    %v332 = vld [vmem:[#allocation3] sm:$0xff]
    %v333 = vld [vmem:[#allocation3 + $0x8] sm:$0xff]
    %v334 = vld [vmem:[#allocation3 + $0x10] sm:$0xff]
    %v335 = vpack.c.bf16 %v331, %v331
    %v368 = vunpack.c.l.b16 %v292
    %v369 = vunpack.c.h.b16 %v292
    %v370 = vunpack.c.l.b16 %v293
    %v371 = vunpack.c.l.b16 %v294
    %v372 = vunpack.c.h.b16 %v294
    %v373 = vunpack.c.l.b16 %v295
    %v374 = vunpack.c.l.b16 %v296
    %v375 = vunpack.c.h.b16 %v296
    %v376 = vunpack.c.l.b16 %v297
    %v377 = vunpack.c.l.b16 %v298
    %v378 = vunpack.c.h.b16 %v298
    %v379 = vunpack.c.l.b16 %v299
    %v380 = vunpack.c.l.b16 %v300
    %v381 = vunpack.c.h.b16 %v300
    %v382 = vunpack.c.l.b16 %v301
    %v383 = vunpack.c.l.b16 %v302
    %v384 = vunpack.c.h.b16 %v302
    %v385 = vunpack.c.l.b16 %v303
    %v386 = vunpack.c.l.b16 %v304
    %v387 = vunpack.c.h.b16 %v304
    %v388 = vunpack.c.l.b16 %v305
    %v389 = vunpack.c.l.b16 %v306
    %v390 = vunpack.c.h.b16 %v306
    %v391 = vunpack.c.l.b16 %v307
    %v392 = vunpack.c.l.b16 %v308
    %v393 = vunpack.c.h.b16 %v308
    %v394 = vunpack.c.l.b16 %v309
    %v395 = vunpack.c.l.b16 %v310
    %v396 = vunpack.c.h.b16 %v310
    %v397 = vunpack.c.l.b16 %v311
    %v398 = vunpack.c.l.b16 %v312
    %v399 = vunpack.c.h.b16 %v312
    %v400 = vunpack.c.l.b16 %v313
    %v401 = vunpack.c.l.b16 %v314
    %v402 = vunpack.c.h.b16 %v314
    %v403 = vunpack.c.l.b16 %v315
    %v404 = vunpack.c.l.b16 %v316
    %v405 = vunpack.c.h.b16 %v316
    %v406 = vunpack.c.l.b16 %v317
    %v407 = vunpack.c.l.b16 %v318
    %v408 = vunpack.c.h.b16 %v318
    %v409 = vunpack.c.l.b16 %v319
    %v410 = vunpack.c.l.b16 %v320
    %v411 = vunpack.c.h.b16 %v320
    %v412 = vunpack.c.l.b16 %v321
    %v413 = vunpack.c.l.b16 %v322
    %v414 = vunpack.c.h.b16 %v322
    %v415 = vunpack.c.l.b16 %v323
    %v416 = vpack.c.b16 %v371, %v368
    %v417 = vpack.c.b16 %v372, %v369
    %v418 = vpack.c.b16 %v373, %v370
    %v419 = vpack.c.b16 %v377, %v374
    %v420 = vpack.c.b16 %v378, %v375
    %v421 = vpack.c.b16 %v379, %v376
    %v422 = vpack.c.b16 %v383, %v380
    %v423 = vpack.c.b16 %v384, %v381
    %v424 = vpack.c.b16 %v385, %v382
    %v425 = vpack.c.b16 %v389, %v386
    %v426 = vpack.c.b16 %v390, %v387
    %v427 = vpack.c.b16 %v391, %v388
    %v428 = vpack.c.b16 %v395, %v392
    %v429 = vpack.c.b16 %v396, %v393
    %v430 = vpack.c.b16 %v397, %v394
    %v431 = vpack.c.b16 %v401, %v398
    %v432 = vpack.c.b16 %v402, %v399
    %v433 = vpack.c.b16 %v403, %v400
    %v434 = vpack.c.b16 %v407, %v404
    %v435 = vpack.c.b16 %v408, %v405
    %v436 = vpack.c.b16 %v409, %v406
    %v437 = vpack.c.b16 %v413, %v410
    %v438 = vpack.c.b16 %v414, %v411
    %v439 = vpack.c.b16 %v415, %v412
    %464 = vmatprep.subr.bf16.mxu0 %v417
    %465 = vmatpush1.bf16.msra.mxu0 %v416
    %466 = vmatprep.subr.bf16.mxu0 %v420
    %467 = vmatpush1.bf16.msra.mxu0 %v419
    %468 = vmatprep.subr.bf16.mxu0 %v423
    %469 = vmatpush1.bf16.msra.mxu0 %v422
    %470 = vmatprep.subr.bf16.mxu0 %v426
    %471 = vmatpush1.bf16.msra.mxu0 %v425
    %472 = vmatprep.subr.bf16.mxu0 %v429
    %473 = vmatpush1.bf16.msra.mxu0 %v428
    %474 = vmatprep.subr.bf16.mxu0 %v432
    %475 = vmatpush1.bf16.msra.mxu0 %v431
    %476 = vmatprep.subr.bf16.mxu0 %v435
    %477 = vmatpush1.bf16.msra.mxu0 %v434
    %478 = vmatprep.subr.bf16.mxu0 %v438
    %479 = vmatpush1.bf16.msra.mxu0 %v437
    %480 = vmatprep.subr.bf16.mxu0 0
    %481 = vmatpush1.bf16.msra.mxu0 0
    %482 = vmatprep.subr.bf16.mxu0 0
    %483 = vmatpush1.bf16.msra.mxu0 0
    %484 = vmatprep.subr.bf16.mxu0 0
    %485 = vmatpush1.bf16.msra.mxu0 0
    %486 = vmatprep.subr.bf16.mxu0 0
    %487 = vmatpush1.bf16.msra.mxu0 0
    %488 = vmatprep.subr.bf16.mxu0 0
    %489 = vmatpush1.bf16.msra.mxu0 0
    %490 = vmatprep.subr.bf16.mxu0 0
    %491 = vmatpush1.bf16.msra.mxu0 0
    %492 = vmatprep.subr.bf16.mxu0 0
    %493 = vmatpush1.bf16.msra.mxu0 0
    %494 = vmatprep.subr.bf16.mxu0 0
    %495 = vmatpush1.bf16.msra.mxu0 0
    %496 = vmatprep.mubr.bf16.mxu0 0
    %497 = vmatmul.mubr.bf16.gmra.mrb[0].mxu0 %v335
    %v498 = vpop.f32.mrb[0].mxu0
    %v499 = vadd.f32 0.0, %v498
    %v500 = vpop.f32.mrb[0].mxu0
    %v501 = vadd.f32 0.0, %v500
    %v502 = vpop.f32.mrb[0].mxu0
    %v503 = vpop.f32.mrb[0].mxu0
    %504 = vdwg.mxu0
    %505 = vmatprep.subr.bf16.mxu0 0
    %506 = vmatpush1.bf16.msra.mxu0 %v418
    %507 = vmatprep.subr.bf16.mxu0 0
    %508 = vmatpush1.bf16.msra.mxu0 %v421
    %509 = vmatprep.subr.bf16.mxu0 0
    %510 = vmatpush1.bf16.msra.mxu0 %v424
    %511 = vmatprep.subr.bf16.mxu0 0
    %512 = vmatpush1.bf16.msra.mxu0 %v427
    %513 = vmatprep.subr.bf16.mxu0 0
    %514 = vmatpush1.bf16.msra.mxu0 %v430
    %515 = vmatprep.subr.bf16.mxu0 0
    %516 = vmatpush1.bf16.msra.mxu0 %v433
    %517 = vmatprep.subr.bf16.mxu0 0
    %518 = vmatpush1.bf16.msra.mxu0 %v436
    %519 = vmatprep.subr.bf16.mxu0 0
    %520 = vmatpush1.bf16.msra.mxu0 %v439
    %521 = vmatprep.subr.bf16.mxu0 0
    %522 = vmatpush1.bf16.msra.mxu0 0
    %523 = vmatprep.subr.bf16.mxu0 0
    %524 = vmatpush1.bf16.msra.mxu0 0
    %525 = vmatprep.subr.bf16.mxu0 0
    %526 = vmatpush1.bf16.msra.mxu0 0
    %527 = vmatprep.subr.bf16.mxu0 0
    %528 = vmatpush1.bf16.msra.mxu0 0
    %529 = vmatprep.subr.bf16.mxu0 0
    %530 = vmatpush1.bf16.msra.mxu0 0
    %531 = vmatprep.subr.bf16.mxu0 0
    %532 = vmatpush1.bf16.msra.mxu0 0
    %533 = vmatprep.subr.bf16.mxu0 0
    %534 = vmatpush1.bf16.msra.mxu0 0
    %535 = vmatprep.subr.bf16.mxu0 0
    %536 = vmatpush1.bf16.msra.mxu0 0
    %537 = vmatprep.mubr.bf16.mxu0 0
    %538 = vmatmul.mubr.bf16.gmra.mrb[0].mxu0 %v335
    %v539 = vpop.f32.mrb[0].mxu0
    %v540 = vadd.f32 0.0, %v539
    %v541 = vpop.f32.mrb[0].mxu0
    %v542 = vpop.f32.mrb[0].mxu0
    %v543 = vpop.f32.mrb[0].mxu0
    %544 = vdwg.mxu0
    %v545 = vadd.f32 %v332, %v499
    %v546 = vxor.u32 %v545, 2147483648
    %v547 = vmul.f32 %v546, 1.442695
    %v548 = vpow.pop %v547
    %v549 = vadd.f32 %v548, 1.0
    %v550 = vrcp.pop %v549
    %v551 = vmul.f32 1.0, %v550
    %v552 = vadd.f32 %v333, %v501
    %v553 = vxor.u32 %v552, 2147483648
    %v554 = vmul.f32 %v553, 1.442695
    %v555 = vpow.pop %v554
    %v556 = vadd.f32 %v555, 1.0
    %v557 = vrcp.pop %v556
    %v558 = vmul.f32 1.0, %v557
    %v559 = vadd.f32 %v540, %v329
    %v560 = vmul.f32 %v551, %v559
    %v561 = vadd.f32 %v334, %v560
    %v562 = vtanh.pop %v561
    %v563 = vsub.f32 1.0, %v558
    %v564 = vmul.f32 %v563, %v562
    %v565 = vmul.f32 %v558, %v331
    %v566 = vadd.f32 %v564, %v565
    %s567 = scalar_lea.vmem [#allocation3], 24
    %v568 = vld [vmem:[%s567] sm:$0xff]
    %v569 = vld [vmem:[%s567 + $0x8] sm:$0xff]
    %v570 = vld [vmem:[%s567 + $0x10] sm:$0xff]
    %v571 = vpack.c.bf16 %v566, %v566
    %572 = vmatprep.subr.bf16.mxu0 %v417
    %573 = vmatpush1.bf16.msra.mxu0 %v416
    %574 = vmatprep.subr.bf16.mxu0 %v420
    %575 = vmatpush1.bf16.msra.mxu0 %v419
    %576 = vmatprep.subr.bf16.mxu0 %v423
    %577 = vmatpush1.bf16.msra.mxu0 %v422
    %578 = vmatprep.subr.bf16.mxu0 %v426
    %579 = vmatpush1.bf16.msra.mxu0 %v425
    %580 = vmatprep.subr.bf16.mxu0 %v429
    %581 = vmatpush1.bf16.msra.mxu0 %v428
    %582 = vmatprep.subr.bf16.mxu0 %v432
    %583 = vmatpush1.bf16.msra.mxu0 %v431
    %584 = vmatprep.subr.bf16.mxu0 %v435
    %585 = vmatpush1.bf16.msra.mxu0 %v434
    %586 = vmatprep.subr.bf16.mxu0 %v438
    %587 = vmatpush1.bf16.msra.mxu0 %v437
    %588 = vmatprep.subr.bf16.mxu0 0
    %589 = vmatpush1.bf16.msra.mxu0 0
    %590 = vmatprep.subr.bf16.mxu0 0
    %591 = vmatpush1.bf16.msra.mxu0 0
    %592 = vmatprep.subr.bf16.mxu0 0
    %593 = vmatpush1.bf16.msra.mxu0 0
    %594 = vmatprep.subr.bf16.mxu0 0
    %595 = vmatpush1.bf16.msra.mxu0 0
    %596 = vmatprep.subr.bf16.mxu0 0
    %597 = vmatpush1.bf16.msra.mxu0 0
    %598 = vmatprep.subr.bf16.mxu0 0
    %599 = vmatpush1.bf16.msra.mxu0 0
    %600 = vmatprep.subr.bf16.mxu0 0
    %601 = vmatpush1.bf16.msra.mxu0 0
    %602 = vmatprep.subr.bf16.mxu0 0
    %603 = vmatpush1.bf16.msra.mxu0 0
    %604 = vmatprep.mubr.bf16.mxu0 0
    %605 = vmatmul.mubr.bf16.gmra.mrb[0].mxu0 %v571
    %v606 = vpop.f32.mrb[0].mxu0
    %v607 = vadd.f32 0.0, %v606
    %v608 = vpop.f32.mrb[0].mxu0
    %v609 = vadd.f32 0.0, %v608
    %v610 = vpop.f32.mrb[0].mxu0
    %v611 = vpop.f32.mrb[0].mxu0
    %612 = vdwg.mxu0
    %613 = vmatprep.subr.bf16.mxu0 0
    %614 = vmatpush1.bf16.msra.mxu0 %v418
    %615 = vmatprep.subr.bf16.mxu0 0
    %616 = vmatpush1.bf16.msra.mxu0 %v421
    %617 = vmatprep.subr.bf16.mxu0 0
    %618 = vmatpush1.bf16.msra.mxu0 %v424
    %619 = vmatprep.subr.bf16.mxu0 0
    %620 = vmatpush1.bf16.msra.mxu0 %v427
    %621 = vmatprep.subr.bf16.mxu0 0
    %622 = vmatpush1.bf16.msra.mxu0 %v430
    %623 = vmatprep.subr.bf16.mxu0 0
    %624 = vmatpush1.bf16.msra.mxu0 %v433
    %625 = vmatprep.subr.bf16.mxu0 0
    %626 = vmatpush1.bf16.msra.mxu0 %v436
    %627 = vmatprep.subr.bf16.mxu0 0
    %628 = vmatpush1.bf16.msra.mxu0 %v439
    %629 = vmatprep.subr.bf16.mxu0 0
    %630 = vmatpush1.bf16.msra.mxu0 0
    %631 = vmatprep.subr.bf16.mxu0 0
    %632 = vmatpush1.bf16.msra.mxu0 0
    %633 = vmatprep.subr.bf16.mxu0 0
    %634 = vmatpush1.bf16.msra.mxu0 0
    %635 = vmatprep.subr.bf16.mxu0 0
    %636 = vmatpush1.bf16.msra.mxu0 0
    %637 = vmatprep.subr.bf16.mxu0 0
    %638 = vmatpush1.bf16.msra.mxu0 0
    %639 = vmatprep.subr.bf16.mxu0 0
    %640 = vmatpush1.bf16.msra.mxu0 0
    %641 = vmatprep.subr.bf16.mxu0 0
    %642 = vmatpush1.bf16.msra.mxu0 0
    %643 = vmatprep.subr.bf16.mxu0 0
    %644 = vmatpush1.bf16.msra.mxu0 0
    %645 = vmatprep.mubr.bf16.mxu0 0
    %646 = vmatmul.mubr.bf16.gmra.mrb[0].mxu0 %v571
    %v647 = vpop.f32.mrb[0].mxu0
    %v648 = vadd.f32 0.0, %v647
    %v649 = vpop.f32.mrb[0].mxu0
    %v650 = vpop.f32.mrb[0].mxu0
    %v651 = vpop.f32.mrb[0].mxu0
    %652 = vdwg.mxu0
    %v653 = vadd.f32 %v568, %v607
    %v654 = vxor.u32 %v653, 2147483648
    %v655 = vmul.f32 %v654, 1.442695
    %v656 = vpow.pop %v655
    %v657 = vadd.f32 %v656, 1.0
    %v658 = vrcp.pop %v657
    %v659 = vmul.f32 1.0, %v658
    %v660 = vadd.f32 %v569, %v609
    %v661 = vxor.u32 %v660, 2147483648
    %v662 = vmul.f32 %v661, 1.442695
    %v663 = vpow.pop %v662
    %v664 = vadd.f32 %v663, 1.0
    %v665 = vrcp.pop %v664
    %v666 = vmul.f32 1.0, %v665
    %v667 = vadd.f32 %v648, %v329
    %v668 = vmul.f32 %v659, %v667
    %v669 = vadd.f32 %v570, %v668
    %v670 = vtanh.pop %v669
    %v671 = vsub.f32 1.0, %v666
    %v672 = vmul.f32 %v671, %v670
    %v673 = vmul.f32 %v666, %v566
    %v674 = vadd.f32 %v672, %v673
    %s675 = scalar_lea.vmem [#allocation3], 48
    %v676 = vld [vmem:[%s675] sm:$0xff]
    %v677 = vld [vmem:[%s675 + $0x8] sm:$0xff]
    %v678 = vld [vmem:[%s675 + $0x10] sm:$0xff]
    %v679 = vpack.c.bf16 %v674, %v674
    %680 = vmatprep.subr.bf16.mxu0 %v417
    %681 = vmatpush1.bf16.msra.mxu0 %v416
    %682 = vmatprep.subr.bf16.mxu0 %v420
    %683 = vmatpush1.bf16.msra.mxu0 %v419
    %684 = vmatprep.subr.bf16.mxu0 %v423
    %685 = vmatpush1.bf16.msra.mxu0 %v422
    %686 = vmatprep.subr.bf16.mxu0 %v426
    %687 = vmatpush1.bf16.msra.mxu0 %v425
    %688 = vmatprep.subr.bf16.mxu0 %v429
    %689 = vmatpush1.bf16.msra.mxu0 %v428
    %690 = vmatprep.subr.bf16.mxu0 %v432
    %691 = vmatpush1.bf16.msra.mxu0 %v431
    %692 = vmatprep.subr.bf16.mxu0 %v435
    %693 = vmatpush1.bf16.msra.mxu0 %v434
    %694 = vmatprep.subr.bf16.mxu0 %v438
    %695 = vmatpush1.bf16.msra.mxu0 %v437
    %696 = vmatprep.subr.bf16.mxu0 0
    %697 = vmatpush1.bf16.msra.mxu0 0
    %698 = vmatprep.subr.bf16.mxu0 0
    %699 = vmatpush1.bf16.msra.mxu0 0
    %700 = vmatprep.subr.bf16.mxu0 0
    %701 = vmatpush1.bf16.msra.mxu0 0
    %702 = vmatprep.subr.bf16.mxu0 0
    %703 = vmatpush1.bf16.msra.mxu0 0
    %704 = vmatprep.subr.bf16.mxu0 0
    %705 = vmatpush1.bf16.msra.mxu0 0
    %706 = vmatprep.subr.bf16.mxu0 0
    %707 = vmatpush1.bf16.msra.mxu0 0
    %708 = vmatprep.subr.bf16.mxu0 0
    %709 = vmatpush1.bf16.msra.mxu0 0
    %710 = vmatprep.subr.bf16.mxu0 0
    %711 = vmatpush1.bf16.msra.mxu0 0
    %712 = vmatprep.mubr.bf16.mxu0 0
    %713 = vmatmul.mubr.bf16.gmra.mrb[0].mxu0 %v679
    %v714 = vpop.f32.mrb[0].mxu0
    %v715 = vadd.f32 0.0, %v714
    %v716 = vpop.f32.mrb[0].mxu0
    %v717 = vadd.f32 0.0, %v716
    %v718 = vpop.f32.mrb[0].mxu0
    %v719 = vpop.f32.mrb[0].mxu0
    %720 = vdwg.mxu0
    %721 = vmatprep.subr.bf16.mxu0 0
    %722 = vmatpush1.bf16.msra.mxu0 %v418
    %723 = vmatprep.subr.bf16.mxu0 0
    %724 = vmatpush1.bf16.msra.mxu0 %v421
    %725 = vmatprep.subr.bf16.mxu0 0
    %726 = vmatpush1.bf16.msra.mxu0 %v424
    %727 = vmatprep.subr.bf16.mxu0 0
    %728 = vmatpush1.bf16.msra.mxu0 %v427
    %729 = vmatprep.subr.bf16.mxu0 0
    %730 = vmatpush1.bf16.msra.mxu0 %v430
    %731 = vmatprep.subr.bf16.mxu0 0
    %732 = vmatpush1.bf16.msra.mxu0 %v433
    %733 = vmatprep.subr.bf16.mxu0 0
    %734 = vmatpush1.bf16.msra.mxu0 %v436
    %735 = vmatprep.subr.bf16.mxu0 0
    %736 = vmatpush1.bf16.msra.mxu0 %v439
    %737 = vmatprep.subr.bf16.mxu0 0
    %738 = vmatpush1.bf16.msra.mxu0 0
    %739 = vmatprep.subr.bf16.mxu0 0
    %740 = vmatpush1.bf16.msra.mxu0 0
    %741 = vmatprep.subr.bf16.mxu0 0
    %742 = vmatpush1.bf16.msra.mxu0 0
    %743 = vmatprep.subr.bf16.mxu0 0
    %744 = vmatpush1.bf16.msra.mxu0 0
    %745 = vmatprep.subr.bf16.mxu0 0
    %746 = vmatpush1.bf16.msra.mxu0 0
    %747 = vmatprep.subr.bf16.mxu0 0
    %748 = vmatpush1.bf16.msra.mxu0 0
    %749 = vmatprep.subr.bf16.mxu0 0
    %750 = vmatpush1.bf16.msra.mxu0 0
    %751 = vmatprep.subr.bf16.mxu0 0
    %752 = vmatpush1.bf16.msra.mxu0 0
    %753 = vmatprep.mubr.bf16.mxu0 0
    %754 = vmatmul.mubr.bf16.gmra.mrb[0].mxu0 %v679
    %v755 = vpop.f32.mrb[0].mxu0
    %v756 = vadd.f32 0.0, %v755
    %v757 = vpop.f32.mrb[0].mxu0
    %v758 = vpop.f32.mrb[0].mxu0
    %v759 = vpop.f32.mrb[0].mxu0
    %760 = vdwg.mxu0
    %v761 = vadd.f32 %v676, %v715
    %v762 = vxor.u32 %v761, 2147483648
    %v763 = vmul.f32 %v762, 1.442695
    %v764 = vpow.pop %v763
    %v765 = vadd.f32 %v764, 1.0
    %v766 = vrcp.pop %v765
    %v767 = vmul.f32 1.0, %v766
    %v768 = vadd.f32 %v677, %v717
    %v769 = vxor.u32 %v768, 2147483648
    %v770 = vmul.f32 %v769, 1.442695
    %v771 = vpow.pop %v770
    %v772 = vadd.f32 %v771, 1.0
    %v773 = vrcp.pop %v772
    %v774 = vmul.f32 1.0, %v773
    %v775 = vadd.f32 %v756, %v329
    %v776 = vmul.f32 %v767, %v775
    %v777 = vadd.f32 %v678, %v776
    %v778 = vtanh.pop %v777
    %v779 = vsub.f32 1.0, %v774
    %v780 = vmul.f32 %v779, %v778
    %v781 = vmul.f32 %v774, %v674
    %v782 = vadd.f32 %v780, %v781
    %s783 = scalar_lea.vmem [#allocation3], 72
    %v784 = vld [vmem:[%s783] sm:$0xff]
    %v785 = vld [vmem:[%s783 + $0x8] sm:$0xff]
    %v786 = vld [vmem:[%s783 + $0x10] sm:$0xff]
    %v787 = vpack.c.bf16 %v782, %v782
    %788 = vmatprep.subr.bf16.mxu0 %v417
    %789 = vmatpush1.bf16.msra.mxu0 %v416
    %790 = vmatprep.subr.bf16.mxu0 %v420
    %791 = vmatpush1.bf16.msra.mxu0 %v419
    %792 = vmatprep.subr.bf16.mxu0 %v423
    %793 = vmatpush1.bf16.msra.mxu0 %v422
    %794 = vmatprep.subr.bf16.mxu0 %v426
    %795 = vmatpush1.bf16.msra.mxu0 %v425
    %796 = vmatprep.subr.bf16.mxu0 %v429
    %797 = vmatpush1.bf16.msra.mxu0 %v428
    %798 = vmatprep.subr.bf16.mxu0 %v432
    %799 = vmatpush1.bf16.msra.mxu0 %v431
    %800 = vmatprep.subr.bf16.mxu0 %v435
    %801 = vmatpush1.bf16.msra.mxu0 %v434
    %802 = vmatprep.subr.bf16.mxu0 %v438
    %803 = vmatpush1.bf16.msra.mxu0 %v437
    %804 = vmatprep.subr.bf16.mxu0 0
    %805 = vmatpush1.bf16.msra.mxu0 0
    %806 = vmatprep.subr.bf16.mxu0 0
    %807 = vmatpush1.bf16.msra.mxu0 0
    %808 = vmatprep.subr.bf16.mxu0 0
    %809 = vmatpush1.bf16.msra.mxu0 0
    %810 = vmatprep.subr.bf16.mxu0 0
    %811 = vmatpush1.bf16.msra.mxu0 0
    %812 = vmatprep.subr.bf16.mxu0 0
    %813 = vmatpush1.bf16.msra.mxu0 0
    %814 = vmatprep.subr.bf16.mxu0 0
    %815 = vmatpush1.bf16.msra.mxu0 0
    %816 = vmatprep.subr.bf16.mxu0 0
    %817 = vmatpush1.bf16.msra.mxu0 0
    %818 = vmatprep.subr.bf16.mxu0 0
    %819 = vmatpush1.bf16.msra.mxu0 0
    %820 = vmatprep.mubr.bf16.mxu0 0
    %821 = vmatmul.mubr.bf16.gmra.mrb[0].mxu0 %v787
    %v822 = vpop.f32.mrb[0].mxu0
    %v823 = vadd.f32 0.0, %v822
    %v824 = vpop.f32.mrb[0].mxu0
    %v825 = vadd.f32 0.0, %v824
    %v826 = vpop.f32.mrb[0].mxu0
    %v827 = vpop.f32.mrb[0].mxu0
    %828 = vdwg.mxu0
    %829 = vmatprep.subr.bf16.mxu0 0
    %830 = vmatpush1.bf16.msra.mxu0 %v418
    %831 = vmatprep.subr.bf16.mxu0 0
    %832 = vmatpush1.bf16.msra.mxu0 %v421
    %833 = vmatprep.subr.bf16.mxu0 0
    %834 = vmatpush1.bf16.msra.mxu0 %v424
    %835 = vmatprep.subr.bf16.mxu0 0
    %836 = vmatpush1.bf16.msra.mxu0 %v427
    %837 = vmatprep.subr.bf16.mxu0 0
    %838 = vmatpush1.bf16.msra.mxu0 %v430
    %839 = vmatprep.subr.bf16.mxu0 0
    %840 = vmatpush1.bf16.msra.mxu0 %v433
    %841 = vmatprep.subr.bf16.mxu0 0
    %842 = vmatpush1.bf16.msra.mxu0 %v436
    %843 = vmatprep.subr.bf16.mxu0 0
    %844 = vmatpush1.bf16.msra.mxu0 %v439
    %845 = vmatprep.subr.bf16.mxu0 0
    %846 = vmatpush1.bf16.msra.mxu0 0
    %847 = vmatprep.subr.bf16.mxu0 0
    %848 = vmatpush1.bf16.msra.mxu0 0
    %849 = vmatprep.subr.bf16.mxu0 0
    %850 = vmatpush1.bf16.msra.mxu0 0
    %851 = vmatprep.subr.bf16.mxu0 0
    %852 = vmatpush1.bf16.msra.mxu0 0
    %853 = vmatprep.subr.bf16.mxu0 0
    %854 = vmatpush1.bf16.msra.mxu0 0
    %855 = vmatprep.subr.bf16.mxu0 0
    %856 = vmatpush1.bf16.msra.mxu0 0
    %857 = vmatprep.subr.bf16.mxu0 0
    %858 = vmatpush1.bf16.msra.mxu0 0
    %859 = vmatprep.subr.bf16.mxu0 0
    %860 = vmatpush1.bf16.msra.mxu0 0
    %861 = vmatprep.mubr.bf16.mxu0 0
    %862 = vmatmul.mubr.bf16.gmra.mrb[0].mxu0 %v787
    %v863 = vpop.f32.mrb[0].mxu0
    %v864 = vadd.f32 0.0, %v863
    %v865 = vpop.f32.mrb[0].mxu0
    %v866 = vpop.f32.mrb[0].mxu0
    %v867 = vpop.f32.mrb[0].mxu0
    %868 = vdwg.mxu0
    %v869 = vadd.f32 %v784, %v823
    %v870 = vxor.u32 %v869, 2147483648
    %v871 = vmul.f32 %v870, 1.442695
    %v872 = vpow.pop %v871
    %v873 = vadd.f32 %v872, 1.0
    %v874 = vrcp.pop %v873
    %v875 = vmul.f32 1.0, %v874
    %v876 = vadd.f32 %v785, %v825
    %v877 = vxor.u32 %v876, 2147483648
    %v878 = vmul.f32 %v877, 1.442695
    %v879 = vpow.pop %v878
    %v880 = vadd.f32 %v879, 1.0
    %v881 = vrcp.pop %v880
    %v882 = vmul.f32 1.0, %v881
    %v883 = vadd.f32 %v864, %v329
    %v884 = vmul.f32 %v875, %v883
    %v885 = vadd.f32 %v786, %v884
    %v886 = vtanh.pop %v885
    %v887 = vsub.f32 1.0, %v882
    %v888 = vmul.f32 %v887, %v886
    %v889 = vmul.f32 %v882, %v782
    %v890 = vadd.f32 %v888, %v889
    %s891 = scalar_lea.vmem [#allocation3], 96
    %v892 = vld [vmem:[%s891] sm:$0xff]
    %v893 = vld [vmem:[%s891 + $0x8] sm:$0xff]
    %v894 = vld [vmem:[%s891 + $0x10] sm:$0xff]
    %v895 = vpack.c.bf16 %v890, %v890
    %896 = vmatprep.subr.bf16.mxu0 %v417
    %897 = vmatpush1.bf16.msra.mxu0 %v416
    %898 = vmatprep.subr.bf16.mxu0 %v420
    %899 = vmatpush1.bf16.msra.mxu0 %v419
    %900 = vmatprep.subr.bf16.mxu0 %v423
    %901 = vmatpush1.bf16.msra.mxu0 %v422
    %902 = vmatprep.subr.bf16.mxu0 %v426
    %903 = vmatpush1.bf16.msra.mxu0 %v425
    %904 = vmatprep.subr.bf16.mxu0 %v429
    %905 = vmatpush1.bf16.msra.mxu0 %v428
    %906 = vmatprep.subr.bf16.mxu0 %v432
    %907 = vmatpush1.bf16.msra.mxu0 %v431
    %908 = vmatprep.subr.bf16.mxu0 %v435
    %909 = vmatpush1.bf16.msra.mxu0 %v434
    %910 = vmatprep.subr.bf16.mxu0 %v438
    %911 = vmatpush1.bf16.msra.mxu0 %v437
    %912 = vmatprep.subr.bf16.mxu0 0
    %913 = vmatpush1.bf16.msra.mxu0 0
    %914 = vmatprep.subr.bf16.mxu0 0
    %915 = vmatpush1.bf16.msra.mxu0 0
    %916 = vmatprep.subr.bf16.mxu0 0
    %917 = vmatpush1.bf16.msra.mxu0 0
    %918 = vmatprep.subr.bf16.mxu0 0
    %919 = vmatpush1.bf16.msra.mxu0 0
    %920 = vmatprep.subr.bf16.mxu0 0
    %921 = vmatpush1.bf16.msra.mxu0 0
    %922 = vmatprep.subr.bf16.mxu0 0
    %923 = vmatpush1.bf16.msra.mxu0 0
    %924 = vmatprep.subr.bf16.mxu0 0
    %925 = vmatpush1.bf16.msra.mxu0 0
    %926 = vmatprep.subr.bf16.mxu0 0
    %927 = vmatpush1.bf16.msra.mxu0 0
    %928 = vmatprep.mubr.bf16.mxu0 0
    %929 = vmatmul.mubr.bf16.gmra.mrb[0].mxu0 %v895
    %v930 = vpop.f32.mrb[0].mxu0
    %v931 = vadd.f32 0.0, %v930
    %v932 = vpop.f32.mrb[0].mxu0
    %v933 = vadd.f32 0.0, %v932
    %v934 = vpop.f32.mrb[0].mxu0
    %v935 = vpop.f32.mrb[0].mxu0
    %936 = vdwg.mxu0
    %937 = vmatprep.subr.bf16.mxu0 0
    %938 = vmatpush1.bf16.msra.mxu0 %v418
    %939 = vmatprep.subr.bf16.mxu0 0
    %940 = vmatpush1.bf16.msra.mxu0 %v421
    %941 = vmatprep.subr.bf16.mxu0 0
    %942 = vmatpush1.bf16.msra.mxu0 %v424
    %943 = vmatprep.subr.bf16.mxu0 0
    %944 = vmatpush1.bf16.msra.mxu0 %v427
    %945 = vmatprep.subr.bf16.mxu0 0
    %946 = vmatpush1.bf16.msra.mxu0 %v430
    %947 = vmatprep.subr.bf16.mxu0 0
    %948 = vmatpush1.bf16.msra.mxu0 %v433
    %949 = vmatprep.subr.bf16.mxu0 0
    %950 = vmatpush1.bf16.msra.mxu0 %v436
    %951 = vmatprep.subr.bf16.mxu0 0
    %952 = vmatpush1.bf16.msra.mxu0 %v439
    %953 = vmatprep.subr.bf16.mxu0 0
    %954 = vmatpush1.bf16.msra.mxu0 0
    %955 = vmatprep.subr.bf16.mxu0 0
    %956 = vmatpush1.bf16.msra.mxu0 0
    %957 = vmatprep.subr.bf16.mxu0 0
    %958 = vmatpush1.bf16.msra.mxu0 0
    %959 = vmatprep.subr.bf16.mxu0 0
    %960 = vmatpush1.bf16.msra.mxu0 0
    %961 = vmatprep.subr.bf16.mxu0 0
    %962 = vmatpush1.bf16.msra.mxu0 0
    %963 = vmatprep.subr.bf16.mxu0 0
    %964 = vmatpush1.bf16.msra.mxu0 0
    %965 = vmatprep.subr.bf16.mxu0 0
    %966 = vmatpush1.bf16.msra.mxu0 0
    %967 = vmatprep.subr.bf16.mxu0 0
    %968 = vmatpush1.bf16.msra.mxu0 0
    %969 = vmatprep.mubr.bf16.mxu0 0
    %970 = vmatmul.mubr.bf16.gmra.mrb[0].mxu0 %v895
    %v971 = vpop.f32.mrb[0].mxu0
    %v972 = vadd.f32 0.0, %v971
    %v973 = vpop.f32.mrb[0].mxu0
    %v974 = vpop.f32.mrb[0].mxu0
    %v975 = vpop.f32.mrb[0].mxu0
    %976 = vdwg.mxu0
    %v977 = vadd.f32 %v892, %v931
    %v978 = vxor.u32 %v977, 2147483648
    %v979 = vmul.f32 %v978, 1.442695
    %v980 = vpow.pop %v979
    %v981 = vadd.f32 %v980, 1.0
    %v982 = vrcp.pop %v981
    %v983 = vmul.f32 1.0, %v982
    %v984 = vadd.f32 %v893, %v933
    %v985 = vxor.u32 %v984, 2147483648
    %v986 = vmul.f32 %v985, 1.442695
    %v987 = vpow.pop %v986
    %v988 = vadd.f32 %v987, 1.0
    %v989 = vrcp.pop %v988
    %v990 = vmul.f32 1.0, %v989
    %v991 = vadd.f32 %v972, %v329
    %v992 = vmul.f32 %v983, %v991
    %v993 = vadd.f32 %v894, %v992
    %v994 = vtanh.pop %v993
    %v995 = vsub.f32 1.0, %v990
    %v996 = vmul.f32 %v995, %v994
    %v997 = vmul.f32 %v990, %v890
    %v998 = vadd.f32 %v996, %v997
    %s999 = scalar_lea.vmem [#allocation3], 120
    %v1000 = vld [vmem:[%s999] sm:$0xff]
    %v1001 = vld [vmem:[%s999 + $0x8] sm:$0xff]
    %v1002 = vld [vmem:[%s999 + $0x10] sm:$0xff]
    %v1003 = vpack.c.bf16 %v998, %v998
    %1004 = vmatprep.subr.bf16.mxu0 %v417
    %1005 = vmatpush1.bf16.msra.mxu0 %v416
    %1006 = vmatprep.subr.bf16.mxu0 %v420
    %1007 = vmatpush1.bf16.msra.mxu0 %v419
    %1008 = vmatprep.subr.bf16.mxu0 %v423
    %1009 = vmatpush1.bf16.msra.mxu0 %v422
    %1010 = vmatprep.subr.bf16.mxu0 %v426
    %1011 = vmatpush1.bf16.msra.mxu0 %v425
    %1012 = vmatprep.subr.bf16.mxu0 %v429
    %1013 = vmatpush1.bf16.msra.mxu0 %v428
    %1014 = vmatprep.subr.bf16.mxu0 %v432
    %1015 = vmatpush1.bf16.msra.mxu0 %v431
    %1016 = vmatprep.subr.bf16.mxu0 %v435
    %1017 = vmatpush1.bf16.msra.mxu0 %v434
    %1018 = vmatprep.subr.bf16.mxu0 %v438
    %1019 = vmatpush1.bf16.msra.mxu0 %v437
    %1020 = vmatprep.subr.bf16.mxu0 0
    %1021 = vmatpush1.bf16.msra.mxu0 0
    %1022 = vmatprep.subr.bf16.mxu0 0
    %1023 = vmatpush1.bf16.msra.mxu0 0
    %1024 = vmatprep.subr.bf16.mxu0 0
    %1025 = vmatpush1.bf16.msra.mxu0 0
    %1026 = vmatprep.subr.bf16.mxu0 0
    %1027 = vmatpush1.bf16.msra.mxu0 0
    %1028 = vmatprep.subr.bf16.mxu0 0
    %1029 = vmatpush1.bf16.msra.mxu0 0
    %1030 = vmatprep.subr.bf16.mxu0 0
    %1031 = vmatpush1.bf16.msra.mxu0 0
    %1032 = vmatprep.subr.bf16.mxu0 0
    %1033 = vmatpush1.bf16.msra.mxu0 0
    %1034 = vmatprep.subr.bf16.mxu0 0
    %1035 = vmatpush1.bf16.msra.mxu0 0
    %1036 = vmatprep.mubr.bf16.mxu0 0
    %1037 = vmatmul.mubr.bf16.gmra.mrb[0].mxu0 %v1003
    %v1038 = vpop.f32.mrb[0].mxu0
    %v1039 = vadd.f32 0.0, %v1038
    %v1040 = vpop.f32.mrb[0].mxu0
    %v1041 = vadd.f32 0.0, %v1040
    %v1042 = vpop.f32.mrb[0].mxu0
    %v1043 = vpop.f32.mrb[0].mxu0
    %1044 = vdwg.mxu0
    %1045 = vmatprep.subr.bf16.mxu0 0
    %1046 = vmatpush1.bf16.msra.mxu0 %v418
    %1047 = vmatprep.subr.bf16.mxu0 0
    %1048 = vmatpush1.bf16.msra.mxu0 %v421
    %1049 = vmatprep.subr.bf16.mxu0 0
    %1050 = vmatpush1.bf16.msra.mxu0 %v424
    %1051 = vmatprep.subr.bf16.mxu0 0
    %1052 = vmatpush1.bf16.msra.mxu0 %v427
    %1053 = vmatprep.subr.bf16.mxu0 0
    %1054 = vmatpush1.bf16.msra.mxu0 %v430
    %1055 = vmatprep.subr.bf16.mxu0 0
    %1056 = vmatpush1.bf16.msra.mxu0 %v433
    %1057 = vmatprep.subr.bf16.mxu0 0
    %1058 = vmatpush1.bf16.msra.mxu0 %v436
    %1059 = vmatprep.subr.bf16.mxu0 0
    %1060 = vmatpush1.bf16.msra.mxu0 %v439
    %1061 = vmatprep.subr.bf16.mxu0 0
    %1062 = vmatpush1.bf16.msra.mxu0 0
    %1063 = vmatprep.subr.bf16.mxu0 0
    %1064 = vmatpush1.bf16.msra.mxu0 0
    %1065 = vmatprep.subr.bf16.mxu0 0
    %1066 = vmatpush1.bf16.msra.mxu0 0
    %1067 = vmatprep.subr.bf16.mxu0 0
    %1068 = vmatpush1.bf16.msra.mxu0 0
    %1069 = vmatprep.subr.bf16.mxu0 0
    %1070 = vmatpush1.bf16.msra.mxu0 0
    %1071 = vmatprep.subr.bf16.mxu0 0
    %1072 = vmatpush1.bf16.msra.mxu0 0
    %1073 = vmatprep.subr.bf16.mxu0 0
    %1074 = vmatpush1.bf16.msra.mxu0 0
    %1075 = vmatprep.subr.bf16.mxu0 0
    %1076 = vmatpush1.bf16.msra.mxu0 0
    %1077 = vmatprep.mubr.bf16.mxu0 0
    %1078 = vmatmul.mubr.bf16.gmra.mrb[0].mxu0 %v1003
    %v1079 = vpop.f32.mrb[0].mxu0
    %v1080 = vadd.f32 0.0, %v1079
    %v1081 = vpop.f32.mrb[0].mxu0
    %v1082 = vpop.f32.mrb[0].mxu0
    %v1083 = vpop.f32.mrb[0].mxu0
    %1084 = vdwg.mxu0
    %v1085 = vadd.f32 %v1000, %v1039
    %v1086 = vxor.u32 %v1085, 2147483648
    %v1087 = vmul.f32 %v1086, 1.442695
    %v1088 = vpow.pop %v1087
    %v1089 = vadd.f32 %v1088, 1.0
    %v1090 = vrcp.pop %v1089
    %v1091 = vmul.f32 1.0, %v1090
    %v1092 = vadd.f32 %v1001, %v1041
    %v1093 = vxor.u32 %v1092, 2147483648
    %v1094 = vmul.f32 %v1093, 1.442695
    %v1095 = vpow.pop %v1094
    %v1096 = vadd.f32 %v1095, 1.0
    %v1097 = vrcp.pop %v1096
    %v1098 = vmul.f32 1.0, %v1097
    %v1099 = vadd.f32 %v1080, %v329
    %v1100 = vmul.f32 %v1091, %v1099
    %v1101 = vadd.f32 %v1002, %v1100
    %v1102 = vtanh.pop %v1101
    %v1103 = vsub.f32 1.0, %v1098
    %v1104 = vmul.f32 %v1103, %v1102
    %v1105 = vmul.f32 %v1098, %v998
    %v1106 = vadd.f32 %v1104, %v1105
    %s1107 = scalar_lea.vmem [#allocation3], 144
    %v1108 = vld [vmem:[%s1107] sm:$0xff]
    %v1109 = vld [vmem:[%s1107 + $0x8] sm:$0xff]
    %v1110 = vld [vmem:[%s1107 + $0x10] sm:$0xff]
    %v1111 = vpack.c.bf16 %v1106, %v1106
    %1112 = vmatprep.subr.bf16.mxu0 %v417
    %1113 = vmatpush1.bf16.msra.mxu0 %v416
    %1114 = vmatprep.subr.bf16.mxu0 %v420
    %1115 = vmatpush1.bf16.msra.mxu0 %v419
    %1116 = vmatprep.subr.bf16.mxu0 %v423
    %1117 = vmatpush1.bf16.msra.mxu0 %v422
    %1118 = vmatprep.subr.bf16.mxu0 %v426
    %1119 = vmatpush1.bf16.msra.mxu0 %v425
    %1120 = vmatprep.subr.bf16.mxu0 %v429
    %1121 = vmatpush1.bf16.msra.mxu0 %v428
    %1122 = vmatprep.subr.bf16.mxu0 %v432
    %1123 = vmatpush1.bf16.msra.mxu0 %v431
    %1124 = vmatprep.subr.bf16.mxu0 %v435
    %1125 = vmatpush1.bf16.msra.mxu0 %v434
    %1126 = vmatprep.subr.bf16.mxu0 %v438
    %1127 = vmatpush1.bf16.msra.mxu0 %v437
    %1128 = vmatprep.subr.bf16.mxu0 0
    %1129 = vmatpush1.bf16.msra.mxu0 0
    %1130 = vmatprep.subr.bf16.mxu0 0
    %1131 = vmatpush1.bf16.msra.mxu0 0
    %1132 = vmatprep.subr.bf16.mxu0 0
    %1133 = vmatpush1.bf16.msra.mxu0 0
    %1134 = vmatprep.subr.bf16.mxu0 0
    %1135 = vmatpush1.bf16.msra.mxu0 0
    %1136 = vmatprep.subr.bf16.mxu0 0
    %1137 = vmatpush1.bf16.msra.mxu0 0
    %1138 = vmatprep.subr.bf16.mxu0 0
    %1139 = vmatpush1.bf16.msra.mxu0 0
    %1140 = vmatprep.subr.bf16.mxu0 0
    %1141 = vmatpush1.bf16.msra.mxu0 0
    %1142 = vmatprep.subr.bf16.mxu0 0
    %1143 = vmatpush1.bf16.msra.mxu0 0
    %1144 = vmatprep.mubr.bf16.mxu0 0
    %1145 = vmatmul.mubr.bf16.gmra.mrb[0].mxu0 %v1111
    %v1146 = vpop.f32.mrb[0].mxu0
    %v1147 = vadd.f32 0.0, %v1146
    %v1148 = vpop.f32.mrb[0].mxu0
    %v1149 = vadd.f32 0.0, %v1148
    %v1150 = vpop.f32.mrb[0].mxu0
    %v1151 = vpop.f32.mrb[0].mxu0
    %1152 = vdwg.mxu0
    %1153 = vmatprep.subr.bf16.mxu0 0
    %1154 = vmatpush1.bf16.msra.mxu0 %v418
    %1155 = vmatprep.subr.bf16.mxu0 0
    %1156 = vmatpush1.bf16.msra.mxu0 %v421
    %1157 = vmatprep.subr.bf16.mxu0 0
    %1158 = vmatpush1.bf16.msra.mxu0 %v424
    %1159 = vmatprep.subr.bf16.mxu0 0
    %1160 = vmatpush1.bf16.msra.mxu0 %v427
    %1161 = vmatprep.subr.bf16.mxu0 0
    %1162 = vmatpush1.bf16.msra.mxu0 %v430
    %1163 = vmatprep.subr.bf16.mxu0 0
    %1164 = vmatpush1.bf16.msra.mxu0 %v433
    %1165 = vmatprep.subr.bf16.mxu0 0
    %1166 = vmatpush1.bf16.msra.mxu0 %v436
    %1167 = vmatprep.subr.bf16.mxu0 0
    %1168 = vmatpush1.bf16.msra.mxu0 %v439
    %1169 = vmatprep.subr.bf16.mxu0 0
    %1170 = vmatpush1.bf16.msra.mxu0 0
    %1171 = vmatprep.subr.bf16.mxu0 0
    %1172 = vmatpush1.bf16.msra.mxu0 0
    %1173 = vmatprep.subr.bf16.mxu0 0
    %1174 = vmatpush1.bf16.msra.mxu0 0
    %1175 = vmatprep.subr.bf16.mxu0 0
    %1176 = vmatpush1.bf16.msra.mxu0 0
    %1177 = vmatprep.subr.bf16.mxu0 0
    %1178 = vmatpush1.bf16.msra.mxu0 0
    %1179 = vmatprep.subr.bf16.mxu0 0
    %1180 = vmatpush1.bf16.msra.mxu0 0
    %1181 = vmatprep.subr.bf16.mxu0 0
    %1182 = vmatpush1.bf16.msra.mxu0 0
    %1183 = vmatprep.subr.bf16.mxu0 0
    %1184 = vmatpush1.bf16.msra.mxu0 0
    %1185 = vmatprep.mubr.bf16.mxu0 0
    %1186 = vmatmul.mubr.bf16.gmra.mrb[0].mxu0 %v1111
    %v1187 = vpop.f32.mrb[0].mxu0
    %v1188 = vadd.f32 0.0, %v1187
    %v1189 = vpop.f32.mrb[0].mxu0
    %v1190 = vpop.f32.mrb[0].mxu0
    %v1191 = vpop.f32.mrb[0].mxu0
    %1192 = vdwg.mxu0
    %v1193 = vadd.f32 %v1108, %v1147
    %v1194 = vxor.u32 %v1193, 2147483648
    %v1195 = vmul.f32 %v1194, 1.442695
    %v1196 = vpow.pop %v1195
    %v1197 = vadd.f32 %v1196, 1.0
    %v1198 = vrcp.pop %v1197
    %v1199 = vmul.f32 1.0, %v1198
    %v1200 = vadd.f32 %v1109, %v1149
    %v1201 = vxor.u32 %v1200, 2147483648
    %v1202 = vmul.f32 %v1201, 1.442695
    %v1203 = vpow.pop %v1202
    %v1204 = vadd.f32 %v1203, 1.0
    %v1205 = vrcp.pop %v1204
    %v1206 = vmul.f32 1.0, %v1205
    %v1207 = vadd.f32 %v1188, %v329
    %v1208 = vmul.f32 %v1199, %v1207
    %v1209 = vadd.f32 %v1110, %v1208
    %v1210 = vtanh.pop %v1209
    %v1211 = vsub.f32 1.0, %v1206
    %v1212 = vmul.f32 %v1211, %v1210
    %v1213 = vmul.f32 %v1206, %v1106
    %v1214 = vadd.f32 %v1212, %v1213
    %s1215 = scalar_lea.vmem [#allocation3], 168
    %v1216 = vld [vmem:[%s1215] sm:$0xff]
    %v1217 = vld [vmem:[%s1215 + $0x8] sm:$0xff]
    %v1218 = vld [vmem:[%s1215 + $0x10] sm:$0xff]
    %v1219 = vpack.c.bf16 %v1214, %v1214
    %1220 = vmatprep.subr.bf16.mxu0 %v417
    %1221 = vmatpush1.bf16.msra.mxu0 %v416
    %1222 = vmatprep.subr.bf16.mxu0 %v420
    %1223 = vmatpush1.bf16.msra.mxu0 %v419
    %1224 = vmatprep.subr.bf16.mxu0 %v423
    %1225 = vmatpush1.bf16.msra.mxu0 %v422
    %1226 = vmatprep.subr.bf16.mxu0 %v426
    %1227 = vmatpush1.bf16.msra.mxu0 %v425
    %1228 = vmatprep.subr.bf16.mxu0 %v429
    %1229 = vmatpush1.bf16.msra.mxu0 %v428
    %1230 = vmatprep.subr.bf16.mxu0 %v432
    %1231 = vmatpush1.bf16.msra.mxu0 %v431
    %1232 = vmatprep.subr.bf16.mxu0 %v435
    %1233 = vmatpush1.bf16.msra.mxu0 %v434
    %1234 = vmatprep.subr.bf16.mxu0 %v438
    %1235 = vmatpush1.bf16.msra.mxu0 %v437
    %1236 = vmatprep.subr.bf16.mxu0 0
    %1237 = vmatpush1.bf16.msra.mxu0 0
    %1238 = vmatprep.subr.bf16.mxu0 0
    %1239 = vmatpush1.bf16.msra.mxu0 0
    %1240 = vmatprep.subr.bf16.mxu0 0
    %1241 = vmatpush1.bf16.msra.mxu0 0
    %1242 = vmatprep.subr.bf16.mxu0 0
    %1243 = vmatpush1.bf16.msra.mxu0 0
    %1244 = vmatprep.subr.bf16.mxu0 0
    %1245 = vmatpush1.bf16.msra.mxu0 0
    %1246 = vmatprep.subr.bf16.mxu0 0
    %1247 = vmatpush1.bf16.msra.mxu0 0
    %1248 = vmatprep.subr.bf16.mxu0 0
    %1249 = vmatpush1.bf16.msra.mxu0 0
    %1250 = vmatprep.subr.bf16.mxu0 0
    %1251 = vmatpush1.bf16.msra.mxu0 0
    %1252 = vmatprep.mubr.bf16.mxu0 0
    %1253 = vmatmul.mubr.bf16.gmra.mrb[0].mxu0 %v1219
    %v1254 = vpop.f32.mrb[0].mxu0
    %v1255 = vadd.f32 0.0, %v1254
    %v1256 = vpop.f32.mrb[0].mxu0
    %v1257 = vadd.f32 0.0, %v1256
    %v1258 = vpop.f32.mrb[0].mxu0
    %v1259 = vpop.f32.mrb[0].mxu0
    %1260 = vdwg.mxu0
    %1261 = vmatprep.subr.bf16.mxu0 0
    %1262 = vmatpush1.bf16.msra.mxu0 %v418
    %1263 = vmatprep.subr.bf16.mxu0 0
    %1264 = vmatpush1.bf16.msra.mxu0 %v421
    %1265 = vmatprep.subr.bf16.mxu0 0
    %1266 = vmatpush1.bf16.msra.mxu0 %v424
    %1267 = vmatprep.subr.bf16.mxu0 0
    %1268 = vmatpush1.bf16.msra.mxu0 %v427
    %1269 = vmatprep.subr.bf16.mxu0 0
    %1270 = vmatpush1.bf16.msra.mxu0 %v430
    %1271 = vmatprep.subr.bf16.mxu0 0
    %1272 = vmatpush1.bf16.msra.mxu0 %v433
    %1273 = vmatprep.subr.bf16.mxu0 0
    %1274 = vmatpush1.bf16.msra.mxu0 %v436
    %1275 = vmatprep.subr.bf16.mxu0 0
    %1276 = vmatpush1.bf16.msra.mxu0 %v439
    %1277 = vmatprep.subr.bf16.mxu0 0
    %1278 = vmatpush1.bf16.msra.mxu0 0
    %1279 = vmatprep.subr.bf16.mxu0 0
    %1280 = vmatpush1.bf16.msra.mxu0 0
    %1281 = vmatprep.subr.bf16.mxu0 0
    %1282 = vmatpush1.bf16.msra.mxu0 0
    %1283 = vmatprep.subr.bf16.mxu0 0
    %1284 = vmatpush1.bf16.msra.mxu0 0
    %1285 = vmatprep.subr.bf16.mxu0 0
    %1286 = vmatpush1.bf16.msra.mxu0 0
    %1287 = vmatprep.subr.bf16.mxu0 0
    %1288 = vmatpush1.bf16.msra.mxu0 0
    %1289 = vmatprep.subr.bf16.mxu0 0
    %1290 = vmatpush1.bf16.msra.mxu0 0
    %1291 = vmatprep.subr.bf16.mxu0 0
    %1292 = vmatpush1.bf16.msra.mxu0 0
    %1293 = vmatprep.mubr.bf16.mxu0 0
    %1294 = vmatmul.mubr.bf16.gmra.mrb[0].mxu0 %v1219
    %v1295 = vpop.f32.mrb[0].mxu0
    %v1296 = vadd.f32 0.0, %v1295
    %v1297 = vpop.f32.mrb[0].mxu0
    %v1298 = vpop.f32.mrb[0].mxu0
    %v1299 = vpop.f32.mrb[0].mxu0
    %1300 = vdwg.mxu0
    %v1301 = vadd.f32 %v1216, %v1255
    %v1302 = vxor.u32 %v1301, 2147483648
    %v1303 = vmul.f32 %v1302, 1.442695
    %v1304 = vpow.pop %v1303
    %v1305 = vadd.f32 %v1304, 1.0
    %v1306 = vrcp.pop %v1305
    %v1307 = vmul.f32 1.0, %v1306
    %v1308 = vadd.f32 %v1217, %v1257
    %v1309 = vxor.u32 %v1308, 2147483648
    %v1310 = vmul.f32 %v1309, 1.442695
    %v1311 = vpow.pop %v1310
    %v1312 = vadd.f32 %v1311, 1.0
    %v1313 = vrcp.pop %v1312
    %v1314 = vmul.f32 1.0, %v1313
    %v1315 = vadd.f32 %v1296, %v329
    %v1316 = vmul.f32 %v1307, %v1315
    %v1317 = vadd.f32 %v1218, %v1316
    %v1318 = vtanh.pop %v1317
    %v1319 = vsub.f32 1.0, %v1314
    %v1320 = vmul.f32 %v1319, %v1318
    %v1321 = vmul.f32 %v1314, %v1214
    %v1322 = vadd.f32 %v1320, %v1321
    %1323 = vst [vmem:[#allocation2] sm:$0xff] %v1322
    %1324 = vst [vmem:[#allocation10] sm:$0xff] %v1322
    // Predicated region
    $region38: #{tpu_custom_call.1} parent=1 // pred_check
      _
    $region39: #{tpu_custom_call.1} parent=1 // pred_check_branch
      %1326 = sbr.rel (0) target = $region41
    $region40: #{tpu_custom_call.1} parent=1 // pred_region
      %s1328 = ssub.s32 128, 128
      %1329 = vsyncadd [#allocation6], %s1328
      %s1331 = sshll.u32 [#allocation10], 4
      %s1332 = int_to_ptr.vmem [resolvable:$true] %s1331
      %1334 = dma.vmem_to_hbm [thread:$0]  %s1332, 128, %s5, [#allocation6]
    $region41: #{tpu_custom_call.1} parent=1 // pred_fallthru
      _
    // Predicated region
    $region42: #{tpu_custom_call.1} parent=1 // pred_check
      _
    $region43: #{tpu_custom_call.1} parent=1 // pred_check_branch
      %1336 = sbr.rel (0) target = $region45
    $region44: #{tpu_custom_call.1} parent=1 // pred_region
      %1337 = dma.done [#allocation6], 128
    $region45: #{tpu_custom_call.1} parent=1 // pred_fallthru
      _
    %1338 = vsyncpa [#allocation5], 1
    %1339 = vsyncpa [#allocation8], 1
    %1340 = vsyncpa [#allocation6], 1

// kernel: tpu_custom_call.1
$region0: #{tpu_custom_call.1}
  #allocation0 [shape = 'u32[]', space=smem, size = 0x4, offset = 0x4, fixed_abs, tag = 'smem constant byte address 0x4 - core index']
  #allocation1 [shape = 'u32[144,128]{1,0:T(1,128)}', space=vmem, size = 0x12000, scoped, tag = 'internal scratch']
  #allocation2 [shape = 'f32[8,128]{1,0:T(8,128)}', space=vmem, size = 0x1000, scoped, tag = 'scratch operand']
  #allocation3 [shape = 'f32[8,8,384]{2,1,0:T(8,128)}', space=vmem, size = 0x18000, scoped, tag = 'scratch operand']
  %s0 = inlined_call_operand.hbm [shape: f32[8,8,16], index: 0, kind: input, shape index: {}]
  %s1 = inlined_call_operand.hbm [shape: bf16[16,384], index: 1, kind: input, shape index: {}]
  %s2 = inlined_call_operand.vmem [shape: f32[1,384], index: 2, kind: input, shape index: {}]
  %s3 = inlined_call_operand.hbm [shape: bf16[128,384], index: 3, kind: input, shape index: {}]
  %s4 = inlined_call_operand.vmem [shape: f32[1,128], index: 4, kind: input, shape index: {}]
  %s5 = inlined_call_operand.hbm [shape: f32[8,128], index: 5, kind: output, shape index: {}]
  %s6 = sld [smem:[#allocation0]]
  $region46: #{tpu_custom_call.1} parent=0
    _
  %s8 = ssub.s32 1, %s6
  %s9 = scalar_select 0, %s8, %s6
  $region1: #{tpu_custom_call.1} parent=0
    #allocation4 [shape = 'u8[32768]{0}', space=vmem, size = 0x8000, scoped, tag = 'input window, operand 0, single buffered']
    #allocation5 [shape = 's32[1]{0}', space=sflag, size = 0x4, scoped, tag = 'scoped memory for tpu_custom_call.1']
    #allocation6 [shape = 's32[1]{0}', space=sflag, size = 0x4, scoped, tag = 'scoped memory for tpu_custom_call.1']
    #allocation7 [shape = 'u8[12288]{0}', space=vmem, size = 0x3000, scoped, tag = 'input window, operand 1, single buffered']
    #allocation8 [shape = 's32[1]{0}', space=sflag, size = 0x4, scoped, tag = 'scoped memory for tpu_custom_call.1']
    #allocation9 [shape = 'u8[98304]{0}', space=vmem, size = 0x18000, scoped, tag = 'input window, operand 3, single buffered']
    #allocation10 [shape = 'u8[4096]{0}', space=vmem, size = 0x1000, scoped, tag = 'output window, operand 0, single buffered']
    %10 = vsyncpa [#allocation5], 0
    %11 = vsyncpa [#allocation8], 0
    %12 = vsyncpa [#allocation6], 0
    // Predicated region
    $region2: #{tpu_custom_call.1} parent=1 // pred_check
      _
    $region3: #{tpu_custom_call.1} parent=1 // pred_check_branch
      %14 = sbr.rel (0) target = $region5
    $region4: #{tpu_custom_call.1} parent=1 // pred_region
      %s16 = ssub.s32 1024, 1024
      %17 = vsyncadd [#allocation5], %s16
      %s18 = sshll.u32 [#allocation4], 4
      %s19 = int_to_ptr.vmem [resolvable:$true] %s18
      %24 = dma.hbm_to_vmem [thread:$0]  %s0, 1024, %s19, [#allocation5], 128, 128, 8
    $region5: #{tpu_custom_call.1} parent=1 // pred_fallthru
      _
    // Predicated region
    $region6: #{tpu_custom_call.1} parent=1 // pred_check
      _
    $region7: #{tpu_custom_call.1} parent=1 // pred_check_branch
      %26 = sbr.rel (0) target = $region9
    $region8: #{tpu_custom_call.1} parent=1 // pred_region
      %s28 = ssub.s32 384, 384
      %29 = vsyncadd [#allocation8], %s28
      %s30 = sshll.u32 [#allocation7], 4
      %s31 = int_to_ptr.vmem [resolvable:$true] %s30
      %36 = dma.hbm_to_vmem [thread:$0]  %s1, 384, %s31, [#allocation8], 192, 192, 12
    $region9: #{tpu_custom_call.1} parent=1 // pred_fallthru
      _
    // Predicated region
    $region10: #{tpu_custom_call.1} parent=1 // pred_check
      _
    $region11: #{tpu_custom_call.1} parent=1 // pred_check_branch
      %38 = sbr.rel (0) target = $region13
    $region12: #{tpu_custom_call.1} parent=1 // pred_region
      _
    $region13: #{tpu_custom_call.1} parent=1 // pred_fallthru
      _
    // Predicated region
    $region14: #{tpu_custom_call.1} parent=1 // pred_check
      _
    $region15: #{tpu_custom_call.1} parent=1 // pred_check_branch
      %40 = sbr.rel (0) target = $region17
    $region16: #{tpu_custom_call.1} parent=1 // pred_region
      %s42 = ssub.s32 3072, 3072
      %43 = vsyncadd [#allocation8], %s42
      %s44 = sshll.u32 [#allocation9], 4
      %s45 = int_to_ptr.vmem [resolvable:$true] %s44
      %50 = dma.hbm_to_vmem [thread:$0]  %s3, 3072, %s45, [#allocation8], 192, 192, 12
    $region17: #{tpu_custom_call.1} parent=1 // pred_fallthru
      _
    // Predicated region
    $region18: #{tpu_custom_call.1} parent=1 // pred_check
      _
    $region19: #{tpu_custom_call.1} parent=1 // pred_check_branch
      %52 = sbr.rel (0) target = $region21
    $region20: #{tpu_custom_call.1} parent=1 // pred_region
      _
    $region21: #{tpu_custom_call.1} parent=1 // pred_fallthru
      _
    // Predicated region
    $region22: #{tpu_custom_call.1} parent=1 // pred_check
      _
    $region23: #{tpu_custom_call.1} parent=1 // pred_check_branch
      %54 = sbr.rel (0) target = $region25
    $region24: #{tpu_custom_call.1} parent=1 // pred_region
      %55 = dma.done [#allocation5], 1024
    $region25: #{tpu_custom_call.1} parent=1 // pred_fallthru
      _
    // Predicated region
    $region26: #{tpu_custom_call.1} parent=1 // pred_check
      _
    $region27: #{tpu_custom_call.1} parent=1 // pred_check_branch
      %57 = sbr.rel (0) target = $region29
    $region28: #{tpu_custom_call.1} parent=1 // pred_region
      %58 = dma.done [#allocation8], 384
    $region29: #{tpu_custom_call.1} parent=1 // pred_fallthru
      _
    // Predicated region
    $region30: #{tpu_custom_call.1} parent=1 // pred_check
      _
    $region31: #{tpu_custom_call.1} parent=1 // pred_check_branch
      %60 = sbr.rel (0) target = $region33
    $region32: #{tpu_custom_call.1} parent=1 // pred_region
      %61 = dma.done [#allocation8], 3072
    $region33: #{tpu_custom_call.1} parent=1 // pred_fallthru
      _
    %p63 = scmp.eq.s32.totalorder 0, 0
    // Predicated region
    $region34: #{tpu_custom_call.1} parent=1 // pred_check
      %p64 = pneg %p63
    $region35: #{tpu_custom_call.1} parent=1 // pred_check_branch
      %66 = sbr.rel (%p64) target = $region37
    $region36: #{tpu_custom_call.1} parent=1 // pred_region
      %67 = vst [vmem:[#allocation2] sm:$0xff] 0.0
    $region37: #{tpu_custom_call.1} parent=1 // pred_fallthru
      _
    %v68 = vld [vmem:[#allocation4] sm:$0xff]
    %v69 = vld [vmem:[#allocation4 + $0x8] sm:$0xff]
    %v70 = vld [vmem:[#allocation4 + $0x10] sm:$0xff]
    %v71 = vld [vmem:[#allocation4 + $0x18] sm:$0xff]
    %v72 = vld [vmem:[#allocation4 + $0x20] sm:$0xff]
    %v73 = vld [vmem:[#allocation4 + $0x28] sm:$0xff]
    %v74 = vld [vmem:[#allocation4 + $0x30] sm:$0xff]
    %v75 = vld [vmem:[#allocation4 + $0x38] sm:$0xff]
    %v76 = vpack.c.bf16 %v69, %v68
    %v77 = vpack.c.bf16 %v71, %v70
    %v78 = vpack.c.bf16 %v73, %v72
    %v79 = vpack.c.bf16 %v75, %v74
    %v80 = vld [vmem:[#allocation7] sm:$0xff]
    %v81 = vld [vmem:[#allocation7 + $0x8] sm:$0xf]
    %v82 = vld [vmem:[#allocation7 + $0xc] sm:$0xff]
    %v83 = vld [vmem:[#allocation7 + $0x14] sm:$0xf]
    %v84 = vld [vmem:[%s2] sm:$0x7]
    %v86 = vlaneseq
    %v87 = vshrl.u32 %v86, 7
    %v88 = vsub.s32 0, %v87
    %v89 = vrot.slane %v84, %v88
    %v90 = vlaneseq
    %v91 = vshrl.u32 %v90, 7
    %v92 = vsub.s32 1, %v91
    %v93 = vrot.slane %v84, %v92
    %v94 = vlaneseq
    %v95 = vshrl.u32 %v94, 7
    %v96 = vsub.s32 2, %v95
    %v97 = vrot.slane %v84, %v96
    %v105 = vunpack.c.l.b16 %v80
    %v106 = vunpack.c.h.b16 %v80
    %v107 = vunpack.c.l.b16 %v81
    %v108 = vunpack.c.l.b16 %v82
    %v109 = vunpack.c.h.b16 %v82
    %v110 = vunpack.c.l.b16 %v83
    %v111 = vpack.c.b16 %v108, %v105
    %v112 = vpack.c.b16 %v109, %v106
    %v113 = vpack.c.b16 %v110, %v107
    %vm117 = vcmask 130048
    %v119 = vsel %vm117, %v76, 0
    %v122 = vsel %vm117, %v77, 0
    %v125 = vsel %vm117, %v78, 0
    %v128 = vsel %vm117, %v79, 0
    %130 = vmatprep.subr.bf16.mxu0 %v112
    %131 = vmatpush1.bf16.msra.mxu0 %v111
    %132 = vmatprep.subr.bf16.mxu0 0
    %133 = vmatpush1.bf16.msra.mxu0 0
    %134 = vmatprep.subr.bf16.mxu0 0
    %135 = vmatpush1.bf16.msra.mxu0 0
    %136 = vmatprep.subr.bf16.mxu0 0
    %137 = vmatpush1.bf16.msra.mxu0 0
    %138 = vmatprep.subr.bf16.mxu0 0
    %139 = vmatpush1.bf16.msra.mxu0 0
    %140 = vmatprep.subr.bf16.mxu0 0
    %141 = vmatpush1.bf16.msra.mxu0 0
    %142 = vmatprep.subr.bf16.mxu0 0
    %143 = vmatpush1.bf16.msra.mxu0 0
    %144 = vmatprep.subr.bf16.mxu0 0
    %145 = vmatpush1.bf16.msra.mxu0 0
    %146 = vmatprep.subr.bf16.mxu0 0
    %147 = vmatpush1.bf16.msra.mxu0 0
    %148 = vmatprep.subr.bf16.mxu0 0
    %149 = vmatpush1.bf16.msra.mxu0 0
    %150 = vmatprep.subr.bf16.mxu0 0
    %151 = vmatpush1.bf16.msra.mxu0 0
    %152 = vmatprep.subr.bf16.mxu0 0
    %153 = vmatpush1.bf16.msra.mxu0 0
    %154 = vmatprep.subr.bf16.mxu0 0
    %155 = vmatpush1.bf16.msra.mxu0 0
    %156 = vmatprep.subr.bf16.mxu0 0
    %157 = vmatpush1.bf16.msra.mxu0 0
    %158 = vmatprep.subr.bf16.mxu0 0
    %159 = vmatpush1.bf16.msra.mxu0 0
    %160 = vmatprep.subr.bf16.mxu0 0
    %161 = vmatpush1.bf16.msra.mxu0 0
    %162 = vmatprep.mubr.bf16.mxu0 0
    %163 = vmatmul.mubr.bf16.gmra.mrb[0].mxu0 %v119
    %v164 = vpop.f32.mrb[0].mxu0
    %v165 = vadd.f32 %v89, %v164
    %v166 = vpop.f32.mrb[0].mxu0
    %v167 = vadd.f32 %v93, %v166
    %v168 = vpop.f32.mrb[0].mxu0
    %v169 = vadd.f32 %v89, %v168
    %v170 = vpop.f32.mrb[0].mxu0
    %v171 = vadd.f32 %v93, %v170
    %172 = vmatprep.mubr.bf16.mxu0 0
    %173 = vmatmul.mubr.bf16.gmra.mrb[0].mxu0 %v122
    %v174 = vpop.f32.mrb[0].mxu0
    %v175 = vadd.f32 %v89, %v174
    %v176 = vpop.f32.mrb[0].mxu0
    %v177 = vadd.f32 %v93, %v176
    %v178 = vpop.f32.mrb[0].mxu0
    %v179 = vadd.f32 %v89, %v178
    %v180 = vpop.f32.mrb[0].mxu0
    %v181 = vadd.f32 %v93, %v180
    %182 = vmatprep.mubr.bf16.mxu0 0
    %183 = vmatmul.mubr.bf16.gmra.mrb[0].mxu0 %v125
    %v184 = vpop.f32.mrb[0].mxu0
    %v185 = vadd.f32 %v89, %v184
    %v186 = vpop.f32.mrb[0].mxu0
    %v187 = vadd.f32 %v93, %v186
    %v188 = vpop.f32.mrb[0].mxu0
    %v189 = vadd.f32 %v89, %v188
    %v190 = vpop.f32.mrb[0].mxu0
    %v191 = vadd.f32 %v93, %v190
    %192 = vmatprep.mubr.bf16.mxu0 0
    %193 = vmatmul.mubr.bf16.gmra.mrb[0].mxu0 %v128
    %v194 = vpop.f32.mrb[0].mxu0
    %v195 = vadd.f32 %v89, %v194
    %v196 = vpop.f32.mrb[0].mxu0
    %v197 = vadd.f32 %v93, %v196
    %v198 = vpop.f32.mrb[0].mxu0
    %v199 = vadd.f32 %v89, %v198
    %v200 = vpop.f32.mrb[0].mxu0
    %v201 = vadd.f32 %v93, %v200
    %202 = vdwg.mxu0
    %203 = vmatprep.subr.bf16.mxu0 0
    %204 = vmatpush1.bf16.msra.mxu0 %v113
    %205 = vmatprep.subr.bf16.mxu0 0
    %206 = vmatpush1.bf16.msra.mxu0 0
    %207 = vmatprep.subr.bf16.mxu0 0
    %208 = vmatpush1.bf16.msra.mxu0 0
    %209 = vmatprep.subr.bf16.mxu0 0
    %210 = vmatpush1.bf16.msra.mxu0 0
    %211 = vmatprep.subr.bf16.mxu0 0
    %212 = vmatpush1.bf16.msra.mxu0 0
    %213 = vmatprep.subr.bf16.mxu0 0
    %214 = vmatpush1.bf16.msra.mxu0 0
    %215 = vmatprep.subr.bf16.mxu0 0
    %216 = vmatpush1.bf16.msra.mxu0 0
    %217 = vmatprep.subr.bf16.mxu0 0
    %218 = vmatpush1.bf16.msra.mxu0 0
    %219 = vmatprep.subr.bf16.mxu0 0
    %220 = vmatpush1.bf16.msra.mxu0 0
    %221 = vmatprep.subr.bf16.mxu0 0
    %222 = vmatpush1.bf16.msra.mxu0 0
    %223 = vmatprep.subr.bf16.mxu0 0
    %224 = vmatpush1.bf16.msra.mxu0 0
    %225 = vmatprep.subr.bf16.mxu0 0
    %226 = vmatpush1.bf16.msra.mxu0 0
    %227 = vmatprep.subr.bf16.mxu0 0
    %228 = vmatpush1.bf16.msra.mxu0 0
    %229 = vmatprep.subr.bf16.mxu0 0
    %230 = vmatpush1.bf16.msra.mxu0 0
    %231 = vmatprep.subr.bf16.mxu0 0
    %232 = vmatpush1.bf16.msra.mxu0 0
    %233 = vmatprep.subr.bf16.mxu0 0
    %234 = vmatpush1.bf16.msra.mxu0 0
    %235 = vmatprep.mubr.bf16.mxu0 0
    %236 = vmatmul.mubr.bf16.gmra.mrb[0].mxu0 %v119
    %v237 = vpop.f32.mrb[0].mxu0
    %v238 = vadd.f32 %v97, %v237
    %v239 = vpop.f32.mrb[0].mxu0
    %v240 = vpop.f32.mrb[0].mxu0
    %v241 = vadd.f32 %v97, %v240
    %v242 = vpop.f32.mrb[0].mxu0
    %243 = vmatprep.mubr.bf16.mxu0 0
    %244 = vmatmul.mubr.bf16.gmra.mrb[0].mxu0 %v122
    %v245 = vpop.f32.mrb[0].mxu0
    %v246 = vadd.f32 %v97, %v245
    %v247 = vpop.f32.mrb[0].mxu0
    %v248 = vpop.f32.mrb[0].mxu0
    %v249 = vadd.f32 %v97, %v248
    %v250 = vpop.f32.mrb[0].mxu0
    %251 = vmatprep.mubr.bf16.mxu0 0
    %252 = vmatmul.mubr.bf16.gmra.mrb[0].mxu0 %v125
    %v253 = vpop.f32.mrb[0].mxu0
    %v254 = vadd.f32 %v97, %v253
    %v255 = vpop.f32.mrb[0].mxu0
    %v256 = vpop.f32.mrb[0].mxu0
    %v257 = vadd.f32 %v97, %v256
    %v258 = vpop.f32.mrb[0].mxu0
    %259 = vmatprep.mubr.bf16.mxu0 0
    %260 = vmatmul.mubr.bf16.gmra.mrb[0].mxu0 %v128
    %v261 = vpop.f32.mrb[0].mxu0
    %v262 = vadd.f32 %v97, %v261
    %v263 = vpop.f32.mrb[0].mxu0
    %v264 = vpop.f32.mrb[0].mxu0
    %v265 = vadd.f32 %v97, %v264
    %v266 = vpop.f32.mrb[0].mxu0
    %267 = vdwg.mxu0
    %268 = vst [vmem:[#allocation3] sm:$0xff] %v165
    %269 = vst [vmem:[#allocation3 + $0x8] sm:$0xff] %v167
    %270 = vst [vmem:[#allocation3 + $0x10] sm:$0xff] %v238
    %271 = vst [vmem:[#allocation3 + $0x18] sm:$0xff] %v169
    %272 = vst [vmem:[#allocation3 + $0x20] sm:$0xff] %v171
    %273 = vst [vmem:[#allocation3 + $0x28] sm:$0xff] %v241
    %274 = vst [vmem:[#allocation3 + $0x30] sm:$0xff] %v175
    %275 = vst [vmem:[#allocation3 + $0x38] sm:$0xff] %v177
    %276 = vst [vmem:[#allocation3 + $0x40] sm:$0xff] %v246
    %277 = vst [vmem:[#allocation3 + $0x48] sm:$0xff] %v179
    %278 = vst [vmem:[#allocation3 + $0x50] sm:$0xff] %v181
    %279 = vst [vmem:[#allocation3 + $0x58] sm:$0xff] %v249
    %280 = vst [vmem:[#allocation3 + $0x60] sm:$0xff] %v185
    %281 = vst [vmem:[#allocation3 + $0x68] sm:$0xff] %v187
    %282 = vst [vmem:[#allocation3 + $0x70] sm:$0xff] %v254
    %283 = vst [vmem:[#allocation3 + $0x78] sm:$0xff] %v189
    %284 = vst [vmem:[#allocation3 + $0x80] sm:$0xff] %v191
    %285 = vst [vmem:[#allocation3 + $0x88] sm:$0xff] %v257
    %286 = vst [vmem:[#allocation3 + $0x90] sm:$0xff] %v195
    %287 = vst [vmem:[#allocation3 + $0x98] sm:$0xff] %v197
    %288 = vst [vmem:[#allocation3 + $0xa0] sm:$0xff] %v262
    %289 = vst [vmem:[#allocation3 + $0xa8] sm:$0xff] %v199
    %290 = vst [vmem:[#allocation3 + $0xb0] sm:$0xff] %v201
    %291 = vst [vmem:[#allocation3 + $0xb8] sm:$0xff] %v265
    %v292 = vld [vmem:[#allocation9] sm:$0xff]
    %v293 = vld [vmem:[#allocation9 + $0x8] sm:$0xf]
    %v294 = vld [vmem:[#allocation9 + $0xc] sm:$0xff]
    %v295 = vld [vmem:[#allocation9 + $0x14] sm:$0xf]
    %v296 = vld [vmem:[#allocation9 + $0x18] sm:$0xff]
    %v297 = vld [vmem:[#allocation9 + $0x20] sm:$0xf]
    %v298 = vld [vmem:[#allocation9 + $0x24] sm:$0xff]
    %v299 = vld [vmem:[#allocation9 + $0x2c] sm:$0xf]
    %v300 = vld [vmem:[#allocation9 + $0x30] sm:$0xff]
    %v301 = vld [vmem:[#allocation9 + $0x38] sm:$0xf]
    %v302 = vld [vmem:[#allocation9 + $0x3c] sm:$0xff]
    %v303 = vld [vmem:[#allocation9 + $0x44] sm:$0xf]
    %v304 = vld [vmem:[#allocation9 + $0x48] sm:$0xff]
    %v305 = vld [vmem:[#allocation9 + $0x50] sm:$0xf]
    %v306 = vld [vmem:[#allocation9 + $0x54] sm:$0xff]
    %v307 = vld [vmem:[#allocation9 + $0x5c] sm:$0xf]
    %v308 = vld [vmem:[#allocation9 + $0x60] sm:$0xff]
    %v309 = vld [vmem:[#allocation9 + $0x68] sm:$0xf]
    %v310 = vld [vmem:[#allocation9 + $0x6c] sm:$0xff]
    %v311 = vld [vmem:[#allocation9 + $0x74] sm:$0xf]
    %v312 = vld [vmem:[#allocation9 + $0x78] sm:$0xff]
    %v313 = vld [vmem:[#allocation9 + $0x80] sm:$0xf]
    %v314 = vld [vmem:[#allocation9 + $0x84] sm:$0xff]
    %v315 = vld [vmem:[#allocation9 + $0x8c] sm:$0xf]
    %v316 = vld [vmem:[#allocation9 + $0x90] sm:$0xff]
    %v317 = vld [vmem:[#allocation9 + $0x98] sm:$0xf]
    %v318 = vld [vmem:[#allocation9 + $0x9c] sm:$0xff]
    %v319 = vld [vmem:[#allocation9 + $0xa4] sm:$0xf]
    %v320 = vld [vmem:[#allocation9 + $0xa8] sm:$0xff]
    %v321 = vld [vmem:[#allocation9 + $0xb0] sm:$0xf]
    %v322 = vld [vmem:[#allocation9 + $0xb4] sm:$0xff]
    %v323 = vld [vmem:[#allocation9 + $0xbc] sm:$0xf]
    %v324 = vld [vmem:[%s4] sm:$0x1]
    %v326 = vlaneseq
    %v327 = vshrl.u32 %v326, 7
    %v328 = vsub.s32 0, %v327
    %v329 = vrot.slane %v324, %v328
    %v331 = vld [vmem:[#allocation2] sm:$0xff]
    %v332 = vld [vmem:[#allocation3] sm:$0xff]
    %v333 = vld [vmem:[#allocation3 + $0x8] sm:$0xff]
    %v334 = vld [vmem:[#allocation3 + $0x10] sm:$0xff]
    %v335 = vpack.c.bf16 %v331, %v331
    %v368 = vunpack.c.l.b16 %v292
    %v369 = vunpack.c.h.b16 %v292
    %v370 = vunpack.c.l.b16 %v293
    %v371 = vunpack.c.l.b16 %v294
    %v372 = vunpack.c.h.b16 %v294
    %v373 = vunpack.c.l.b16 %v295
    %v374 = vunpack.c.l.b16 %v296
    %v375 = vunpack.c.h.b16 %v296
    %v376 = vunpack.c.l.b16 %v297
    %v377 = vunpack.c.l.b16 %v298
    %v378 = vunpack.c.h.b16 %v298
    %v379 = vunpack.c.l.b16 %v299
    %v380 = vunpack.c.l.b16 %v300
    %v381 = vunpack.c.h.b16 %v300
    %v382 = vunpack.c.l.b16 %v301
    %v383 = vunpack.c.l.b16 %v302
    %v384 = vunpack.c.h.b16 %v302
    %v385 = vunpack.c.l.b16 %v303
    %v386 = vunpack.c.l.b16 %v304
    %v387 = vunpack.c.h.b16 %v304
    %v388 = vunpack.c.l.b16 %v305
    %v389 = vunpack.c.l.b16 %v306
    %v390 = vunpack.c.h.b16 %v306
    %v391 = vunpack.c.l.b16 %v307
    %v392 = vunpack.c.l.b16 %v308
    %v393 = vunpack.c.h.b16 %v308
    %v394 = vunpack.c.l.b16 %v309
    %v395 = vunpack.c.l.b16 %v310
    %v396 = vunpack.c.h.b16 %v310
    %v397 = vunpack.c.l.b16 %v311
    %v398 = vunpack.c.l.b16 %v312
    %v399 = vunpack.c.h.b16 %v312
    %v400 = vunpack.c.l.b16 %v313
    %v401 = vunpack.c.l.b16 %v314
    %v402 = vunpack.c.h.b16 %v314
    %v403 = vunpack.c.l.b16 %v315
    %v404 = vunpack.c.l.b16 %v316
    %v405 = vunpack.c.h.b16 %v316
    %v406 = vunpack.c.l.b16 %v317
    %v407 = vunpack.c.l.b16 %v318
    %v408 = vunpack.c.h.b16 %v318
    %v409 = vunpack.c.l.b16 %v319
    %v410 = vunpack.c.l.b16 %v320
    %v411 = vunpack.c.h.b16 %v320
    %v412 = vunpack.c.l.b16 %v321
    %v413 = vunpack.c.l.b16 %v322
    %v414 = vunpack.c.h.b16 %v322
    %v415 = vunpack.c.l.b16 %v323
    %v416 = vpack.c.b16 %v371, %v368
    %v417 = vpack.c.b16 %v372, %v369
    %v418 = vpack.c.b16 %v373, %v370
    %v419 = vpack.c.b16 %v377, %v374
    %v420 = vpack.c.b16 %v378, %v375
    %v421 = vpack.c.b16 %v379, %v376
    %v422 = vpack.c.b16 %v383, %v380
    %v423 = vpack.c.b16 %v384, %v381
    %v424 = vpack.c.b16 %v385, %v382
    %v425 = vpack.c.b16 %v389, %v386
    %v426 = vpack.c.b16 %v390, %v387
    %v427 = vpack.c.b16 %v391, %v388
    %v428 = vpack.c.b16 %v395, %v392
    %v429 = vpack.c.b16 %v396, %v393
    %v430 = vpack.c.b16 %v397, %v394
    %v431 = vpack.c.b16 %v401, %v398
    %v432 = vpack.c.b16 %v402, %v399
    %v433 = vpack.c.b16 %v403, %v400
    %v434 = vpack.c.b16 %v407, %v404
    %v435 = vpack.c.b16 %v408, %v405
    %v436 = vpack.c.b16 %v409, %v406
    %v437 = vpack.c.b16 %v413, %v410
    %v438 = vpack.c.b16 %v414, %v411
    %v439 = vpack.c.b16 %v415, %v412
    %464 = vmatprep.subr.bf16.mxu0 %v417
    %465 = vmatpush1.bf16.msra.mxu0 %v416
    %466 = vmatprep.subr.bf16.mxu0 %v420
    %467 = vmatpush1.bf16.msra.mxu0 %v419
    %468 = vmatprep.subr.bf16.mxu0 %v423
    %469 = vmatpush1.bf16.msra.mxu0 %v422
    %470 = vmatprep.subr.bf16.mxu0 %v426
    %471 = vmatpush1.bf16.msra.mxu0 %v425
    %472 = vmatprep.subr.bf16.mxu0 %v429
    %473 = vmatpush1.bf16.msra.mxu0 %v428
    %474 = vmatprep.subr.bf16.mxu0 %v432
    %475 = vmatpush1.bf16.msra.mxu0 %v431
    %476 = vmatprep.subr.bf16.mxu0 %v435
    %477 = vmatpush1.bf16.msra.mxu0 %v434
    %478 = vmatprep.subr.bf16.mxu0 %v438
    %479 = vmatpush1.bf16.msra.mxu0 %v437
    %480 = vmatprep.subr.bf16.mxu0 0
    %481 = vmatpush1.bf16.msra.mxu0 0
    %482 = vmatprep.subr.bf16.mxu0 0
    %483 = vmatpush1.bf16.msra.mxu0 0
    %484 = vmatprep.subr.bf16.mxu0 0
    %485 = vmatpush1.bf16.msra.mxu0 0
    %486 = vmatprep.subr.bf16.mxu0 0
    %487 = vmatpush1.bf16.msra.mxu0 0
    %488 = vmatprep.subr.bf16.mxu0 0
    %489 = vmatpush1.bf16.msra.mxu0 0
    %490 = vmatprep.subr.bf16.mxu0 0
    %491 = vmatpush1.bf16.msra.mxu0 0
    %492 = vmatprep.subr.bf16.mxu0 0
    %493 = vmatpush1.bf16.msra.mxu0 0
    %494 = vmatprep.subr.bf16.mxu0 0
    %495 = vmatpush1.bf16.msra.mxu0 0
    %496 = vmatprep.mubr.bf16.mxu0 0
    %497 = vmatmul.mubr.bf16.gmra.mrb[0].mxu0 %v335
    %v498 = vpop.f32.mrb[0].mxu0
    %v499 = vadd.f32 0.0, %v498
    %v500 = vpop.f32.mrb[0].mxu0
    %v501 = vadd.f32 0.0, %v500
    %v502 = vpop.f32.mrb[0].mxu0
    %v503 = vpop.f32.mrb[0].mxu0
    %504 = vdwg.mxu0
    %505 = vmatprep.subr.bf16.mxu0 0
    %506 = vmatpush1.bf16.msra.mxu0 %v418
    %507 = vmatprep.subr.bf16.mxu0 0
    %508 = vmatpush1.bf16.msra.mxu0 %v421
    %509 = vmatprep.subr.bf16.mxu0 0
    %510 = vmatpush1.bf16.msra.mxu0 %v424
    %511 = vmatprep.subr.bf16.mxu0 0
    %512 = vmatpush1.bf16.msra.mxu0 %v427
    %513 = vmatprep.subr.bf16.mxu0 0
    %514 = vmatpush1.bf16.msra.mxu0 %v430
    %515 = vmatprep.subr.bf16.mxu0 0
    %516 = vmatpush1.bf16.msra.mxu0 %v433
    %517 = vmatprep.subr.bf16.mxu0 0
    %518 = vmatpush1.bf16.msra.mxu0 %v436
    %519 = vmatprep.subr.bf16.mxu0 0
    %520 = vmatpush1.bf16.msra.mxu0 %v439
    %521 = vmatprep.subr.bf16.mxu0 0
    %522 = vmatpush1.bf16.msra.mxu0 0
    %523 = vmatprep.subr.bf16.mxu0 0
    %524 = vmatpush1.bf16.msra.mxu0 0
    %525 = vmatprep.subr.bf16.mxu0 0
    %526 = vmatpush1.bf16.msra.mxu0 0
    %527 = vmatprep.subr.bf16.mxu0 0
    %528 = vmatpush1.bf16.msra.mxu0 0
    %529 = vmatprep.subr.bf16.mxu0 0
    %530 = vmatpush1.bf16.msra.mxu0 0
    %531 = vmatprep.subr.bf16.mxu0 0
    %532 = vmatpush1.bf16.msra.mxu0 0
    %533 = vmatprep.subr.bf16.mxu0 0
    %534 = vmatpush1.bf16.msra.mxu0 0
    %535 = vmatprep.subr.bf16.mxu0 0
    %536 = vmatpush1.bf16.msra.mxu0 0
    %537 = vmatprep.mubr.bf16.mxu0 0
    %538 = vmatmul.mubr.bf16.gmra.mrb[0].mxu0 %v335
    %v539 = vpop.f32.mrb[0].mxu0
    %v540 = vadd.f32 0.0, %v539
    %v541 = vpop.f32.mrb[0].mxu0
    %v542 = vpop.f32.mrb[0].mxu0
    %v543 = vpop.f32.mrb[0].mxu0
    %544 = vdwg.mxu0
    %v545 = vadd.f32 %v332, %v499
    %v546 = vxor.u32 %v545, 2147483648
    %v547 = vmul.f32 %v546, 1.442695
    %v548 = vpow.pop %v547
    %v549 = vadd.f32 %v548, 1.0
    %v550 = vrcp.pop %v549
    %v551 = vmul.f32 1.0, %v550
    %v552 = vadd.f32 %v333, %v501
    %v553 = vxor.u32 %v552, 2147483648
    %v554 = vmul.f32 %v553, 1.442695
    %v555 = vpow.pop %v554
    %v556 = vadd.f32 %v555, 1.0
    %v557 = vrcp.pop %v556
    %v558 = vmul.f32 1.0, %v557
    %v559 = vadd.f32 %v540, %v329
    %v560 = vmul.f32 %v551, %v559
    %v561 = vadd.f32 %v334, %v560
    %v562 = vtanh.pop %v561
    %v563 = vsub.f32 1.0, %v558
    %v564 = vmul.f32 %v563, %v562
    %v565 = vmul.f32 %v558, %v331
    %v566 = vadd.f32 %v564, %v565
    %s567 = scalar_lea.vmem [#allocation3], 24
    %v568 = vld [vmem:[%s567] sm:$0xff]
    %v569 = vld [vmem:[%s567 + $0x8] sm:$0xff]
    %v570 = vld [vmem:[%s567 + $0x10] sm:$0xff]
    %v571 = vpack.c.bf16 %v566, %v566
    %572 = vmatprep.subr.bf16.mxu0 %v417
    %573 = vmatpush1.bf16.msra.mxu0 %v416
    %574 = vmatprep.subr.bf16.mxu0 %v420
    %575 = vmatpush1.bf16.msra.mxu0 %v419
    %576 = vmatprep.subr.bf16.mxu0 %v423
    %577 = vmatpush1.bf16.msra.mxu0 %v422
    %578 = vmatprep.subr.bf16.mxu0 %v426
    %579 = vmatpush1.bf16.msra.mxu0 %v425
    %580 = vmatprep.subr.bf16.mxu0 %v429
    %581 = vmatpush1.bf16.msra.mxu0 %v428
    %582 = vmatprep.subr.bf16.mxu0 %v432
    %583 = vmatpush1.bf16.msra.mxu0 %v431
    %584 = vmatprep.subr.bf16.mxu0 %v435
    %585 = vmatpush1.bf16.msra.mxu0 %v434
    %586 = vmatprep.subr.bf16.mxu0 %v438
    %587 = vmatpush1.bf16.msra.mxu0 %v437
    %588 = vmatprep.subr.bf16.mxu0 0
    %589 = vmatpush1.bf16.msra.mxu0 0
    %590 = vmatprep.subr.bf16.mxu0 0
    %591 = vmatpush1.bf16.msra.mxu0 0
    %592 = vmatprep.subr.bf16.mxu0 0
    %593 = vmatpush1.bf16.msra.mxu0 0
    %594 = vmatprep.subr.bf16.mxu0 0
    %595 = vmatpush1.bf16.msra.mxu0 0
    %596 = vmatprep.subr.bf16.mxu0 0
    %597 = vmatpush1.bf16.msra.mxu0 0
    %598 = vmatprep.subr.bf16.mxu0 0
    %599 = vmatpush1.bf16.msra.mxu0 0
    %600 = vmatprep.subr.bf16.mxu0 0
    %601 = vmatpush1.bf16.msra.mxu0 0
    %602 = vmatprep.subr.bf16.mxu0 0
    %603 = vmatpush1.bf16.msra.mxu0 0
    %604 = vmatprep.mubr.bf16.mxu0 0
    %605 = vmatmul.mubr.bf16.gmra.mrb[0].mxu0 %v571
    %v606 = vpop.f32.mrb[0].mxu0
    %v607 = vadd.f32 0.0, %v606
    %v608 = vpop.f32.mrb[0].mxu0
    %v609 = vadd.f32 0.0, %v608
    %v610 = vpop.f32.mrb[0].mxu0
    %v611 = vpop.f32.mrb[0].mxu0
    %612 = vdwg.mxu0
    %613 = vmatprep.subr.bf16.mxu0 0
    %614 = vmatpush1.bf16.msra.mxu0 %v418
    %615 = vmatprep.subr.bf16.mxu0 0
    %616 = vmatpush1.bf16.msra.mxu0 %v421
    %617 = vmatprep.subr.bf16.mxu0 0
    %618 = vmatpush1.bf16.msra.mxu0 %v424
    %619 = vmatprep.subr.bf16.mxu0 0
    %620 = vmatpush1.bf16.msra.mxu0 %v427
    %621 = vmatprep.subr.bf16.mxu0 0
    %622 = vmatpush1.bf16.msra.mxu0 %v430
    %623 = vmatprep.subr.bf16.mxu0 0
    %624 = vmatpush1.bf16.msra.mxu0 %v433
    %625 = vmatprep.subr.bf16.mxu0 0
    %626 = vmatpush1.bf16.msra.mxu0 %v436
    %627 = vmatprep.subr.bf16.mxu0 0
    %628 = vmatpush1.bf16.msra.mxu0 %v439
    %629 = vmatprep.subr.bf16.mxu0 0
    %630 = vmatpush1.bf16.msra.mxu0 0
    %631 = vmatprep.subr.bf16.mxu0 0
    %632 = vmatpush1.bf16.msra.mxu0 0
    %633 = vmatprep.subr.bf16.mxu0 0
    %634 = vmatpush1.bf16.msra.mxu0 0
    %635 = vmatprep.subr.bf16.mxu0 0
    %636 = vmatpush1.bf16.msra.mxu0 0
    %637 = vmatprep.subr.bf16.mxu0 0
    %638 = vmatpush1.bf16.msra.mxu0 0
    %639 = vmatprep.subr.bf16.mxu0 0
    %640 = vmatpush1.bf16.msra.mxu0 0
    %641 = vmatprep.subr.bf16.mxu0 0
    %642 = vmatpush1.bf16.msra.mxu0 0
    %643 = vmatprep.subr.bf16.mxu0 0
    %644 = vmatpush1.bf16.msra.mxu0 0
    %645 = vmatprep.mubr.bf16.mxu0 0
    %646 = vmatmul.mubr.bf16.gmra.mrb[0].mxu0 %v571
    %v647 = vpop.f32.mrb[0].mxu0
    %v648 = vadd.f32 0.0, %v647
    %v649 = vpop.f32.mrb[0].mxu0
    %v650 = vpop.f32.mrb[0].mxu0
    %v651 = vpop.f32.mrb[0].mxu0
    %652 = vdwg.mxu0
    %v653 = vadd.f32 %v568, %v607
    %v654 = vxor.u32 %v653, 2147483648
    %v655 = vmul.f32 %v654, 1.442695
    %v656 = vpow.pop %v655
    %v657 = vadd.f32 %v656, 1.0
    %v658 = vrcp.pop %v657
    %v659 = vmul.f32 1.0, %v658
    %v660 = vadd.f32 %v569, %v609
    %v661 = vxor.u32 %v660, 2147483648
    %v662 = vmul.f32 %v661, 1.442695
    %v663 = vpow.pop %v662
    %v664 = vadd.f32 %v663, 1.0
    %v665 = vrcp.pop %v664
    %v666 = vmul.f32 1.0, %v665
    %v667 = vadd.f32 %v648, %v329
    %v668 = vmul.f32 %v659, %v667
    %v669 = vadd.f32 %v570, %v668
    %v670 = vtanh.pop %v669
    %v671 = vsub.f32 1.0, %v666
    %v672 = vmul.f32 %v671, %v670
    %v673 = vmul.f32 %v666, %v566
    %v674 = vadd.f32 %v672, %v673
    %s675 = scalar_lea.vmem [#allocation3], 48
    %v676 = vld [vmem:[%s675] sm:$0xff]
    %v677 = vld [vmem:[%s675 + $0x8] sm:$0xff]
    %v678 = vld [vmem:[%s675 + $0x10] sm:$0xff]
    %v679 = vpack.c.bf16 %v674, %v674
    %680 = vmatprep.subr.bf16.mxu0 %v417
    %681 = vmatpush1.bf16.msra.mxu0 %v416
    %682 = vmatprep.subr.bf16.mxu0 %v420
    %683 = vmatpush1.bf16.msra.mxu0 %v419
    %684 = vmatprep.subr.bf16.mxu0 %v423
    %685 = vmatpush1.bf16.msra.mxu0 %v422
    %686 = vmatprep.subr.bf16.mxu0 %v426
    %687 = vmatpush1.bf16.msra.mxu0 %v425
    %688 = vmatprep.subr.bf16.mxu0 %v429
    %689 = vmatpush1.bf16.msra.mxu0 %v428
    %690 = vmatprep.subr.bf16.mxu0 %v432
    %691 = vmatpush1.bf16.msra.mxu0 %v431
    %692 = vmatprep.subr.bf16.mxu0 %v435
    %693 = vmatpush1.bf16.msra.mxu0 %v434
    %694 = vmatprep.subr.bf16.mxu0 %v438
    %695 = vmatpush1.bf16.msra.mxu0 %v437
    %696 = vmatprep.subr.bf16.mxu0 0
    %697 = vmatpush1.bf16.msra.mxu0 0
    %698 = vmatprep.subr.bf16.mxu0 0
    %699 = vmatpush1.bf16.msra.mxu0 0
    %700 = vmatprep.subr.bf16.mxu0 0
    %701 = vmatpush1.bf16.msra.mxu0 0
    %702 = vmatprep.subr.bf16.mxu0 0
    %703 = vmatpush1.bf16.msra.mxu0 0
    %704 = vmatprep.subr.bf16.mxu0 0
    %705 = vmatpush1.bf16.msra.mxu0 0
    %706 = vmatprep.subr.bf16.mxu0 0
    %707 = vmatpush1.bf16.msra.mxu0 0
    %708 = vmatprep.subr.bf16.mxu0 0
    %709 = vmatpush1.bf16.msra.mxu0 0
    %710 = vmatprep.subr.bf16.mxu0 0
    %711 = vmatpush1.bf16.msra.mxu0 0
    %712 = vmatprep.mubr.bf16.mxu0 0
    %713 = vmatmul.mubr.bf16.gmra.mrb[0].mxu0 %v679
    %v714 = vpop.f32.mrb[0].mxu0
    %v715 = vadd.f32 0.0, %v714
    %v716 = vpop.f32.mrb[0].mxu0
    %v717 = vadd.f32 0.0, %v716
    %v718 = vpop.f32.mrb[0].mxu0
    %v719 = vpop.f32.mrb[0].mxu0
    %720 = vdwg.mxu0
    %721 = vmatprep.subr.bf16.mxu0 0
    %722 = vmatpush1.bf16.msra.mxu0 %v418
    %723 = vmatprep.subr.bf16.mxu0 0
    %724 = vmatpush1.bf16.msra.mxu0 %v421
    %725 = vmatprep.subr.bf16.mxu0 0
    %726 = vmatpush1.bf16.msra.mxu0 %v424
    %727 = vmatprep.subr.bf16.mxu0 0
    %728 = vmatpush1.bf16.msra.mxu0 %v427
    %729 = vmatprep.subr.bf16.mxu0 0
    %730 = vmatpush1.bf16.msra.mxu0 %v430
    %731 = vmatprep.subr.bf16.mxu0 0
    %732 = vmatpush1.bf16.msra.mxu0 %v433
    %733 = vmatprep.subr.bf16.mxu0 0
    %734 = vmatpush1.bf16.msra.mxu0 %v436
    %735 = vmatprep.subr.bf16.mxu0 0
    %736 = vmatpush1.bf16.msra.mxu0 %v439
    %737 = vmatprep.subr.bf16.mxu0 0
    %738 = vmatpush1.bf16.msra.mxu0 0
    %739 = vmatprep.subr.bf16.mxu0 0
    %740 = vmatpush1.bf16.msra.mxu0 0
    %741 = vmatprep.subr.bf16.mxu0 0
    %742 = vmatpush1.bf16.msra.mxu0 0
    %743 = vmatprep.subr.bf16.mxu0 0
    %744 = vmatpush1.bf16.msra.mxu0 0
    %745 = vmatprep.subr.bf16.mxu0 0
    %746 = vmatpush1.bf16.msra.mxu0 0
    %747 = vmatprep.subr.bf16.mxu0 0
    %748 = vmatpush1.bf16.msra.mxu0 0
    %749 = vmatprep.subr.bf16.mxu0 0
    %750 = vmatpush1.bf16.msra.mxu0 0
    %751 = vmatprep.subr.bf16.mxu0 0
    %752 = vmatpush1.bf16.msra.mxu0 0
    %753 = vmatprep.mubr.bf16.mxu0 0
    %754 = vmatmul.mubr.bf16.gmra.mrb[0].mxu0 %v679
    %v755 = vpop.f32.mrb[0].mxu0
    %v756 = vadd.f32 0.0, %v755
    %v757 = vpop.f32.mrb[0].mxu0
    %v758 = vpop.f32.mrb[0].mxu0
    %v759 = vpop.f32.mrb[0].mxu0
    %760 = vdwg.mxu0
    %v761 = vadd.f32 %v676, %v715
    %v762 = vxor.u32 %v761, 2147483648
    %v763 = vmul.f32 %v762, 1.442695
    %v764 = vpow.pop %v763
    %v765 = vadd.f32 %v764, 1.0
    %v766 = vrcp.pop %v765
    %v767 = vmul.f32 1.0, %v766
    %v768 = vadd.f32 %v677, %v717
    %v769 = vxor.u32 %v768, 2147483648
    %v770 = vmul.f32 %v769, 1.442695
    %v771 = vpow.pop %v770
    %v772 = vadd.f32 %v771, 1.0
    %v773 = vrcp.pop %v772
    %v774 = vmul.f32 1.0, %v773
    %v775 = vadd.f32 %v756, %v329
    %v776 = vmul.f32 %v767, %v775
    %v777 = vadd.f32 %v678, %v776
    %v778 = vtanh.pop %v777
    %v779 = vsub.f32 1.0, %v774
    %v780 = vmul.f32 %v779, %v778
    %v781 = vmul.f32 %v774, %v674
    %v782 = vadd.f32 %v780, %v781
    %s783 = scalar_lea.vmem [#allocation3], 72
    %v784 = vld [vmem:[%s783] sm:$0xff]
    %v785 = vld [vmem:[%s783 + $0x8] sm:$0xff]
    %v786 = vld [vmem:[%s783 + $0x10] sm:$0xff]
    %v787 = vpack.c.bf16 %v782, %v782
    %788 = vmatprep.subr.bf16.mxu0 %v417
    %789 = vmatpush1.bf16.msra.mxu0 %v416
    %790 = vmatprep.subr.bf16.mxu0 %v420
    %791 = vmatpush1.bf16.msra.mxu0 %v419
    %792 = vmatprep.subr.bf16.mxu0 %v423
    %793 = vmatpush1.bf16.msra.mxu0 %v422
    %794 = vmatprep.subr.bf16.mxu0 %v426
    %795 = vmatpush1.bf16.msra.mxu0 %v425
    %796 = vmatprep.subr.bf16.mxu0 %v429
    %797 = vmatpush1.bf16.msra.mxu0 %v428
    %798 = vmatprep.subr.bf16.mxu0 %v432
    %799 = vmatpush1.bf16.msra.mxu0 %v431
    %800 = vmatprep.subr.bf16.mxu0 %v435
    %801 = vmatpush1.bf16.msra.mxu0 %v434
    %802 = vmatprep.subr.bf16.mxu0 %v438
    %803 = vmatpush1.bf16.msra.mxu0 %v437
    %804 = vmatprep.subr.bf16.mxu0 0
    %805 = vmatpush1.bf16.msra.mxu0 0
    %806 = vmatprep.subr.bf16.mxu0 0
    %807 = vmatpush1.bf16.msra.mxu0 0
    %808 = vmatprep.subr.bf16.mxu0 0
    %809 = vmatpush1.bf16.msra.mxu0 0
    %810 = vmatprep.subr.bf16.mxu0 0
    %811 = vmatpush1.bf16.msra.mxu0 0
    %812 = vmatprep.subr.bf16.mxu0 0
    %813 = vmatpush1.bf16.msra.mxu0 0
    %814 = vmatprep.subr.bf16.mxu0 0
    %815 = vmatpush1.bf16.msra.mxu0 0
    %816 = vmatprep.subr.bf16.mxu0 0
    %817 = vmatpush1.bf16.msra.mxu0 0
    %818 = vmatprep.subr.bf16.mxu0 0
    %819 = vmatpush1.bf16.msra.mxu0 0
    %820 = vmatprep.mubr.bf16.mxu0 0
    %821 = vmatmul.mubr.bf16.gmra.mrb[0].mxu0 %v787
    %v822 = vpop.f32.mrb[0].mxu0
    %v823 = vadd.f32 0.0, %v822
    %v824 = vpop.f32.mrb[0].mxu0
    %v825 = vadd.f32 0.0, %v824
    %v826 = vpop.f32.mrb[0].mxu0
    %v827 = vpop.f32.mrb[0].mxu0
    %828 = vdwg.mxu0
    %829 = vmatprep.subr.bf16.mxu0 0
    %830 = vmatpush1.bf16.msra.mxu0 %v418
    %831 = vmatprep.subr.bf16.mxu0 0
    %832 = vmatpush1.bf16.msra.mxu0 %v421
    %833 = vmatprep.subr.bf16.mxu0 0
    %834 = vmatpush1.bf16.msra.mxu0 %v424
    %835 = vmatprep.subr.bf16.mxu0 0
    %836 = vmatpush1.bf16.msra.mxu0 %v427
    %837 = vmatprep.subr.bf16.mxu0 0
    %838 = vmatpush1.bf16.msra.mxu0 %v430
    %839 = vmatprep.subr.bf16.mxu0 0
    %840 = vmatpush1.bf16.msra.mxu0 %v433
    %841 = vmatprep.subr.bf16.mxu0 0
    %842 = vmatpush1.bf16.msra.mxu0 %v436
    %843 = vmatprep.subr.bf16.mxu0 0
    %844 = vmatpush1.bf16.msra.mxu0 %v439
    %845 = vmatprep.subr.bf16.mxu0 0
    %846 = vmatpush1.bf16.msra.mxu0 0
    %847 = vmatprep.subr.bf16.mxu0 0
    %848 = vmatpush1.bf16.msra.mxu0 0
    %849 = vmatprep.subr.bf16.mxu0 0
    %850 = vmatpush1.bf16.msra.mxu0 0
    %851 = vmatprep.subr.bf16.mxu0 0
    %852 = vmatpush1.bf16.msra.mxu0 0
    %853 = vmatprep.subr.bf16.mxu0 0
    %854 = vmatpush1.bf16.msra.mxu0 0
    %855 = vmatprep.subr.bf16.mxu0 0
    %856 = vmatpush1.bf16.msra.mxu0 0
    %857 = vmatprep.subr.bf16.mxu0 0
    %858 = vmatpush1.bf16.msra.mxu0 0
    %859 = vmatprep.subr.bf16.mxu0 0
    %860 = vmatpush1.bf16.msra.mxu0 0
    %861 = vmatprep.mubr.bf16.mxu0 0
    %862 = vmatmul.mubr.bf16.gmra.mrb[0].mxu0 %v787
    %v863 = vpop.f32.mrb[0].mxu0
    %v864 = vadd.f32 0.0, %v863
    %v865 = vpop.f32.mrb[0].mxu0
    %v866 = vpop.f32.mrb[0].mxu0
    %v867 = vpop.f32.mrb[0].mxu0
    %868 = vdwg.mxu0
    %v869 = vadd.f32 %v784, %v823
    %v870 = vxor.u32 %v869, 2147483648
    %v871 = vmul.f32 %v870, 1.442695
    %v872 = vpow.pop %v871
    %v873 = vadd.f32 %v872, 1.0
    %v874 = vrcp.pop %v873
    %v875 = vmul.f32 1.0, %v874
    %v876 = vadd.f32 %v785, %v825
    %v877 = vxor.u32 %v876, 2147483648
    %v878 = vmul.f32 %v877, 1.442695
    %v879 = vpow.pop %v878
    %v880 = vadd.f32 %v879, 1.0
    %v881 = vrcp.pop %v880
    %v882 = vmul.f32 1.0, %v881
    %v883 = vadd.f32 %v864, %v329
    %v884 = vmul.f32 %v875, %v883
    %v885 = vadd.f32 %v786, %v884
    %v886 = vtanh.pop %v885
    %v887 = vsub.f32 1.0, %v882
    %v888 = vmul.f32 %v887, %v886
    %v889 = vmul.f32 %v882, %v782
    %v890 = vadd.f32 %v888, %v889
    %s891 = scalar_lea.vmem [#allocation3], 96
    %v892 = vld [vmem:[%s891] sm:$0xff]
    %v893 = vld [vmem:[%s891 + $0x8] sm:$0xff]
    %v894 = vld [vmem:[%s891 + $0x10] sm:$0xff]
    %v895 = vpack.c.bf16 %v890, %v890
    %896 = vmatprep.subr.bf16.mxu0 %v417
    %897 = vmatpush1.bf16.msra.mxu0 %v416
    %898 = vmatprep.subr.bf16.mxu0 %v420
    %899 = vmatpush1.bf16.msra.mxu0 %v419
    %900 = vmatprep.subr.bf16.mxu0 %v423
    %901 = vmatpush1.bf16.msra.mxu0 %v422
    %902 = vmatprep.subr.bf16.mxu0 %v426
    %903 = vmatpush1.bf16.msra.mxu0 %v425
    %904 = vmatprep.subr.bf16.mxu0 %v429
    %905 = vmatpush1.bf16.msra.mxu0 %v428
    %906 = vmatprep.subr.bf16.mxu0 %v432
    %907 = vmatpush1.bf16.msra.mxu0 %v431
    %908 = vmatprep.subr.bf16.mxu0 %v435
    %909 = vmatpush1.bf16.msra.mxu0 %v434
    %910 = vmatprep.subr.bf16.mxu0 %v438
    %911 = vmatpush1.bf16.msra.mxu0 %v437
    %912 = vmatprep.subr.bf16.mxu0 0
    %913 = vmatpush1.bf16.msra.mxu0 0
    %914 = vmatprep.subr.bf16.mxu0 0
    %915 = vmatpush1.bf16.msra.mxu0 0
    %916 = vmatprep.subr.bf16.mxu0 0
    %917 = vmatpush1.bf16.msra.mxu0 0
    %918 = vmatprep.subr.bf16.mxu0 0
    %919 = vmatpush1.bf16.msra.mxu0 0
    %920 = vmatprep.subr.bf16.mxu0 0
    %921 = vmatpush1.bf16.msra.mxu0 0
    %922 = vmatprep.subr.bf16.mxu0 0
    %923 = vmatpush1.bf16.msra.mxu0 0
    %924 = vmatprep.subr.bf16.mxu0 0
    %925 = vmatpush1.bf16.msra.mxu0 0
    %926 = vmatprep.subr.bf16.mxu0 0
    %927 = vmatpush1.bf16.msra.mxu0 0
    %928 = vmatprep.mubr.bf16.mxu0 0
    %929 = vmatmul.mubr.bf16.gmra.mrb[0].mxu0 %v895
    %v930 = vpop.f32.mrb[0].mxu0
    %v931 = vadd.f32 0.0, %v930
    %v932 = vpop.f32.mrb[0].mxu0
    %v933 = vadd.f32 0.0, %v932
    %v934 = vpop.f32.mrb[0].mxu0
    %v935 = vpop.f32.mrb[0].mxu0
    %936 = vdwg.mxu0
    %937 = vmatprep.subr.bf16.mxu0 0
    %938 = vmatpush1.bf16.msra.mxu0 %v418
    %939 = vmatprep.subr.bf16.mxu0 0
    %940 = vmatpush1.bf16.msra.mxu0 %v421
    %941 = vmatprep.subr.bf16.mxu0 0
    %942 = vmatpush1.bf16.msra.mxu0 %v424
    %943 = vmatprep.subr.bf16.mxu0 0
    %944 = vmatpush1.bf16.msra.mxu0 %v427
    %945 = vmatprep.subr.bf16.mxu0 0
    %946 = vmatpush1.bf16.msra.mxu0 %v430
    %947 = vmatprep.subr.bf16.mxu0 0
    %948 = vmatpush1.bf16.msra.mxu0 %v433
    %949 = vmatprep.subr.bf16.mxu0 0
    %950 = vmatpush1.bf16.msra.mxu0 %v436
    %951 = vmatprep.subr.bf16.mxu0 0
    %952 = vmatpush1.bf16.msra.mxu0 %v439
    %953 = vmatprep.subr.bf16.mxu0 0
    %954 = vmatpush1.bf16.msra.mxu0 0
    %955 = vmatprep.subr.bf16.mxu0 0
    %956 = vmatpush1.bf16.msra.mxu0 0
    %957 = vmatprep.subr.bf16.mxu0 0
    %958 = vmatpush1.bf16.msra.mxu0 0
    %959 = vmatprep.subr.bf16.mxu0 0
    %960 = vmatpush1.bf16.msra.mxu0 0
    %961 = vmatprep.subr.bf16.mxu0 0
    %962 = vmatpush1.bf16.msra.mxu0 0
    %963 = vmatprep.subr.bf16.mxu0 0
    %964 = vmatpush1.bf16.msra.mxu0 0
    %965 = vmatprep.subr.bf16.mxu0 0
    %966 = vmatpush1.bf16.msra.mxu0 0
    %967 = vmatprep.subr.bf16.mxu0 0
    %968 = vmatpush1.bf16.msra.mxu0 0
    %969 = vmatprep.mubr.bf16.mxu0 0
    %970 = vmatmul.mubr.bf16.gmra.mrb[0].mxu0 %v895
    %v971 = vpop.f32.mrb[0].mxu0
    %v972 = vadd.f32 0.0, %v971
    %v973 = vpop.f32.mrb[0].mxu0
    %v974 = vpop.f32.mrb[0].mxu0
    %v975 = vpop.f32.mrb[0].mxu0
    %976 = vdwg.mxu0
    %v977 = vadd.f32 %v892, %v931
    %v978 = vxor.u32 %v977, 2147483648
    %v979 = vmul.f32 %v978, 1.442695
    %v980 = vpow.pop %v979
    %v981 = vadd.f32 %v980, 1.0
    %v982 = vrcp.pop %v981
    %v983 = vmul.f32 1.0, %v982
    %v984 = vadd.f32 %v893, %v933
    %v985 = vxor.u32 %v984, 2147483648
    %v986 = vmul.f32 %v985, 1.442695
    %v987 = vpow.pop %v986
    %v988 = vadd.f32 %v987, 1.0
    %v989 = vrcp.pop %v988
    %v990 = vmul.f32 1.0, %v989
    %v991 = vadd.f32 %v972, %v329
    %v992 = vmul.f32 %v983, %v991
    %v993 = vadd.f32 %v894, %v992
    %v994 = vtanh.pop %v993
    %v995 = vsub.f32 1.0, %v990
    %v996 = vmul.f32 %v995, %v994
    %v997 = vmul.f32 %v990, %v890
    %v998 = vadd.f32 %v996, %v997
    %s999 = scalar_lea.vmem [#allocation3], 120
    %v1000 = vld [vmem:[%s999] sm:$0xff]
    %v1001 = vld [vmem:[%s999 + $0x8] sm:$0xff]
    %v1002 = vld [vmem:[%s999 + $0x10] sm:$0xff]
    %v1003 = vpack.c.bf16 %v998, %v998
    %1004 = vmatprep.subr.bf16.mxu0 %v417
    %1005 = vmatpush1.bf16.msra.mxu0 %v416
    %1006 = vmatprep.subr.bf16.mxu0 %v420
    %1007 = vmatpush1.bf16.msra.mxu0 %v419
    %1008 = vmatprep.subr.bf16.mxu0 %v423
    %1009 = vmatpush1.bf16.msra.mxu0 %v422
    %1010 = vmatprep.subr.bf16.mxu0 %v426
    %1011 = vmatpush1.bf16.msra.mxu0 %v425
    %1012 = vmatprep.subr.bf16.mxu0 %v429
    %1013 = vmatpush1.bf16.msra.mxu0 %v428
    %1014 = vmatprep.subr.bf16.mxu0 %v432
    %1015 = vmatpush1.bf16.msra.mxu0 %v431
    %1016 = vmatprep.subr.bf16.mxu0 %v435
    %1017 = vmatpush1.bf16.msra.mxu0 %v434
    %1018 = vmatprep.subr.bf16.mxu0 %v438
    %1019 = vmatpush1.bf16.msra.mxu0 %v437
    %1020 = vmatprep.subr.bf16.mxu0 0
    %1021 = vmatpush1.bf16.msra.mxu0 0
    %1022 = vmatprep.subr.bf16.mxu0 0
    %1023 = vmatpush1.bf16.msra.mxu0 0
    %1024 = vmatprep.subr.bf16.mxu0 0
    %1025 = vmatpush1.bf16.msra.mxu0 0
    %1026 = vmatprep.subr.bf16.mxu0 0
    %1027 = vmatpush1.bf16.msra.mxu0 0
    %1028 = vmatprep.subr.bf16.mxu0 0
    %1029 = vmatpush1.bf16.msra.mxu0 0
    %1030 = vmatprep.subr.bf16.mxu0 0
    %1031 = vmatpush1.bf16.msra.mxu0 0
    %1032 = vmatprep.subr.bf16.mxu0 0
    %1033 = vmatpush1.bf16.msra.mxu0 0
    %1034 = vmatprep.subr.bf16.mxu0 0
    %1035 = vmatpush1.bf16.msra.mxu0 0
    %1036 = vmatprep.mubr.bf16.mxu0 0
    %1037 = vmatmul.mubr.bf16.gmra.mrb[0].mxu0 %v1003
    %v1038 = vpop.f32.mrb[0].mxu0
    %v1039 = vadd.f32 0.0, %v1038
    %v1040 = vpop.f32.mrb[0].mxu0
    %v1041 = vadd.f32 0.0, %v1040
    %v1042 = vpop.f32.mrb[0].mxu0
    %v1043 = vpop.f32.mrb[0].mxu0
    %1044 = vdwg.mxu0
    %1045 = vmatprep.subr.bf16.mxu0 0
    %1046 = vmatpush1.bf16.msra.mxu0 %v418
    %1047 = vmatprep.subr.bf16.mxu0 0
    %1048 = vmatpush1.bf16.msra.mxu0 %v421
    %1049 = vmatprep.subr.bf16.mxu0 0
    %1050 = vmatpush1.bf16.msra.mxu0 %v424
    %1051 = vmatprep.subr.bf16.mxu0 0
    %1052 = vmatpush1.bf16.msra.mxu0 %v427
    %1053 = vmatprep.subr.bf16.mxu0 0
    %1054 = vmatpush1.bf16.msra.mxu0 %v430
    %1055 = vmatprep.subr.bf16.mxu0 0
    %1056 = vmatpush1.bf16.msra.mxu0 %v433
    %1057 = vmatprep.subr.bf16.mxu0 0
    %1058 = vmatpush1.bf16.msra.mxu0 %v436
    %1059 = vmatprep.subr.bf16.mxu0 0
    %1060 = vmatpush1.bf16.msra.mxu0 %v439
    %1061 = vmatprep.subr.bf16.mxu0 0
    %1062 = vmatpush1.bf16.msra.mxu0 0
    %1063 = vmatprep.subr.bf16.mxu0 0
    %1064 = vmatpush1.bf16.msra.mxu0 0
    %1065 = vmatprep.subr.bf16.mxu0 0
    %1066 = vmatpush1.bf16.msra.mxu0 0
    %1067 = vmatprep.subr.bf16.mxu0 0
    %1068 = vmatpush1.bf16.msra.mxu0 0
    %1069 = vmatprep.subr.bf16.mxu0 0
    %1070 = vmatpush1.bf16.msra.mxu0 0
    %1071 = vmatprep.subr.bf16.mxu0 0
    %1072 = vmatpush1.bf16.msra.mxu0 0
    %1073 = vmatprep.subr.bf16.mxu0 0
    %1074 = vmatpush1.bf16.msra.mxu0 0
    %1075 = vmatprep.subr.bf16.mxu0 0
    %1076 = vmatpush1.bf16.msra.mxu0 0
    %1077 = vmatprep.mubr.bf16.mxu0 0
    %1078 = vmatmul.mubr.bf16.gmra.mrb[0].mxu0 %v1003
    %v1079 = vpop.f32.mrb[0].mxu0
    %v1080 = vadd.f32 0.0, %v1079
    %v1081 = vpop.f32.mrb[0].mxu0
    %v1082 = vpop.f32.mrb[0].mxu0
    %v1083 = vpop.f32.mrb[0].mxu0
    %1084 = vdwg.mxu0
    %v1085 = vadd.f32 %v1000, %v1039
    %v1086 = vxor.u32 %v1085, 2147483648
    %v1087 = vmul.f32 %v1086, 1.442695
    %v1088 = vpow.pop %v1087
    %v1089 = vadd.f32 %v1088, 1.0
    %v1090 = vrcp.pop %v1089
    %v1091 = vmul.f32 1.0, %v1090
    %v1092 = vadd.f32 %v1001, %v1041
    %v1093 = vxor.u32 %v1092, 2147483648
    %v1094 = vmul.f32 %v1093, 1.442695
    %v1095 = vpow.pop %v1094
    %v1096 = vadd.f32 %v1095, 1.0
    %v1097 = vrcp.pop %v1096
    %v1098 = vmul.f32 1.0, %v1097
    %v1099 = vadd.f32 %v1080, %v329
    %v1100 = vmul.f32 %v1091, %v1099
    %v1101 = vadd.f32 %v1002, %v1100
    %v1102 = vtanh.pop %v1101
    %v1103 = vsub.f32 1.0, %v1098
    %v1104 = vmul.f32 %v1103, %v1102
    %v1105 = vmul.f32 %v1098, %v998
    %v1106 = vadd.f32 %v1104, %v1105
    %s1107 = scalar_lea.vmem [#allocation3], 144
    %v1108 = vld [vmem:[%s1107] sm:$0xff]
    %v1109 = vld [vmem:[%s1107 + $0x8] sm:$0xff]
    %v1110 = vld [vmem:[%s1107 + $0x10] sm:$0xff]
    %v1111 = vpack.c.bf16 %v1106, %v1106
    %1112 = vmatprep.subr.bf16.mxu0 %v417
    %1113 = vmatpush1.bf16.msra.mxu0 %v416
    %1114 = vmatprep.subr.bf16.mxu0 %v420
    %1115 = vmatpush1.bf16.msra.mxu0 %v419
    %1116 = vmatprep.subr.bf16.mxu0 %v423
    %1117 = vmatpush1.bf16.msra.mxu0 %v422
    %1118 = vmatprep.subr.bf16.mxu0 %v426
    %1119 = vmatpush1.bf16.msra.mxu0 %v425
    %1120 = vmatprep.subr.bf16.mxu0 %v429
    %1121 = vmatpush1.bf16.msra.mxu0 %v428
    %1122 = vmatprep.subr.bf16.mxu0 %v432
    %1123 = vmatpush1.bf16.msra.mxu0 %v431
    %1124 = vmatprep.subr.bf16.mxu0 %v435
    %1125 = vmatpush1.bf16.msra.mxu0 %v434
    %1126 = vmatprep.subr.bf16.mxu0 %v438
    %1127 = vmatpush1.bf16.msra.mxu0 %v437
    %1128 = vmatprep.subr.bf16.mxu0 0
    %1129 = vmatpush1.bf16.msra.mxu0 0
    %1130 = vmatprep.subr.bf16.mxu0 0
    %1131 = vmatpush1.bf16.msra.mxu0 0
    %1132 = vmatprep.subr.bf16.mxu0 0
    %1133 = vmatpush1.bf16.msra.mxu0 0
    %1134 = vmatprep.subr.bf16.mxu0 0
    %1135 = vmatpush1.bf16.msra.mxu0 0
    %1136 = vmatprep.subr.bf16.mxu0 0
    %1137 = vmatpush1.bf16.msra.mxu0 0
    %1138 = vmatprep.subr.bf16.mxu0 0
    %1139 = vmatpush1.bf16.msra.mxu0 0
    %1140 = vmatprep.subr.bf16.mxu0 0
    %1141 = vmatpush1.bf16.msra.mxu0 0
    %1142 = vmatprep.subr.bf16.mxu0 0
    %1143 = vmatpush1.bf16.msra.mxu0 0
    %1144 = vmatprep.mubr.bf16.mxu0 0
    %1145 = vmatmul.mubr.bf16.gmra.mrb[0].mxu0 %v1111
    %v1146 = vpop.f32.mrb[0].mxu0
    %v1147 = vadd.f32 0.0, %v1146
    %v1148 = vpop.f32.mrb[0].mxu0
    %v1149 = vadd.f32 0.0, %v1148
    %v1150 = vpop.f32.mrb[0].mxu0
    %v1151 = vpop.f32.mrb[0].mxu0
    %1152 = vdwg.mxu0
    %1153 = vmatprep.subr.bf16.mxu0 0
    %1154 = vmatpush1.bf16.msra.mxu0 %v418
    %1155 = vmatprep.subr.bf16.mxu0 0
    %1156 = vmatpush1.bf16.msra.mxu0 %v421
    %1157 = vmatprep.subr.bf16.mxu0 0
    %1158 = vmatpush1.bf16.msra.mxu0 %v424
    %1159 = vmatprep.subr.bf16.mxu0 0
    %1160 = vmatpush1.bf16.msra.mxu0 %v427
    %1161 = vmatprep.subr.bf16.mxu0 0
    %1162 = vmatpush1.bf16.msra.mxu0 %v430
    %1163 = vmatprep.subr.bf16.mxu0 0
    %1164 = vmatpush1.bf16.msra.mxu0 %v433
    %1165 = vmatprep.subr.bf16.mxu0 0
    %1166 = vmatpush1.bf16.msra.mxu0 %v436
    %1167 = vmatprep.subr.bf16.mxu0 0
    %1168 = vmatpush1.bf16.msra.mxu0 %v439
    %1169 = vmatprep.subr.bf16.mxu0 0
    %1170 = vmatpush1.bf16.msra.mxu0 0
    %1171 = vmatprep.subr.bf16.mxu0 0
    %1172 = vmatpush1.bf16.msra.mxu0 0
    %1173 = vmatprep.subr.bf16.mxu0 0
    %1174 = vmatpush1.bf16.msra.mxu0 0
    %1175 = vmatprep.subr.bf16.mxu0 0
    %1176 = vmatpush1.bf16.msra.mxu0 0
    %1177 = vmatprep.subr.bf16.mxu0 0
    %1178 = vmatpush1.bf16.msra.mxu0 0
    %1179 = vmatprep.subr.bf16.mxu0 0
    %1180 = vmatpush1.bf16.msra.mxu0 0
    %1181 = vmatprep.subr.bf16.mxu0 0
    %1182 = vmatpush1.bf16.msra.mxu0 0
    %1183 = vmatprep.subr.bf16.mxu0 0
    %1184 = vmatpush1.bf16.msra.mxu0 0
    %1185 = vmatprep.mubr.bf16.mxu0 0
    %1186 = vmatmul.mubr.bf16.gmra.mrb[0].mxu0 %v1111
    %v1187 = vpop.f32.mrb[0].mxu0
    %v1188 = vadd.f32 0.0, %v1187
    %v1189 = vpop.f32.mrb[0].mxu0
    %v1190 = vpop.f32.mrb[0].mxu0
    %v1191 = vpop.f32.mrb[0].mxu0
    %1192 = vdwg.mxu0
    %v1193 = vadd.f32 %v1108, %v1147
    %v1194 = vxor.u32 %v1193, 2147483648
    %v1195 = vmul.f32 %v1194, 1.442695
    %v1196 = vpow.pop %v1195
    %v1197 = vadd.f32 %v1196, 1.0
    %v1198 = vrcp.pop %v1197
    %v1199 = vmul.f32 1.0, %v1198
    %v1200 = vadd.f32 %v1109, %v1149
    %v1201 = vxor.u32 %v1200, 2147483648
    %v1202 = vmul.f32 %v1201, 1.442695
    %v1203 = vpow.pop %v1202
    %v1204 = vadd.f32 %v1203, 1.0
    %v1205 = vrcp.pop %v1204
    %v1206 = vmul.f32 1.0, %v1205
    %v1207 = vadd.f32 %v1188, %v329
    %v1208 = vmul.f32 %v1199, %v1207
    %v1209 = vadd.f32 %v1110, %v1208
    %v1210 = vtanh.pop %v1209
    %v1211 = vsub.f32 1.0, %v1206
    %v1212 = vmul.f32 %v1211, %v1210
    %v1213 = vmul.f32 %v1206, %v1106
    %v1214 = vadd.f32 %v1212, %v1213
    %s1215 = scalar_lea.vmem [#allocation3], 168
    %v1216 = vld [vmem:[%s1215] sm:$0xff]
    %v1217 = vld [vmem:[%s1215 + $0x8] sm:$0xff]
    %v1218 = vld [vmem:[%s1215 + $0x10] sm:$0xff]
    %v1219 = vpack.c.bf16 %v1214, %v1214
    %1220 = vmatprep.subr.bf16.mxu0 %v417
    %1221 = vmatpush1.bf16.msra.mxu0 %v416
    %1222 = vmatprep.subr.bf16.mxu0 %v420
    %1223 = vmatpush1.bf16.msra.mxu0 %v419
    %1224 = vmatprep.subr.bf16.mxu0 %v423
    %1225 = vmatpush1.bf16.msra.mxu0 %v422
    %1226 = vmatprep.subr.bf16.mxu0 %v426
    %1227 = vmatpush1.bf16.msra.mxu0 %v425
    %1228 = vmatprep.subr.bf16.mxu0 %v429
    %1229 = vmatpush1.bf16.msra.mxu0 %v428
    %1230 = vmatprep.subr.bf16.mxu0 %v432
    %1231 = vmatpush1.bf16.msra.mxu0 %v431
    %1232 = vmatprep.subr.bf16.mxu0 %v435
    %1233 = vmatpush1.bf16.msra.mxu0 %v434
    %1234 = vmatprep.subr.bf16.mxu0 %v438
    %1235 = vmatpush1.bf16.msra.mxu0 %v437
    %1236 = vmatprep.subr.bf16.mxu0 0
    %1237 = vmatpush1.bf16.msra.mxu0 0
    %1238 = vmatprep.subr.bf16.mxu0 0
    %1239 = vmatpush1.bf16.msra.mxu0 0
    %1240 = vmatprep.subr.bf16.mxu0 0
    %1241 = vmatpush1.bf16.msra.mxu0 0
    %1242 = vmatprep.subr.bf16.mxu0 0
    %1243 = vmatpush1.bf16.msra.mxu0 0
    %1244 = vmatprep.subr.bf16.mxu0 0
    %1245 = vmatpush1.bf16.msra.mxu0 0
    %1246 = vmatprep.subr.bf16.mxu0 0
    %1247 = vmatpush1.bf16.msra.mxu0 0
    %1248 = vmatprep.subr.bf16.mxu0 0
    %1249 = vmatpush1.bf16.msra.mxu0 0
    %1250 = vmatprep.subr.bf16.mxu0 0
    %1251 = vmatpush1.bf16.msra.mxu0 0
    %1252 = vmatprep.mubr.bf16.mxu0 0
    %1253 = vmatmul.mubr.bf16.gmra.mrb[0].mxu0 %v1219
    %v1254 = vpop.f32.mrb[0].mxu0
    %v1255 = vadd.f32 0.0, %v1254
    %v1256 = vpop.f32.mrb[0].mxu0
    %v1257 = vadd.f32 0.0, %v1256
    %v1258 = vpop.f32.mrb[0].mxu0
    %v1259 = vpop.f32.mrb[0].mxu0
    %1260 = vdwg.mxu0
    %1261 = vmatprep.subr.bf16.mxu0 0
    %1262 = vmatpush1.bf16.msra.mxu0 %v418
    %1263 = vmatprep.subr.bf16.mxu0 0
    %1264 = vmatpush1.bf16.msra.mxu0 %v421
    %1265 = vmatprep.subr.bf16.mxu0 0
    %1266 = vmatpush1.bf16.msra.mxu0 %v424
    %1267 = vmatprep.subr.bf16.mxu0 0
    %1268 = vmatpush1.bf16.msra.mxu0 %v427
    %1269 = vmatprep.subr.bf16.mxu0 0
    %1270 = vmatpush1.bf16.msra.mxu0 %v430
    %1271 = vmatprep.subr.bf16.mxu0 0
    %1272 = vmatpush1.bf16.msra.mxu0 %v433
    %1273 = vmatprep.subr.bf16.mxu0 0
    %1274 = vmatpush1.bf16.msra.mxu0 %v436
    %1275 = vmatprep.subr.bf16.mxu0 0
    %1276 = vmatpush1.bf16.msra.mxu0 %v439
    %1277 = vmatprep.subr.bf16.mxu0 0
    %1278 = vmatpush1.bf16.msra.mxu0 0
    %1279 = vmatprep.subr.bf16.mxu0 0
    %1280 = vmatpush1.bf16.msra.mxu0 0
    %1281 = vmatprep.subr.bf16.mxu0 0
    %1282 = vmatpush1.bf16.msra.mxu0 0
    %1283 = vmatprep.subr.bf16.mxu0 0
    %1284 = vmatpush1.bf16.msra.mxu0 0
    %1285 = vmatprep.subr.bf16.mxu0 0
    %1286 = vmatpush1.bf16.msra.mxu0 0
    %1287 = vmatprep.subr.bf16.mxu0 0
    %1288 = vmatpush1.bf16.msra.mxu0 0
    %1289 = vmatprep.subr.bf16.mxu0 0
    %1290 = vmatpush1.bf16.msra.mxu0 0
    %1291 = vmatprep.subr.bf16.mxu0 0
    %1292 = vmatpush1.bf16.msra.mxu0 0
    %1293 = vmatprep.mubr.bf16.mxu0 0
    %1294 = vmatmul.mubr.bf16.gmra.mrb[0].mxu0 %v1219
    %v1295 = vpop.f32.mrb[0].mxu0
    %v1296 = vadd.f32 0.0, %v1295
    %v1297 = vpop.f32.mrb[0].mxu0
    %v1298 = vpop.f32.mrb[0].mxu0
    %v1299 = vpop.f32.mrb[0].mxu0
    %1300 = vdwg.mxu0
    %v1301 = vadd.f32 %v1216, %v1255
    %v1302 = vxor.u32 %v1301, 2147483648
    %v1303 = vmul.f32 %v1302, 1.442695
    %v1304 = vpow.pop %v1303
    %v1305 = vadd.f32 %v1304, 1.0
    %v1306 = vrcp.pop %v1305
    %v1307 = vmul.f32 1.0, %v1306
    %v1308 = vadd.f32 %v1217, %v1257
    %v1309 = vxor.u32 %v1308, 2147483648
    %v1310 = vmul.f32 %v1309, 1.442695
    %v1311 = vpow.pop %v1310
    %v1312 = vadd.f32 %v1311, 1.0
    %v1313 = vrcp.pop %v1312
    %v1314 = vmul.f32 1.0, %v1313
    %v1315 = vadd.f32 %v1296, %v329
    %v1316 = vmul.f32 %v1307, %v1315
    %v1317 = vadd.f32 %v1218, %v1316
    %v1318 = vtanh.pop %v1317
    %v1319 = vsub.f32 1.0, %v1314
    %v1320 = vmul.f32 %v1319, %v1318
    %v1321 = vmul.f32 %v1314, %v1214
    %v1322 = vadd.f32 %v1320, %v1321
    %1323 = vst [vmem:[#allocation2] sm:$0xff] %v1322
    %1324 = vst [vmem:[#allocation10] sm:$0xff] %v1322
    // Predicated region
    $region38: #{tpu_custom_call.1} parent=1 // pred_check
      _
    $region39: #{tpu_custom_call.1} parent=1 // pred_check_branch
      %1326 = sbr.rel (0) target = $region41
    $region40: #{tpu_custom_call.1} parent=1 // pred_region
      %s1328 = ssub.s32 128, 128
      %1329 = vsyncadd [#allocation6], %s1328
      %s1331 = sshll.u32 [#allocation10], 4
      %s1332 = int_to_ptr.vmem [resolvable:$true] %s1331
      %1334 = dma.vmem_to_hbm [thread:$0]  %s1332, 128, %s5, [#allocation6]
    $region41: #{tpu_custom_call.1} parent=1 // pred_fallthru
      _
    // Predicated region
    $region42: #{tpu_custom_call.1} parent=1 // pred_check
      _
    $region43: #{tpu_custom_call.1} parent=1 // pred_check_branch
      %1336 = sbr.rel (0) target = $region45
    $region44: #{tpu_custom_call.1} parent=1 // pred_region
      %1337 = dma.done [#allocation6], 128
    $region45: #{tpu_custom_call.1} parent=1 // pred_fallthru
      _
    %1338 = vsyncpa [#allocation5], 1
    %1339 = vsyncpa [#allocation8], 1
    %1340 = vsyncpa [#allocation6], 1

</llo_original>
